<compile_context>
chip_gen: v6e
topology: v6e:2x2x1
jax: 0.10.0
libtpu: 0.0.40
codegen_flags: <defaults>
</compile_context>

<pallas_src>
import functools

import jax
import jax.numpy as jnp
from jax.experimental import pallas as pl
from jax.experimental.pallas import tpu as pltpu

EPS = 1e-5  # nn.BatchNorm2d default eps


def _make_im2col_builder(TR, W, Cin):
    """Packs the 3x3 x Cin neighbourhood of every original-resolution pixel of the
    row tile into lhs_ref[p*W + q, (kh*3 + kw)*Cin + ci] (standard im2col), built
    directly from the main-rows block plus the two 1-row halo blocks with static
    slices only (no full-window VMEM copy)."""

    def build(xm, xh0, xh1, lhs_ref):
        for kh in range(3):
            for kw in range(3):
                c0 = (kh * 3 + kw) * Cin
                n_main = max(TR - kh, 0)
                if n_main > 0:
                    lhs_ref[0:n_main * W, c0:c0 + Cin] = (
                        xm[kh:kh + n_main, kw:kw + W, :].reshape(n_main * W, Cin))
                for p in range(n_main, TR):          # at most 2 halo rows per tap
                    src = xh0 if (p + kh) == TR else xh1
                    lhs_ref[p * W:(p + 1) * W, c0:c0 + Cin] = src[0, kw:kw + W, :]

    return build


def _make_kernels(TR, W, Cin, C4):
    npix = TR * W
    build = _make_im2col_builder(TR, W, Cin)

    def stats_kernel(xm, xh0, xh1, w_ref, stats_ref, lhs_ref):
        # phase 1: conv tile -> centered per-tile per-column partial BN stats
        build(xm, xh0, xh1, lhs_ref)
        acc = jnp.dot(lhs_ref[...], w_ref[...],
                      preferred_element_type=jnp.float32)       # (npix, C4)
        s = jnp.sum(acc, axis=0, keepdims=True)                 # (1, C4)
        d = acc - s * (1.0 / npix)                              # centered
        stats_ref[0:1, :] = s
        stats_ref[1:2, :] = jnp.sum(d * d, axis=0, keepdims=True)

    def out_kernel(xm, xh0, xh1, w_ref, scale_ref, shift_ref, y_ref, lhs_ref):
        # phase 2: recompute the cheap conv, fuse BN (scale/shift) + ReLU,
        # write the large tensor exactly once (unpadded 4*Cout lanes).
        build(xm, xh0, xh1, lhs_ref)
        acc = jnp.dot(lhs_ref[...], w_ref[...],
                      preferred_element_type=jnp.float32)       # (npix, C4)
        y_ref[...] = jnp.maximum(acc * scale_ref[...] + shift_ref[...], 0.0)

    return stats_kernel, out_kernel


def _pick_row_tile(H, W, Cin, C4, budget_bytes=8 << 20):
    cands = [tr for tr in range(1, H + 1) if H % tr == 0 and (tr * W) % 8 == 0]
    if not cands:
        raise ValueError(f"no valid row tile for H={H}, W={W}")

    def tile_bytes(tr):
        # im2col scratch + (rough) double-buffered in/out blocks
        return 4 * tr * W * (9 * Cin + 2 * C4) + 8 * (tr + 2) * (W + 2) * Cin

    within = [tr for tr in cands if tile_bytes(tr) <= budget_bytes]
    return max(within) if within else min(cands)


@functools.partial(jax.jit, static_argnames=("row_tile",))
def conv_up_sample(x, weight, bias, gamma, beta, *, row_tile=None):
    """x: (N, Cin, H, W) f32; weight: (Cout, Cin, 3, 3); bias/gamma/beta: (Cout,).
    Returns (N, Cout, 2H, 2W) = ReLU(BN_train(conv3x3(upsample_nearest_x2(x))))."""
    N, Cin, H, W = x.shape
    Cout = weight.shape[0]
    C4 = 4 * Cout                        # 4 output phases (h%2, w%2) per pixel
    # The conv bias only shifts the per-channel batch mean and cancels exactly
    # under train-mode BatchNorm, so it is not fed to the kernels at all.
    del bias

    if row_tile is None:
        row_tile = _pick_row_tile(H, W, Cin, C4)
    TR = int(row_tile)
    if H % TR != 0 or (TR * W) % 8 != 0:
        raise ValueError(f"row_tile={TR} invalid for H={H}, W={W}")
    R = H // TR
    npix = TR * W
    Wp2 = W + 2

    # ---- host prep: original-resolution only (the 4x upsampled image is never
    # materialized) ----------------------------------------------------------
    # TODO(synk): fold the NCHW->NHWC transpose and the 1-pixel zero pad into the
    # kernel (boundary tiles) to drop this last small wrapper-side copy.
    xp = jnp.pad(x.transpose(0, 2, 3, 1), ((0, 0), (1, 1), (1, 1), (0, 0)))

    # Parity-collapsed weights, zero-embedded on the original 3x3 grid:
    #   wpk[(kh*3+kw)*Cin+ci, (ph*2+pw)*Cout+c] = sum_{a,b} T[ph,kh,a]T[pw,kw,b]W[c,ci,a,b]
    # so that  y_up[2p+ph, 2q+pw, c] = im2col(x)[p, q, :] @ wpk[:, (ph,pw,c)].
    T = jnp.array([[[1., 0., 0.], [0., 1., 1.], [0., 0., 0.]],
                   [[0., 0., 0.], [1., 1., 0.], [0., 0., 1.]]], jnp.float32)
    wpk = jnp.einsum("pra,qsb,oiab->rsipqo", T, T,
                     weight.astype(jnp.float32)).reshape(9 * Cin, C4)

    stats_kernel, out_kernel = _make_kernels(TR, W, Cin, C4)

    x_specs = [
        pl.BlockSpec((None, TR, Wp2, Cin), lambda n, r: (n, r, 0, 0)),
        pl.BlockSpec((None, 1, Wp2, Cin), lambda n, r: (n, (r + 1) * TR, 0, 0)),
        pl.BlockSpec((None, 1, Wp2, Cin), lambda n, r: (n, (r + 1) * TR + 1, 0, 0)),
    ]
    w_spec = pl.BlockSpec((9 * Cin, C4), lambda n, r: (0, 0))
    cparams = pltpu.CompilerParams(
        dimension_semantics=("parallel", "parallel"),
        vmem_limit_bytes=32 * 1024 * 1024)
    flops = 2 * N * H * W * (9 * Cin) * C4

    # ---- phase 1: conv tiles -> per-tile centered BN partial stats ----------
    stats = pl.pallas_call(
        stats_kernel,
        out_shape=jax.ShapeDtypeStruct((N * R, 2, C4), jnp.float32),
        grid=(N, R),
        in_specs=x_specs + [w_spec],
        out_specs=pl.BlockSpec((None, 2, C4), lambda n, r: (n * R + r, 0, 0)),
        scratch_shapes=[pltpu.VMEM((npix, 9 * Cin), jnp.float32)],
        compiler_params=cparams,
        cost_estimate=pl.CostEstimate(
            flops=flops, transcendentals=0,
            bytes_accessed=4 * (xp.size + wpk.size + N * R * 2 * C4)),
    )(xp, xp, xp, wpk)

    # ---- tiny host reduction: Chan-combine partials -> per-channel scale/shift
    s_p, ss_p = stats[:, 0, :], stats[:, 1, :]               # (N*R, C4) each
    total = N * 4 * H * W                                    # = N * 2H * 2W
    mean = jnp.sum(s_p.reshape(-1, 4, Cout), axis=(0, 1)) / total
    m_p = s_p * (1.0 / npix)                                 # per-tile/phase means
    m2 = ss_p + npix * (m_p - jnp.tile(mean, 4)) ** 2
    var = jnp.sum(m2.reshape(-1, 4, Cout), axis=(0, 1)) / total
    scale = gamma.astype(jnp.float32) * jax.lax.rsqrt(var + EPS)
    shift = beta.astype(jnp.float32) - mean * scale
    scale4 = jnp.tile(scale, 4).reshape(1, C4)
    shift4 = jnp.tile(shift, 4).reshape(1, C4)

    # ---- phase 2: recompute conv, fused BN + ReLU, single write of y --------
    sc_spec = pl.BlockSpec((1, C4), lambda n, r: (0, 0))
    y = pl.pallas_call(
        out_kernel,
        out_shape=jax.ShapeDtypeStruct((N * H * W, C4), jnp.float32),
        grid=(N, R),
        in_specs=x_specs + [w_spec, sc_spec, sc_spec],
        out_specs=pl.BlockSpec((npix, C4), lambda n, r: (n * R + r, 0)),
        scratch_shapes=[pltpu.VMEM((npix, 9 * Cin), jnp.float32)],
        compiler_params=cparams,
        cost_estimate=pl.CostEstimate(
            flops=flops, transcendentals=0,
            bytes_accessed=4 * (xp.size + wpk.size + 2 * C4 + N * H * W * C4)),
    )(xp, xp, xp, wpk, scale4, shift4)

    # ---- final layout: (n,p,q,ph,pw,c) -> NCHW (n,c,2p+ph,2q+pw) -------------
    # TODO(synk): fold this phase-interleave/transpose into the phase-2 out_spec
    # (needs an in-kernel channels-to-sublanes relayout); left to XLA for now.
    y = y.reshape(N, H, W, 2, 2, Cout).transpose(0, 5, 1, 3, 2, 4)
    return y.reshape(N, Cout, 2 * H, 2 * W)


if __name__ == "__main__":
    N, Cin, H, W = 2, 4, 16, 16
    Cout = 8

    key = jax.random.PRNGKey(0)
    kx, kw, kb, kg, kbeta = jax.random.split(key, 5)
    x = jax.random.normal(kx, (N, Cin, H, W), dtype=jnp.float32)
    weight = jax.random.normal(kw, (Cout, Cin, 3, 3), dtype=jnp.float32) * 0.1
    bias = jax.random.normal(kb, (Cout,), dtype=jnp.float32) * 0.1
    gamma = 1.0 + 0.1 * jax.random.normal(kg, (Cout,), dtype=jnp.float32)
    beta = 0.1 * jax.random.normal(kbeta, (Cout,), dtype=jnp.float32)

    # Pure-JAX reference (upsample -> conv(+bias) -> train-mode BN -> ReLU).
    up_ref = jnp.repeat(jnp.repeat(x, 2, axis=2), 2, axis=3)
    y_conv = jax.lax.conv_general_dilated(
        up_ref, weight, window_strides=(1, 1), padding=((1, 1), (1, 1)),
        dimension_numbers=("NCHW", "OIHW", "NCHW")) + bias.reshape(1, -1, 1, 1)
    mu = y_conv.mean(axis=(0, 2, 3), keepdims=True)
    var = ((y_conv - mu) ** 2).mean(axis=(0, 2, 3), keepdims=True)
    y_ref = jnp.maximum(
        (y_conv - mu) * jax.lax.rsqrt(var + EPS) * gamma.reshape(1, -1, 1, 1)
        + beta.reshape(1, -1, 1, 1), 0.0)

    # row_tile=8 -> grid (N, 2): exercises the halo / multi-tile path; None ->
    # auto-picked largest tile (single row tile at these shapes).
    for rt in (8, None):
        y = jax.block_until_ready(
            conv_up_sample(x, weight, bias, gamma, beta, row_tile=rt))
        assert y.shape == (N, Cout, 2 * H, 2 * W), y.shape
        max_err = float(jnp.abs(y - y_ref).max())
        assert jnp.allclose(y, y_ref, atol=2e-4, rtol=2e-4), (rt, max_err)

    print("KERNEL_OK")
</pallas_src>

<mosaic_0001>
module attributes {stable_mosaic.version = 11 : i64} {
  func.func @stats_kernel(%arg0: i32, %arg1: i32, %arg2: memref<1x8x18x4xf32, #tpu.memory_space<vmem>>, %arg3: memref<1x1x18x4xf32, #tpu.memory_space<vmem>>, %arg4: memref<1x1x18x4xf32, #tpu.memory_space<vmem>>, %arg5: memref<36x32xf32, #tpu.memory_space<vmem>>, %arg6: memref<1x2x32xf32, #tpu.memory_space<vmem>>, %arg7: memref<128x36xf32, #tpu.memory_space<vmem>>) attributes {dimension_semantics = [#tpu.dimension_semantics<parallel>, #tpu.dimension_semantics<parallel>], iteration_bounds = array<i64: 2, 2>, scalar_prefetch = 0 : i64, scratch_operands = 1 : i64, tpu.core_type = #tpu.core_type<tc>, window_params = [{transform_indices = @transform_0, window_bounds = array<i64: 1, 8, 18, 4>}, {transform_indices = @transform_1, window_bounds = array<i64: 1, 1, 18, 4>}, {transform_indices = @transform_2, window_bounds = array<i64: 1, 1, 18, 4>}, {pipeline_mode = #tpu.pipeline_mode<synchronous>, transform_indices = @transform_3, window_bounds = array<i64: 36, 32>}, {transform_indices = @transform_4, window_bounds = array<i64: 1, 2, 32>}]} {
    %c0 = arith.constant 0 : index
    %c0_0 = arith.constant 0 : index
    %c0_1 = arith.constant 0 : index
    %c0_2 = arith.constant 0 : index
    %0 = vector.load %arg2[%c0, %c0_0, %c0_1, %c0_2] : memref<1x8x18x4xf32, #tpu.memory_space<vmem>>, vector<1x8x16x4xf32>
    %1 = vector.shape_cast %0 : vector<1x8x16x4xf32> to vector<8x16x4xf32>
    %2 = vector.shape_cast %1 : vector<8x16x4xf32> to vector<128x4xf32>
    %c0_3 = arith.constant 0 : index
    %c0_4 = arith.constant 0 : index
    %3 = vector.load %arg7[%c0_3, %c0_4] : memref<128x36xf32, #tpu.memory_space<vmem>>, vector<128x4xf32>
    tpu.vector_store %arg7[%c0_3, %c0_4], %2 {strides = array<i32>} : memref<128x36xf32, #tpu.memory_space<vmem>>, vector<128x4xf32>,
    %c0_5 = arith.constant 0 : index
    %c0_6 = arith.constant 0 : index
    %c1 = arith.constant 1 : index
    %c0_7 = arith.constant 0 : index
    %4 = vector.load %arg2[%c0_5, %c0_6, %c1, %c0_7] : memref<1x8x18x4xf32, #tpu.memory_space<vmem>>, vector<1x8x16x4xf32>
    %5 = vector.shape_cast %4 : vector<1x8x16x4xf32> to vector<8x16x4xf32>
    %6 = vector.shape_cast %5 : vector<8x16x4xf32> to vector<128x4xf32>
    %c0_8 = arith.constant 0 : index
    %c4 = arith.constant 4 : index
    %7 = vector.load %arg7[%c0_8, %c4] : memref<128x36xf32, #tpu.memory_space<vmem>>, vector<128x4xf32>
    tpu.vector_store %arg7[%c0_8, %c4], %6 {strides = array<i32>} : memref<128x36xf32, #tpu.memory_space<vmem>>, vector<128x4xf32>,
    %c0_9 = arith.constant 0 : index
    %c0_10 = arith.constant 0 : index
    %c2 = arith.constant 2 : index
    %c0_11 = arith.constant 0 : index
    %8 = vector.load %arg2[%c0_9, %c0_10, %c2, %c0_11] : memref<1x8x18x4xf32, #tpu.memory_space<vmem>>, vector<1x8x16x4xf32>
    %9 = vector.shape_cast %8 : vector<1x8x16x4xf32> to vector<8x16x4xf32>
    %10 = vector.shape_cast %9 : vector<8x16x4xf32> to vector<128x4xf32>
    %c0_12 = arith.constant 0 : index
    %c8 = arith.constant 8 : index
    %11 = vector.load %arg7[%c0_12, %c8] : memref<128x36xf32, #tpu.memory_space<vmem>>, vector<128x4xf32>
    tpu.vector_store %arg7[%c0_12, %c8], %10 {strides = array<i32>} : memref<128x36xf32, #tpu.memory_space<vmem>>, vector<128x4xf32>,
    %c0_13 = arith.constant 0 : index
    %c1_14 = arith.constant 1 : index
    %c0_15 = arith.constant 0 : index
    %c0_16 = arith.constant 0 : index
    %12 = vector.load %arg2[%c0_13, %c1_14, %c0_15, %c0_16] : memref<1x8x18x4xf32, #tpu.memory_space<vmem>>, vector<1x7x16x4xf32>
    %13 = vector.shape_cast %12 : vector<1x7x16x4xf32> to vector<7x16x4xf32>
    %14 = vector.shape_cast %13 : vector<7x16x4xf32> to vector<112x4xf32>
    %c0_17 = arith.constant 0 : index
    %c12 = arith.constant 12 : index
    %15 = vector.load %arg7[%c0_17, %c12] : memref<128x36xf32, #tpu.memory_space<vmem>>, vector<112x4xf32>
    tpu.vector_store %arg7[%c0_17, %c12], %14 {strides = array<i32>} : memref<128x36xf32, #tpu.memory_space<vmem>>, vector<112x4xf32>,
    %c0_18 = arith.constant 0 : index
    %c0_19 = arith.constant 0 : index
    %c0_20 = arith.constant 0 : index
    %c0_21 = arith.constant 0 : index
    %16 = vector.load %arg3[%c0_18, %c0_19, %c0_20, %c0_21] : memref<1x1x18x4xf32, #tpu.memory_space<vmem>>, vector<1x1x16x4xf32>
    %17 = vector.shape_cast %16 : vector<1x1x16x4xf32> to vector<16x4xf32>
    %c112 = arith.constant 112 : index
    %c12_22 = arith.constant 12 : index
    %18 = vector.load %arg7[%c112, %c12_22] : memref<128x36xf32, #tpu.memory_space<vmem>>, vector<16x4xf32>
    tpu.vector_store %arg7[%c112, %c12_22], %17 {strides = array<i32>} : memref<128x36xf32, #tpu.memory_space<vmem>>, vector<16x4xf32>,
    %c0_23 = arith.constant 0 : index
    %c1_24 = arith.constant 1 : index
    %c1_25 = arith.constant 1 : index
    %c0_26 = arith.constant 0 : index
    %19 = vector.load %arg2[%c0_23, %c1_24, %c1_25, %c0_26] : memref<1x8x18x4xf32, #tpu.memory_space<vmem>>, vector<1x7x16x4xf32>
    %20 = vector.shape_cast %19 : vector<1x7x16x4xf32> to vector<7x16x4xf32>
    %21 = vector.shape_cast %20 : vector<7x16x4xf32> to vector<112x4xf32>
    %c0_27 = arith.constant 0 : index
    %c16 = arith.constant 16 : index
    %22 = vector.load %arg7[%c0_27, %c16] : memref<128x36xf32, #tpu.memory_space<vmem>>, vector<112x4xf32>
    tpu.vector_store %arg7[%c0_27, %c16], %21 {strides = array<i32>} : memref<128x36xf32, #tpu.memory_space<vmem>>, vector<112x4xf32>,
    %c0_28 = arith.constant 0 : index
    %c0_29 = arith.constant 0 : index
    %c1_30 = arith.constant 1 : index
    %c0_31 = arith.constant 0 : index
    %23 = vector.load %arg3[%c0_28, %c0_29, %c1_30, %c0_31] : memref<1x1x18x4xf32, #tpu.memory_space<vmem>>, vector<1x1x16x4xf32>
    %24 = vector.shape_cast %23 : vector<1x1x16x4xf32> to vector<16x4xf32>
    %c112_32 = arith.constant 112 : index
    %c16_33 = arith.constant 16 : index
    %25 = vector.load %arg7[%c112_32, %c16_33] : memref<128x36xf32, #tpu.memory_space<vmem>>, vector<16x4xf32>
    tpu.vector_store %arg7[%c112_32, %c16_33], %24 {strides = array<i32>} : memref<128x36xf32, #tpu.memory_space<vmem>>, vector<16x4xf32>,
    %c0_34 = arith.constant 0 : index
    %c1_35 = arith.constant 1 : index
    %c2_36 = arith.constant 2 : index
    %c0_37 = arith.constant 0 : index
    %26 = vector.load %arg2[%c0_34, %c1_35, %c2_36, %c0_37] : memref<1x8x18x4xf32, #tpu.memory_space<vmem>>, vector<1x7x16x4xf32>
    %27 = vector.shape_cast %26 : vector<1x7x16x4xf32> to vector<7x16x4xf32>
    %28 = vector.shape_cast %27 : vector<7x16x4xf32> to vector<112x4xf32>
    %c0_38 = arith.constant 0 : index
    %c20 = arith.constant 20 : index
    %29 = vector.load %arg7[%c0_38, %c20] : memref<128x36xf32, #tpu.memory_space<vmem>>, vector<112x4xf32>
    tpu.vector_store %arg7[%c0_38, %c20], %28 {strides = array<i32>} : memref<128x36xf32, #tpu.memory_space<vmem>>, vector<112x4xf32>,
    %c0_39 = arith.constant 0 : index
    %c0_40 = arith.constant 0 : index
    %c2_41 = arith.constant 2 : index
    %c0_42 = arith.constant 0 : index
    %30 = vector.load %arg3[%c0_39, %c0_40, %c2_41, %c0_42] : memref<1x1x18x4xf32, #tpu.memory_space<vmem>>, vector<1x1x16x4xf32>
    %31 = vector.shape_cast %30 : vector<1x1x16x4xf32> to vector<16x4xf32>
    %c112_43 = arith.constant 112 : index
    %c20_44 = arith.constant 20 : index
    %32 = vector.load %arg7[%c112_43, %c20_44] : memref<128x36xf32, #tpu.memory_space<vmem>>, vector<16x4xf32>
    tpu.vector_store %arg7[%c112_43, %c20_44], %31 {strides = array<i32>} : memref<128x36xf32, #tpu.memory_space<vmem>>, vector<16x4xf32>,
    %c0_45 = arith.constant 0 : index
    %c2_46 = arith.constant 2 : index
    %c0_47 = arith.constant 0 : index
    %c0_48 = arith.constant 0 : index
    %33 = vector.load %arg2[%c0_45, %c2_46, %c0_47, %c0_48] : memref<1x8x18x4xf32, #tpu.memory_space<vmem>>, vector<1x6x16x4xf32>
    %34 = vector.shape_cast %33 : vector<1x6x16x4xf32> to vector<6x16x4xf32>
    %35 = vector.shape_cast %34 : vector<6x16x4xf32> to vector<96x4xf32>
    %c0_49 = arith.constant 0 : index
    %c24 = arith.constant 24 : index
    %36 = vector.load %arg7[%c0_49, %c24] : memref<128x36xf32, #tpu.memory_space<vmem>>, vector<96x4xf32>
    tpu.vector_store %arg7[%c0_49, %c24], %35 {strides = array<i32>} : memref<128x36xf32, #tpu.memory_space<vmem>>, vector<96x4xf32>,
    %c0_50 = arith.constant 0 : index
    %c0_51 = arith.constant 0 : index
    %c0_52 = arith.constant 0 : index
    %c0_53 = arith.constant 0 : index
    %37 = vector.load %arg3[%c0_50, %c0_51, %c0_52, %c0_53] : memref<1x1x18x4xf32, #tpu.memory_space<vmem>>, vector<1x1x16x4xf32>
    %38 = vector.shape_cast %37 : vector<1x1x16x4xf32> to vector<16x4xf32>
    %c96 = arith.constant 96 : index
    %c24_54 = arith.constant 24 : index
    %39 = vector.load %arg7[%c96, %c24_54] : memref<128x36xf32, #tpu.memory_space<vmem>>, vector<16x4xf32>
    tpu.vector_store %arg7[%c96, %c24_54], %38 {strides = array<i32>} : memref<128x36xf32, #tpu.memory_space<vmem>>, vector<16x4xf32>,
    %c0_55 = arith.constant 0 : index
    %c0_56 = arith.constant 0 : index
    %c0_57 = arith.constant 0 : index
    %c0_58 = arith.constant 0 : index
    %40 = vector.load %arg4[%c0_55, %c0_56, %c0_57, %c0_58] : memref<1x1x18x4xf32, #tpu.memory_space<vmem>>, vector<1x1x16x4xf32>
    %41 = vector.shape_cast %40 : vector<1x1x16x4xf32> to vector<16x4xf32>
    %c112_59 = arith.constant 112 : index
    %c24_60 = arith.constant 24 : index
    %42 = vector.load %arg7[%c112_59, %c24_60] : memref<128x36xf32, #tpu.memory_space<vmem>>, vector<16x4xf32>
    tpu.vector_store %arg7[%c112_59, %c24_60], %41 {strides = array<i32>} : memref<128x36xf32, #tpu.memory_space<vmem>>, vector<16x4xf32>,
    %c0_61 = arith.constant 0 : index
    %c2_62 = arith.constant 2 : index
    %c1_63 = arith.constant 1 : index
    %c0_64 = arith.constant 0 : index
    %43 = vector.load %arg2[%c0_61, %c2_62, %c1_63, %c0_64] : memref<1x8x18x4xf32, #tpu.memory_space<vmem>>, vector<1x6x16x4xf32>
    %44 = vector.shape_cast %43 : vector<1x6x16x4xf32> to vector<6x16x4xf32>
    %45 = vector.shape_cast %44 : vector<6x16x4xf32> to vector<96x4xf32>
    %c0_65 = arith.constant 0 : index
    %c28 = arith.constant 28 : index
    %46 = vector.load %arg7[%c0_65, %c28] : memref<128x36xf32, #tpu.memory_space<vmem>>, vector<96x4xf32>
    tpu.vector_store %arg7[%c0_65, %c28], %45 {strides = array<i32>} : memref<128x36xf32, #tpu.memory_space<vmem>>, vector<96x4xf32>,
    %c0_66 = arith.constant 0 : index
    %c0_67 = arith.constant 0 : index
    %c1_68 = arith.constant 1 : index
    %c0_69 = arith.constant 0 : index
    %47 = vector.load %arg3[%c0_66, %c0_67, %c1_68, %c0_69] : memref<1x1x18x4xf32, #tpu.memory_space<vmem>>, vector<1x1x16x4xf32>
    %48 = vector.shape_cast %47 : vector<1x1x16x4xf32> to vector<16x4xf32>
    %c96_70 = arith.constant 96 : index
    %c28_71 = arith.constant 28 : index
    %49 = vector.load %arg7[%c96_70, %c28_71] : memref<128x36xf32, #tpu.memory_space<vmem>>, vector<16x4xf32>
    tpu.vector_store %arg7[%c96_70, %c28_71], %48 {strides = array<i32>} : memref<128x36xf32, #tpu.memory_space<vmem>>, vector<16x4xf32>,
    %c0_72 = arith.constant 0 : index
    %c0_73 = arith.constant 0 : index
    %c1_74 = arith.constant 1 : index
    %c0_75 = arith.constant 0 : index
    %50 = vector.load %arg4[%c0_72, %c0_73, %c1_74, %c0_75] : memref<1x1x18x4xf32, #tpu.memory_space<vmem>>, vector<1x1x16x4xf32>
    %51 = vector.shape_cast %50 : vector<1x1x16x4xf32> to vector<16x4xf32>
    %c112_76 = arith.constant 112 : index
    %c28_77 = arith.constant 28 : index
    %52 = vector.load %arg7[%c112_76, %c28_77] : memref<128x36xf32, #tpu.memory_space<vmem>>, vector<16x4xf32>
    tpu.vector_store %arg7[%c112_76, %c28_77], %51 {strides = array<i32>} : memref<128x36xf32, #tpu.memory_space<vmem>>, vector<16x4xf32>,
    %c0_78 = arith.constant 0 : index
    %c2_79 = arith.constant 2 : index
    %c2_80 = arith.constant 2 : index
    %c0_81 = arith.constant 0 : index
    %53 = vector.load %arg2[%c0_78, %c2_79, %c2_80, %c0_81] : memref<1x8x18x4xf32, #tpu.memory_space<vmem>>, vector<1x6x16x4xf32>
    %54 = vector.shape_cast %53 : vector<1x6x16x4xf32> to vector<6x16x4xf32>
    %55 = vector.shape_cast %54 : vector<6x16x4xf32> to vector<96x4xf32>
    %c0_82 = arith.constant 0 : index
    %c32 = arith.constant 32 : index
    %56 = vector.load %arg7[%c0_82, %c32] : memref<128x36xf32, #tpu.memory_space<vmem>>, vector<96x4xf32>
    tpu.vector_store %arg7[%c0_82, %c32], %55 {strides = array<i32>} : memref<128x36xf32, #tpu.memory_space<vmem>>, vector<96x4xf32>,
    %c0_83 = arith.constant 0 : index
    %c0_84 = arith.constant 0 : index
    %c2_85 = arith.constant 2 : index
    %c0_86 = arith.constant 0 : index
    %57 = vector.load %arg3[%c0_83, %c0_84, %c2_85, %c0_86] : memref<1x1x18x4xf32, #tpu.memory_space<vmem>>, vector<1x1x16x4xf32>
    %58 = vector.shape_cast %57 : vector<1x1x16x4xf32> to vector<16x4xf32>
    %c96_87 = arith.constant 96 : index
    %c32_88 = arith.constant 32 : index
    %59 = vector.load %arg7[%c96_87, %c32_88] : memref<128x36xf32, #tpu.memory_space<vmem>>, vector<16x4xf32>
    tpu.vector_store %arg7[%c96_87, %c32_88], %58 {strides = array<i32>} : memref<128x36xf32, #tpu.memory_space<vmem>>, vector<16x4xf32>,
    %c0_89 = arith.constant 0 : index
    %c0_90 = arith.constant 0 : index
    %c2_91 = arith.constant 2 : index
    %c0_92 = arith.constant 0 : index
    %60 = vector.load %arg4[%c0_89, %c0_90, %c2_91, %c0_92] : memref<1x1x18x4xf32, #tpu.memory_space<vmem>>, vector<1x1x16x4xf32>
    %61 = vector.shape_cast %60 : vector<1x1x16x4xf32> to vector<16x4xf32>
    %c112_93 = arith.constant 112 : index
    %c32_94 = arith.constant 32 : index
    %62 = vector.load %arg7[%c112_93, %c32_94] : memref<128x36xf32, #tpu.memory_space<vmem>>, vector<16x4xf32>
    tpu.vector_store %arg7[%c112_93, %c32_94], %61 {strides = array<i32>} : memref<128x36xf32, #tpu.memory_space<vmem>>, vector<16x4xf32>,
    %c0_95 = arith.constant 0 : index
    %c0_96 = arith.constant 0 : index
    %63 = vector.load %arg7[%c0_95, %c0_96] : memref<128x36xf32, #tpu.memory_space<vmem>>, vector<128x36xf32>
    %c0_97 = arith.constant 0 : index
    %c0_98 = arith.constant 0 : index
    %64 = vector.load %arg5[%c0_97, %c0_98] : memref<36x32xf32, #tpu.memory_space<vmem>>, vector<36x32xf32>
    %cst = arith.constant dense<0.000000e+00> : vector<128x32xf32>
    %65 = tpu.matmul %63, %64, %cst {dimension_numbers = #tpu.dot_dimension_numbers<[1], [0], [0], [1], [0, 0, 1, 1], [], []>} : vector<128x36xf32>, vector<36x32xf32>, vector<128x32xf32> -> vector<128x32xf32>
    %cst_99 = arith.constant dense<0.000000e+00> : vector<32xf32>
    %66 = vector.multi_reduction <add>, %65, %cst_99 [0] : vector<128x32xf32> to vector<32xf32>
    %67 = vector.shape_cast %66 : vector<32xf32> to vector<1x32xf32>
    %cst_100 = arith.constant 7.812500e-03 : f32
    %68 = vector.broadcast %cst_100 : f32 to vector<1x32xf32>
    %69 = arith.mulf %67, %68 : vector<1x32xf32>
    %70 = vector.broadcast %69 : vector<1x32xf32> to vector<128x32xf32>
    %71 = arith.subf %65, %70 : vector<128x32xf32>
    %c0_101 = arith.constant 0 : index
    %c0_102 = arith.constant 0 : index
    %c0_103 = arith.constant 0 : index
    %72 = vector.load %arg6[%c0_101, %c0_102, %c0_103] : memref<1x2x32xf32, #tpu.memory_space<vmem>>, vector<1x1x32xf32>
    %73 = vector.shape_cast %72 : vector<1x1x32xf32> to vector<1x32xf32>
    %74 = vector.shape_cast %67 : vector<1x32xf32> to vector<1x1x32xf32>
    tpu.vector_store %arg6[%c0_101, %c0_102, %c0_103], %74 {strides = array<i32>} : memref<1x2x32xf32, #tpu.memory_space<vmem>>, vector<1x1x32xf32>,
    %75 = arith.mulf %71, %71 : vector<128x32xf32>
    %cst_104 = arith.constant dense<0.000000e+00> : vector<32xf32>
    %76 = vector.multi_reduction <add>, %75, %cst_104 [0] : vector<128x32xf32> to vector<32xf32>
    %77 = vector.shape_cast %76 : vector<32xf32> to vector<1x32xf32>
    %c0_105 = arith.constant 0 : index
    %c1_106 = arith.constant 1 : index
    %c0_107 = arith.constant 0 : index
    %78 = vector.load %arg6[%c0_105, %c1_106, %c0_107] : memref<1x2x32xf32, #tpu.memory_space<vmem>>, vector<1x1x32xf32>
    %79 = vector.shape_cast %78 : vector<1x1x32xf32> to vector<1x32xf32>
    %80 = vector.shape_cast %77 : vector<1x32xf32> to vector<1x1x32xf32>
    tpu.vector_store %arg6[%c0_105, %c1_106, %c0_107], %80 {strides = array<i32>} : memref<1x2x32xf32, #tpu.memory_space<vmem>>, vector<1x1x32xf32>,
    return
  }
  func.func @transform_0(%arg0: i32, %arg1: i32) -> (i32, i32, i32, i32) {
    %c0_i32 = arith.constant 0 : i32
    %c0_i32_0 = arith.constant 0 : i32
    %c0_i32_1 = arith.constant 0 : i32
    return %arg0, %arg1, %c0_i32, %c0_i32_0 : i32, i32, i32, i32
  }
  func.func @transform_1(%arg0: i32, %arg1: i32) -> (i32, i32, i32, i32) {
    %c1_i32 = arith.constant 1 : i32
    %0 = arith.addi %arg1, %c1_i32 : i32
    %c8_i32 = arith.constant 8 : i32
    %1 = arith.muli %0, %c8_i32 : i32
    %c0_i32 = arith.constant 0 : i32
    %c0_i32_0 = arith.constant 0 : i32
    %c0_i32_1 = arith.constant 0 : i32
    return %arg0, %1, %c0_i32, %c0_i32_0 : i32, i32, i32, i32
  }
  func.func @transform_2(%arg0: i32, %arg1: i32) -> (i32, i32, i32, i32) {
    %c1_i32 = arith.constant 1 : i32
    %0 = arith.addi %arg1, %c1_i32 : i32
    %c8_i32 = arith.constant 8 : i32
    %1 = arith.muli %0, %c8_i32 : i32
    %c1_i32_0 = arith.constant 1 : i32
    %2 = arith.addi %1, %c1_i32_0 : i32
    %c0_i32 = arith.constant 0 : i32
    %c0_i32_1 = arith.constant 0 : i32
    %c0_i32_2 = arith.constant 0 : i32
    return %arg0, %2, %c0_i32, %c0_i32_1 : i32, i32, i32, i32
  }
  func.func @transform_3(%arg0: i32, %arg1: i32) -> (i32, i32) {
    %c0_i32 = arith.constant 0 : i32
    %c0_i32_0 = arith.constant 0 : i32
    %c0_i32_1 = arith.constant 0 : i32
    return %c0_i32, %c0_i32_0 : i32, i32
  }
  func.func @transform_4(%arg0: i32, %arg1: i32) -> (i32, i32, i32) {
    %c2_i32 = arith.constant 2 : i32
    %0 = arith.muli %arg0, %c2_i32 : i32
    %1 = arith.addi %0, %arg1 : i32
    %c0_i32 = arith.constant 0 : i32
    %c0_i32_0 = arith.constant 0 : i32
    %c0_i32_1 = arith.constant 0 : i32
    return %1, %c0_i32, %c0_i32_0 : i32, i32, i32
  }
}

module attributes {stable_mosaic.version = 11 : i64} {
  func.func @out_kernel(%arg0: i32, %arg1: i32, %arg2: memref<1x8x18x4xf32, #tpu.memory_space<vmem>>, %arg3: memref<1x1x18x4xf32, #tpu.memory_space<vmem>>, %arg4: memref<1x1x18x4xf32, #tpu.memory_space<vmem>>, %arg5: memref<36x32xf32, #tpu.memory_space<vmem>>, %arg6: memref<1x32xf32, #tpu.memory_space<vmem>>, %arg7: memref<1x32xf32, #tpu.memory_space<vmem>>, %arg8: memref<128x32xf32, #tpu.memory_space<vmem>>, %arg9: memref<128x36xf32, #tpu.memory_space<vmem>>) attributes {dimension_semantics = [#tpu.dimension_semantics<parallel>, #tpu.dimension_semantics<parallel>], iteration_bounds = array<i64: 2, 2>, scalar_prefetch = 0 : i64, scratch_operands = 1 : i64, tpu.core_type = #tpu.core_type<tc>, window_params = [{transform_indices = @transform_0, window_bounds = array<i64: 1, 8, 18, 4>}, {transform_indices = @transform_1, window_bounds = array<i64: 1, 1, 18, 4>}, {transform_indices = @transform_2, window_bounds = array<i64: 1, 1, 18, 4>}, {pipeline_mode = #tpu.pipeline_mode<synchronous>, transform_indices = @transform_3, window_bounds = array<i64: 36, 32>}, {pipeline_mode = #tpu.pipeline_mode<synchronous>, transform_indices = @transform_4, window_bounds = array<i64: 1, 32>}, {pipeline_mode = #tpu.pipeline_mode<synchronous>, transform_indices = @transform_5, window_bounds = array<i64: 1, 32>}, {transform_indices = @transform_6, window_bounds = array<i64: 128, 32>}]} {
    %c0 = arith.constant 0 : index
    %c0_0 = arith.constant 0 : index
    %c0_1 = arith.constant 0 : index
    %c0_2 = arith.constant 0 : index
    %0 = vector.load %arg2[%c0, %c0_0, %c0_1, %c0_2] : memref<1x8x18x4xf32, #tpu.memory_space<vmem>>, vector<1x8x16x4xf32>
    %1 = vector.shape_cast %0 : vector<1x8x16x4xf32> to vector<8x16x4xf32>
    %2 = vector.shape_cast %1 : vector<8x16x4xf32> to vector<128x4xf32>
    %c0_3 = arith.constant 0 : index
    %c0_4 = arith.constant 0 : index
    %3 = vector.load %arg9[%c0_3, %c0_4] : memref<128x36xf32, #tpu.memory_space<vmem>>, vector<128x4xf32>
    tpu.vector_store %arg9[%c0_3, %c0_4], %2 {strides = array<i32>} : memref<128x36xf32, #tpu.memory_space<vmem>>, vector<128x4xf32>,
    %c0_5 = arith.constant 0 : index
    %c0_6 = arith.constant 0 : index
    %c1 = arith.constant 1 : index
    %c0_7 = arith.constant 0 : index
    %4 = vector.load %arg2[%c0_5, %c0_6, %c1, %c0_7] : memref<1x8x18x4xf32, #tpu.memory_space<vmem>>, vector<1x8x16x4xf32>
    %5 = vector.shape_cast %4 : vector<1x8x16x4xf32> to vector<8x16x4xf32>
    %6 = vector.shape_cast %5 : vector<8x16x4xf32> to vector<128x4xf32>
    %c0_8 = arith.constant 0 : index
    %c4 = arith.constant 4 : index
    %7 = vector.load %arg9[%c0_8, %c4] : memref<128x36xf32, #tpu.memory_space<vmem>>, vector<128x4xf32>
    tpu.vector_store %arg9[%c0_8, %c4], %6 {strides = array<i32>} : memref<128x36xf32, #tpu.memory_space<vmem>>, vector<128x4xf32>,
    %c0_9 = arith.constant 0 : index
    %c0_10 = arith.constant 0 : index
    %c2 = arith.constant 2 : index
    %c0_11 = arith.constant 0 : index
    %8 = vector.load %arg2[%c0_9, %c0_10, %c2, %c0_11] : memref<1x8x18x4xf32, #tpu.memory_space<vmem>>, vector<1x8x16x4xf32>
    %9 = vector.shape_cast %8 : vector<1x8x16x4xf32> to vector<8x16x4xf32>
    %10 = vector.shape_cast %9 : vector<8x16x4xf32> to vector<128x4xf32>
    %c0_12 = arith.constant 0 : index
    %c8 = arith.constant 8 : index
    %11 = vector.load %arg9[%c0_12, %c8] : memref<128x36xf32, #tpu.memory_space<vmem>>, vector<128x4xf32>
    tpu.vector_store %arg9[%c0_12, %c8], %10 {strides = array<i32>} : memref<128x36xf32, #tpu.memory_space<vmem>>, vector<128x4xf32>,
    %c0_13 = arith.constant 0 : index
    %c1_14 = arith.constant 1 : index
    %c0_15 = arith.constant 0 : index
    %c0_16 = arith.constant 0 : index
    %12 = vector.load %arg2[%c0_13, %c1_14, %c0_15, %c0_16] : memref<1x8x18x4xf32, #tpu.memory_space<vmem>>, vector<1x7x16x4xf32>
    %13 = vector.shape_cast %12 : vector<1x7x16x4xf32> to vector<7x16x4xf32>
    %14 = vector.shape_cast %13 : vector<7x16x4xf32> to vector<112x4xf32>
    %c0_17 = arith.constant 0 : index
    %c12 = arith.constant 12 : index
    %15 = vector.load %arg9[%c0_17, %c12] : memref<128x36xf32, #tpu.memory_space<vmem>>, vector<112x4xf32>
    tpu.vector_store %arg9[%c0_17, %c12], %14 {strides = array<i32>} : memref<128x36xf32, #tpu.memory_space<vmem>>, vector<112x4xf32>,
    %c0_18 = arith.constant 0 : index
    %c0_19 = arith.constant 0 : index
    %c0_20 = arith.constant 0 : index
    %c0_21 = arith.constant 0 : index
    %16 = vector.load %arg3[%c0_18, %c0_19, %c0_20, %c0_21] : memref<1x1x18x4xf32, #tpu.memory_space<vmem>>, vector<1x1x16x4xf32>
    %17 = vector.shape_cast %16 : vector<1x1x16x4xf32> to vector<16x4xf32>
    %c112 = arith.constant 112 : index
    %c12_22 = arith.constant 12 : index
    %18 = vector.load %arg9[%c112, %c12_22] : memref<128x36xf32, #tpu.memory_space<vmem>>, vector<16x4xf32>
    tpu.vector_store %arg9[%c112, %c12_22], %17 {strides = array<i32>} : memref<128x36xf32, #tpu.memory_space<vmem>>, vector<16x4xf32>,
    %c0_23 = arith.constant 0 : index
    %c1_24 = arith.constant 1 : index
    %c1_25 = arith.constant 1 : index
    %c0_26 = arith.constant 0 : index
    %19 = vector.load %arg2[%c0_23, %c1_24, %c1_25, %c0_26] : memref<1x8x18x4xf32, #tpu.memory_space<vmem>>, vector<1x7x16x4xf32>
    %20 = vector.shape_cast %19 : vector<1x7x16x4xf32> to vector<7x16x4xf32>
    %21 = vector.shape_cast %20 : vector<7x16x4xf32> to vector<112x4xf32>
    %c0_27 = arith.constant 0 : index
    %c16 = arith.constant 16 : index
    %22 = vector.load %arg9[%c0_27, %c16] : memref<128x36xf32, #tpu.memory_space<vmem>>, vector<112x4xf32>
    tpu.vector_store %arg9[%c0_27, %c16], %21 {strides = array<i32>} : memref<128x36xf32, #tpu.memory_space<vmem>>, vector<112x4xf32>,
    %c0_28 = arith.constant 0 : index
    %c0_29 = arith.constant 0 : index
    %c1_30 = arith.constant 1 : index
    %c0_31 = arith.constant 0 : index
    %23 = vector.load %arg3[%c0_28, %c0_29, %c1_30, %c0_31] : memref<1x1x18x4xf32, #tpu.memory_space<vmem>>, vector<1x1x16x4xf32>
    %24 = vector.shape_cast %23 : vector<1x1x16x4xf32> to vector<16x4xf32>
    %c112_32 = arith.constant 112 : index
    %c16_33 = arith.constant 16 : index
    %25 = vector.load %arg9[%c112_32, %c16_33] : memref<128x36xf32, #tpu.memory_space<vmem>>, vector<16x4xf32>
    tpu.vector_store %arg9[%c112_32, %c16_33], %24 {strides = array<i32>} : memref<128x36xf32, #tpu.memory_space<vmem>>, vector<16x4xf32>,
    %c0_34 = arith.constant 0 : index
    %c1_35 = arith.constant 1 : index
    %c2_36 = arith.constant 2 : index
    %c0_37 = arith.constant 0 : index
    %26 = vector.load %arg2[%c0_34, %c1_35, %c2_36, %c0_37] : memref<1x8x18x4xf32, #tpu.memory_space<vmem>>, vector<1x7x16x4xf32>
    %27 = vector.shape_cast %26 : vector<1x7x16x4xf32> to vector<7x16x4xf32>
    %28 = vector.shape_cast %27 : vector<7x16x4xf32> to vector<112x4xf32>
    %c0_38 = arith.constant 0 : index
    %c20 = arith.constant 20 : index
    %29 = vector.load %arg9[%c0_38, %c20] : memref<128x36xf32, #tpu.memory_space<vmem>>, vector<112x4xf32>
    tpu.vector_store %arg9[%c0_38, %c20], %28 {strides = array<i32>} : memref<128x36xf32, #tpu.memory_space<vmem>>, vector<112x4xf32>,
    %c0_39 = arith.constant 0 : index
    %c0_40 = arith.constant 0 : index
    %c2_41 = arith.constant 2 : index
    %c0_42 = arith.constant 0 : index
    %30 = vector.load %arg3[%c0_39, %c0_40, %c2_41, %c0_42] : memref<1x1x18x4xf32, #tpu.memory_space<vmem>>, vector<1x1x16x4xf32>
    %31 = vector.shape_cast %30 : vector<1x1x16x4xf32> to vector<16x4xf32>
    %c112_43 = arith.constant 112 : index
    %c20_44 = arith.constant 20 : index
    %32 = vector.load %arg9[%c112_43, %c20_44] : memref<128x36xf32, #tpu.memory_space<vmem>>, vector<16x4xf32>
    tpu.vector_store %arg9[%c112_43, %c20_44], %31 {strides = array<i32>} : memref<128x36xf32, #tpu.memory_space<vmem>>, vector<16x4xf32>,
    %c0_45 = arith.constant 0 : index
    %c2_46 = arith.constant 2 : index
    %c0_47 = arith.constant 0 : index
    %c0_48 = arith.constant 0 : index
    %33 = vector.load %arg2[%c0_45, %c2_46, %c0_47, %c0_48] : memref<1x8x18x4xf32, #tpu.memory_space<vmem>>, vector<1x6x16x4xf32>
    %34 = vector.shape_cast %33 : vector<1x6x16x4xf32> to vector<6x16x4xf32>
    %35 = vector.shape_cast %34 : vector<6x16x4xf32> to vector<96x4xf32>
    %c0_49 = arith.constant 0 : index
    %c24 = arith.constant 24 : index
    %36 = vector.load %arg9[%c0_49, %c24] : memref<128x36xf32, #tpu.memory_space<vmem>>, vector<96x4xf32>
    tpu.vector_store %arg9[%c0_49, %c24], %35 {strides = array<i32>} : memref<128x36xf32, #tpu.memory_space<vmem>>, vector<96x4xf32>,
    %c0_50 = arith.constant 0 : index
    %c0_51 = arith.constant 0 : index
    %c0_52 = arith.constant 0 : index
    %c0_53 = arith.constant 0 : index
    %37 = vector.load %arg3[%c0_50, %c0_51, %c0_52, %c0_53] : memref<1x1x18x4xf32, #tpu.memory_space<vmem>>, vector<1x1x16x4xf32>
    %38 = vector.shape_cast %37 : vector<1x1x16x4xf32> to vector<16x4xf32>
    %c96 = arith.constant 96 : index
    %c24_54 = arith.constant 24 : index
    %39 = vector.load %arg9[%c96, %c24_54] : memref<128x36xf32, #tpu.memory_space<vmem>>, vector<16x4xf32>
    tpu.vector_store %arg9[%c96, %c24_54], %38 {strides = array<i32>} : memref<128x36xf32, #tpu.memory_space<vmem>>, vector<16x4xf32>,
    %c0_55 = arith.constant 0 : index
    %c0_56 = arith.constant 0 : index
    %c0_57 = arith.constant 0 : index
    %c0_58 = arith.constant 0 : index
    %40 = vector.load %arg4[%c0_55, %c0_56, %c0_57, %c0_58] : memref<1x1x18x4xf32, #tpu.memory_space<vmem>>, vector<1x1x16x4xf32>
    %41 = vector.shape_cast %40 : vector<1x1x16x4xf32> to vector<16x4xf32>
    %c112_59 = arith.constant 112 : index
    %c24_60 = arith.constant 24 : index
    %42 = vector.load %arg9[%c112_59, %c24_60] : memref<128x36xf32, #tpu.memory_space<vmem>>, vector<16x4xf32>
    tpu.vector_store %arg9[%c112_59, %c24_60], %41 {strides = array<i32>} : memref<128x36xf32, #tpu.memory_space<vmem>>, vector<16x4xf32>,
    %c0_61 = arith.constant 0 : index
    %c2_62 = arith.constant 2 : index
    %c1_63 = arith.constant 1 : index
    %c0_64 = arith.constant 0 : index
    %43 = vector.load %arg2[%c0_61, %c2_62, %c1_63, %c0_64] : memref<1x8x18x4xf32, #tpu.memory_space<vmem>>, vector<1x6x16x4xf32>
    %44 = vector.shape_cast %43 : vector<1x6x16x4xf32> to vector<6x16x4xf32>
    %45 = vector.shape_cast %44 : vector<6x16x4xf32> to vector<96x4xf32>
    %c0_65 = arith.constant 0 : index
    %c28 = arith.constant 28 : index
    %46 = vector.load %arg9[%c0_65, %c28] : memref<128x36xf32, #tpu.memory_space<vmem>>, vector<96x4xf32>
    tpu.vector_store %arg9[%c0_65, %c28], %45 {strides = array<i32>} : memref<128x36xf32, #tpu.memory_space<vmem>>, vector<96x4xf32>,
    %c0_66 = arith.constant 0 : index
    %c0_67 = arith.constant 0 : index
    %c1_68 = arith.constant 1 : index
    %c0_69 = arith.constant 0 : index
    %47 = vector.load %arg3[%c0_66, %c0_67, %c1_68, %c0_69] : memref<1x1x18x4xf32, #tpu.memory_space<vmem>>, vector<1x1x16x4xf32>
    %48 = vector.shape_cast %47 : vector<1x1x16x4xf32> to vector<16x4xf32>
    %c96_70 = arith.constant 96 : index
    %c28_71 = arith.constant 28 : index
    %49 = vector.load %arg9[%c96_70, %c28_71] : memref<128x36xf32, #tpu.memory_space<vmem>>, vector<16x4xf32>
    tpu.vector_store %arg9[%c96_70, %c28_71], %48 {strides = array<i32>} : memref<128x36xf32, #tpu.memory_space<vmem>>, vector<16x4xf32>,
    %c0_72 = arith.constant 0 : index
    %c0_73 = arith.constant 0 : index
    %c1_74 = arith.constant 1 : index
    %c0_75 = arith.constant 0 : index
    %50 = vector.load %arg4[%c0_72, %c0_73, %c1_74, %c0_75] : memref<1x1x18x4xf32, #tpu.memory_space<vmem>>, vector<1x1x16x4xf32>
    %51 = vector.shape_cast %50 : vector<1x1x16x4xf32> to vector<16x4xf32>
    %c112_76 = arith.constant 112 : index
    %c28_77 = arith.constant 28 : index
    %52 = vector.load %arg9[%c112_76, %c28_77] : memref<128x36xf32, #tpu.memory_space<vmem>>, vector<16x4xf32>
    tpu.vector_store %arg9[%c112_76, %c28_77], %51 {strides = array<i32>} : memref<128x36xf32, #tpu.memory_space<vmem>>, vector<16x4xf32>,
    %c0_78 = arith.constant 0 : index
    %c2_79 = arith.constant 2 : index
    %c2_80 = arith.constant 2 : index
    %c0_81 = arith.constant 0 : index
    %53 = vector.load %arg2[%c0_78, %c2_79, %c2_80, %c0_81] : memref<1x8x18x4xf32, #tpu.memory_space<vmem>>, vector<1x6x16x4xf32>
    %54 = vector.shape_cast %53 : vector<1x6x16x4xf32> to vector<6x16x4xf32>
    %55 = vector.shape_cast %54 : vector<6x16x4xf32> to vector<96x4xf32>
    %c0_82 = arith.constant 0 : index
    %c32 = arith.constant 32 : index
    %56 = vector.load %arg9[%c0_82, %c32] : memref<128x36xf32, #tpu.memory_space<vmem>>, vector<96x4xf32>
    tpu.vector_store %arg9[%c0_82, %c32], %55 {strides = array<i32>} : memref<128x36xf32, #tpu.memory_space<vmem>>, vector<96x4xf32>,
    %c0_83 = arith.constant 0 : index
    %c0_84 = arith.constant 0 : index
    %c2_85 = arith.constant 2 : index
    %c0_86 = arith.constant 0 : index
    %57 = vector.load %arg3[%c0_83, %c0_84, %c2_85, %c0_86] : memref<1x1x18x4xf32, #tpu.memory_space<vmem>>, vector<1x1x16x4xf32>
    %58 = vector.shape_cast %57 : vector<1x1x16x4xf32> to vector<16x4xf32>
    %c96_87 = arith.constant 96 : index
    %c32_88 = arith.constant 32 : index
    %59 = vector.load %arg9[%c96_87, %c32_88] : memref<128x36xf32, #tpu.memory_space<vmem>>, vector<16x4xf32>
    tpu.vector_store %arg9[%c96_87, %c32_88], %58 {strides = array<i32>} : memref<128x36xf32, #tpu.memory_space<vmem>>, vector<16x4xf32>,
    %c0_89 = arith.constant 0 : index
    %c0_90 = arith.constant 0 : index
    %c2_91 = arith.constant 2 : index
    %c0_92 = arith.constant 0 : index
    %60 = vector.load %arg4[%c0_89, %c0_90, %c2_91, %c0_92] : memref<1x1x18x4xf32, #tpu.memory_space<vmem>>, vector<1x1x16x4xf32>
    %61 = vector.shape_cast %60 : vector<1x1x16x4xf32> to vector<16x4xf32>
    %c112_93 = arith.constant 112 : index
    %c32_94 = arith.constant 32 : index
    %62 = vector.load %arg9[%c112_93, %c32_94] : memref<128x36xf32, #tpu.memory_space<vmem>>, vector<16x4xf32>
    tpu.vector_store %arg9[%c112_93, %c32_94], %61 {strides = array<i32>} : memref<128x36xf32, #tpu.memory_space<vmem>>, vector<16x4xf32>,
    %c0_95 = arith.constant 0 : index
    %c0_96 = arith.constant 0 : index
    %63 = vector.load %arg9[%c0_95, %c0_96] : memref<128x36xf32, #tpu.memory_space<vmem>>, vector<128x36xf32>
    %c0_97 = arith.constant 0 : index
    %c0_98 = arith.constant 0 : index
    %64 = vector.load %arg5[%c0_97, %c0_98] : memref<36x32xf32, #tpu.memory_space<vmem>>, vector<36x32xf32>
    %cst = arith.constant dense<0.000000e+00> : vector<128x32xf32>
    %65 = tpu.matmul %63, %64, %cst {dimension_numbers = #tpu.dot_dimension_numbers<[1], [0], [0], [1], [0, 0, 1, 1], [], []>} : vector<128x36xf32>, vector<36x32xf32>, vector<128x32xf32> -> vector<128x32xf32>
    %c0_99 = arith.constant 0 : index
    %c0_100 = arith.constant 0 : index
    %66 = vector.load %arg6[%c0_99, %c0_100] : memref<1x32xf32, #tpu.memory_space<vmem>>, vector<1x32xf32>
    %67 = vector.broadcast %66 : vector<1x32xf32> to vector<128x32xf32>
    %68 = arith.mulf %65, %67 : vector<128x32xf32>
    %c0_101 = arith.constant 0 : index
    %c0_102 = arith.constant 0 : index
    %69 = vector.load %arg7[%c0_101, %c0_102] : memref<1x32xf32, #tpu.memory_space<vmem>>, vector<1x32xf32>
    %70 = vector.broadcast %69 : vector<1x32xf32> to vector<128x32xf32>
    %71 = arith.addf %68, %70 : vector<128x32xf32>
    %cst_103 = arith.constant 0.000000e+00 : f32
    %72 = vector.broadcast %cst_103 : f32 to vector<128x32xf32>
    %73 = arith.maximumf %71, %72 : vector<128x32xf32>
    %c0_104 = arith.constant 0 : index
    %c0_105 = arith.constant 0 : index
    %74 = vector.load %arg8[%c0_104, %c0_105] : memref<128x32xf32, #tpu.memory_space<vmem>>, vector<128x32xf32>
    tpu.vector_store %arg8[%c0_104, %c0_105], %73 {strides = array<i32>} : memref<128x32xf32, #tpu.memory_space<vmem>>, vector<128x32xf32>,
    return
  }
  func.func @transform_0(%arg0: i32, %arg1: i32) -> (i32, i32, i32, i32) {
    %c0_i32 = arith.constant 0 : i32
    %c0_i32_0 = arith.constant 0 : i32
    %c0_i32_1 = arith.constant 0 : i32
    return %arg0, %arg1, %c0_i32, %c0_i32_0 : i32, i32, i32, i32
  }
  func.func @transform_1(%arg0: i32, %arg1: i32) -> (i32, i32, i32, i32) {
    %c1_i32 = arith.constant 1 : i32
    %0 = arith.addi %arg1, %c1_i32 : i32
    %c8_i32 = arith.constant 8 : i32
    %1 = arith.muli %0, %c8_i32 : i32
    %c0_i32 = arith.constant 0 : i32
    %c0_i32_0 = arith.constant 0 : i32
    %c0_i32_1 = arith.constant 0 : i32
    return %arg0, %1, %c0_i32, %c0_i32_0 : i32, i32, i32, i32
  }
  func.func @transform_2(%arg0: i32, %arg1: i32) -> (i32, i32, i32, i32) {
    %c1_i32 = arith.constant 1 : i32
    %0 = arith.addi %arg1, %c1_i32 : i32
    %c8_i32 = arith.constant 8 : i32
    %1 = arith.muli %0, %c8_i32 : i32
    %c1_i32_0 = arith.constant 1 : i32
    %2 = arith.addi %1, %c1_i32_0 : i32
    %c0_i32 = arith.constant 0 : i32
    %c0_i32_1 = arith.constant 0 : i32
    %c0_i32_2 = arith.constant 0 : i32
    return %arg0, %2, %c0_i32, %c0_i32_1 : i32, i32, i32, i32
  }
  func.func @transform_3(%arg0: i32, %arg1: i32) -> (i32, i32) {
    %c0_i32 = arith.constant 0 : i32
    %c0_i32_0 = arith.constant 0 : i32
    %c0_i32_1 = arith.constant 0 : i32
    return %c0_i32, %c0_i32_0 : i32, i32
  }
  func.func @transform_4(%arg0: i32, %arg1: i32) -> (i32, i32) {
    %c0_i32 = arith.constant 0 : i32
    %c0_i32_0 = arith.constant 0 : i32
    %c0_i32_1 = arith.constant 0 : i32
    return %c0_i32, %c0_i32_0 : i32, i32
  }
  func.func @transform_5(%arg0: i32, %arg1: i32) -> (i32, i32) {
    %c0_i32 = arith.constant 0 : i32
    %c0_i32_0 = arith.constant 0 : i32
    %c0_i32_1 = arith.constant 0 : i32
    return %c0_i32, %c0_i32_0 : i32, i32
  }
  func.func @transform_6(%arg0: i32, %arg1: i32) -> (i32, i32) {
    %c2_i32 = arith.constant 2 : i32
    %0 = arith.muli %arg0, %c2_i32 : i32
    %1 = arith.addi %0, %arg1 : i32
    %c0_i32 = arith.constant 0 : i32
    %c0_i32_0 = arith.constant 0 : i32
    return %1, %c0_i32 : i32, i32
  }
}

</mosaic_0001>

<llo_original>
// kernel: tile.18
$region0: #{tile.18}
  #allocation0 [shape = 's32[1]{0}', space=sflag, size = 0x4, scoped, tag = 'scoped memory for tile.18']
  %s0 = inlined_call_operand.vmem [shape: f32[8], index: 0, kind: input, shape index: {}]
  %s1 = inlined_call_operand.vmem [shape: f32[4,8], index: 1, kind: output, shape index: {}]
  // Predicated region
  $region2: #{tile.18} parent=0 // pred_check
    _
  $region3: #{tile.18} parent=0 // pred_check_branch
    %3 = sbr.rel (0) target = $region5
  $region4: #{tile.18} parent=0 // pred_region
    _
  $region5: #{tile.18} parent=0 // pred_fallthru
    _
  %v4 = vld [vmem:[%s0] ss:$0 sm:$0xff]
  %5 = vst [vmem:[%s1] sm:$0xf] %v4

// kernel: tile.29
$region0: #{tile.29}
  %s0 = inlined_call_operand.vmem [shape: f32[4,8], index: 0, kind: input, shape index: {}]
  %s1 = inlined_call_operand.vmem [shape: f32[1,32], index: 1, kind: output, shape index: {}]
  $region1: #{tile.29} parent=0
    #allocation0 [shape = 'u8[4096]{0}', space=vmem, size = 0x1000, scoped, tag = 'scoped mem for output reshape']
    #allocation1 [shape = 'u8[4096]{0}', space=vmem, size = 0x1000, scoped, tag = 'scoped mem for input reshape']
    %s3 = sshll.u32 1, 4
    %s4 = ssub.s32 %s3, 1
    %v5 = vld [vmem:[%s0] sm:%s4]
    %6 = vst [vmem:[#allocation1] sm:%s4] %v5
    %v7 = vld [vmem:[#allocation1] sm:$0x1]
    %vm8 = vcmask 64512
    %9 = vst.msk [vmem:[#allocation0] sm:$0x1] %vm8, %v7
    %s10 = scalar_lea.vmem [#allocation1], 3
    %v11 = vld [vmem:[%s10] sm:$0x1]
    %12 = vrot.lane.b32.xlu0 %v11, 24
    %v13 = vpop.permute.xlu0 %12
    %vm14 = vcmask 261312
    %15 = vst.msk [vmem:[#allocation0] sm:$0x1] %vm14, %v13
    %s16 = scalar_lea.vmem [#allocation1], 2
    %v17 = vld [vmem:[%s16] sm:$0x1]
    %18 = vrot.lane.b32.xlu0 %v17, 16
    %v19 = vpop.permute.xlu0 %18
    %vm20 = vcmask 195712
    %21 = vst.msk [vmem:[#allocation0] sm:$0x1] %vm20, %v19
    %s22 = scalar_lea.vmem [#allocation1], 1
    %v23 = vld [vmem:[%s22] sm:$0x1]
    %24 = vrot.lane.b32.xlu0 %v23, 8
    %v25 = vpop.permute.xlu0 %24
    %vm26 = vcmask 130112
    %27 = vst.msk [vmem:[#allocation0] sm:$0x1] %vm26, %v25
    %s29 = sshll.u32 1, 1
    %s30 = ssub.s32 %s29, 1
    %v32 = vld [vmem:[#allocation0] sm:%s30]
    %s33 = sshll.u32 1, 1
    %s34 = ssub.s32 %s33, 1
    %35 = vst [vmem:[%s1] sm:%s34] %v32

// kernel: conv_up_sample.2
$region0: #{conv_up_sample.2}
  #allocation0 [shape = 'u32[]', space=smem, size = 0x4, offset = 0x4, fixed_abs, tag = 'smem constant byte address 0x4 - core index']
  #allocation1 [shape = 'u32[144,128]{1,0:T(1,128)}', space=vmem, size = 0x12000, scoped, tag = 'internal scratch']
  #allocation2 [shape = 'f32[128,36]{1,0:T(8,128)}', space=vmem, size = 0x10000, scoped, tag = 'scratch operand']
  %s0 = inlined_call_operand.vmem [shape: f32[2,18,18,4], index: 0, kind: input, shape index: {}, may-alias: {0,1,2}]
  %s1 = inlined_call_operand.vmem [shape: f32[2,18,18,4], index: 1, kind: input, shape index: {}, may-alias: {0,1,2}]
  %s2 = inlined_call_operand.vmem [shape: f32[2,18,18,4], index: 2, kind: input, shape index: {}, may-alias: {0,1,2}]
  %s3 = inlined_call_operand.vmem [shape: f32[36,32], index: 3, kind: input, shape index: {}]
  %s4 = inlined_call_operand.vmem [shape: f32[4,2,32], index: 4, kind: output, shape index: {}]
  %s5 = sld [smem:[#allocation0]]
  $region49: #{conv_up_sample.2} parent=0
    _
  %s7 = ssub.s32 1, %s5
  %s8 = scalar_select 0, %s7, %s5
  loop: start=0, step=1, limit=6
  $region2: #{conv_up_sample.2} parent=0 // loop_pre_header
    _
  $region3: #{conv_up_sample.2} parent=0 // loop_header
    %s10 = sphi 0, %s14
    %p11 = scmp.ge.s32.totalorder %s10, 6
    %s17 = sphi 0, %s29
    %s18 = sphi 0, %s25
    %s19 = sphi 0, %s17
    %s20 = sphi 0, %s18
    %s21 = sphi 0, %s19
    %s22 = sphi 0, %s20
    %s34 = sphi 0, %s36
    %s37 = sphi 0, %s34
    %s38 = sphi 0, %s37
    %s54 = sphi 0, %s38
    %s66 = sphi 0, %s68
    %s69 = sphi 0, %s66
    %s70 = sphi 0, %s69
    %s86 = sphi 0, %s70
    %s100 = sphi 0, %s102
    %s103 = sphi 0, %s100
    %s104 = sphi 0, %s103
    %s120 = sphi 0, %s104
    %s124 = sphi 0, %s124
    %s126 = sphi 0, %s124
    %s127 = sphi 0, %s126
    %s141 = sphi 0, %s127
    %s151 = sphi 0, %s153
    %s154 = sphi 0, %s151
    %s155 = sphi 0, %s154
    %s171 = sphi 0, %s155
  $region4: #{conv_up_sample.2} parent=0 // loop_header_branch
    %13 = sbr.rel (%p11) target = $region8
  $region5: #{conv_up_sample.2} parent=0 // loop_body
    %s15 = ssub.s32 %s10, 1
    %s16 = ssub.s32 %s10, 2
    %s23 = sadd.s32 1, %s18
    %p24 = scmp.ge.s32.totalorder %s23, 2
    %s25 = scalar_select %p24, 0, %s23
    %s26 = sadd.s32 1, %s17
    %s27 = scalar_select %p24, %s26, %s17
    %p28 = scmp.ge.s32.totalorder %s27, 2
    %s29 = scalar_select %p28, 0, %s27
    %s30 = ssub.s32 %s17, %s29
    %s31 = ssub.s32 %s18, %s25
    %s32 = sor.u32 %s30, %s31
    %p33 = scmp.eq.s32.totalorder %s32, 0
    %s35 = sadd.s32 %s34, 1
    %s36 = scalar_select %p33, %s34, %s35
    %p39 = pneg %p33
    %p40 = scmp.eq.s32.totalorder %s10, 3
    %p41 = por %p39, %p40
    %p42 = scmp.ne.s32.totalorder %s34, %s37
    %p43 = scmp.eq.s32.totalorder %s10, 0
    %p44 = por %p42, %p43
    %p45 = scmp.ne.s32.totalorder %s34, %s37
    %p46 = scmp.eq.s32.totalorder %s15, 3
    %p47 = por %p45, %p46
    %p48 = scmp.ne.s32.totalorder %s37, %s38
    %p49 = scmp.eq.s32.totalorder %s15, 0
    %p50 = por %p48, %p49
    %p51 = scmp.ne.s32.totalorder %s37, %s38
    %p52 = scmp.eq.s32.totalorder %s16, 3
    %p53 = por %p51, %p52
    %p55 = scmp.ne.s32.totalorder %s38, %s54
    %p56 = scmp.eq.s32.totalorder %s16, 0
    %p57 = por %p55, %p56
    %s58 = sadd.s32 %s18, 1
    %s59 = smul.u32 %s58, 8
    %s60 = sadd.s32 %s25, 1
    %s61 = smul.u32 %s60, 8
    %s62 = ssub.s32 %s17, %s29
    %s63 = ssub.s32 %s59, %s61
    %s64 = sor.u32 %s62, %s63
    %p65 = scmp.eq.s32.totalorder %s64, 0
    %s67 = sadd.s32 %s66, 1
    %s68 = scalar_select %p65, %s66, %s67
    %p71 = pneg %p65
    %p72 = scmp.eq.s32.totalorder %s10, 3
    %p73 = por %p71, %p72
    %p74 = scmp.ne.s32.totalorder %s66, %s69
    %p75 = scmp.eq.s32.totalorder %s10, 0
    %p76 = por %p74, %p75
    %p77 = scmp.ne.s32.totalorder %s66, %s69
    %p78 = scmp.eq.s32.totalorder %s15, 3
    %p79 = por %p77, %p78
    %p80 = scmp.ne.s32.totalorder %s69, %s70
    %p81 = scmp.eq.s32.totalorder %s15, 0
    %p82 = por %p80, %p81
    %p83 = scmp.ne.s32.totalorder %s69, %s70
    %p84 = scmp.eq.s32.totalorder %s16, 3
    %p85 = por %p83, %p84
    %p87 = scmp.ne.s32.totalorder %s70, %s86
    %p88 = scmp.eq.s32.totalorder %s16, 0
    %p89 = por %p87, %p88
    %s90 = sadd.s32 %s18, 1
    %s91 = smul.u32 %s90, 8
    %s92 = sadd.s32 %s91, 1
    %s93 = sadd.s32 %s25, 1
    %s94 = smul.u32 %s93, 8
    %s95 = sadd.s32 %s94, 1
    %s96 = ssub.s32 %s17, %s29
    %s97 = ssub.s32 %s92, %s95
    %s98 = sor.u32 %s96, %s97
    %p99 = scmp.eq.s32.totalorder %s98, 0
    %s101 = sadd.s32 %s100, 1
    %s102 = scalar_select %p99, %s100, %s101
    %p105 = pneg %p99
    %p106 = scmp.eq.s32.totalorder %s10, 3
    %p107 = por %p105, %p106
    %p108 = scmp.ne.s32.totalorder %s100, %s103
    %p109 = scmp.eq.s32.totalorder %s10, 0
    %p110 = por %p108, %p109
    %p111 = scmp.ne.s32.totalorder %s100, %s103
    %p112 = scmp.eq.s32.totalorder %s15, 3
    %p113 = por %p111, %p112
    %p114 = scmp.ne.s32.totalorder %s103, %s104
    %p115 = scmp.eq.s32.totalorder %s15, 0
    %p116 = por %p114, %p115
    %p117 = scmp.ne.s32.totalorder %s103, %s104
    %p118 = scmp.eq.s32.totalorder %s16, 3
    %p119 = por %p117, %p118
    %p121 = scmp.ne.s32.totalorder %s104, %s120
    %p122 = scmp.eq.s32.totalorder %s16, 0
    %p123 = por %p121, %p122
    %s125 = sadd.s32 %s124, 1
    %p128 = scmp.eq.s32.totalorder %s10, 3
    %p129 = scmp.ne.s32.totalorder %s124, %s126
    %p130 = scmp.eq.s32.totalorder %s10, 0
    %p131 = por %p129, %p130
    %p132 = scmp.ne.s32.totalorder %s124, %s126
    %p133 = scmp.eq.s32.totalorder %s15, 3
    %p134 = por %p132, %p133
    %p135 = scmp.ne.s32.totalorder %s126, %s127
    %p136 = scmp.eq.s32.totalorder %s15, 0
    %p137 = por %p135, %p136
    %p138 = scmp.ne.s32.totalorder %s126, %s127
    %p139 = scmp.eq.s32.totalorder %s16, 3
    %p140 = por %p138, %p139
    %p142 = scmp.ne.s32.totalorder %s127, %s141
    %p143 = scmp.eq.s32.totalorder %s16, 0
    %p144 = por %p142, %p143
    %s145 = smul.u32 %s17, 2
    %s146 = sadd.s32 %s145, %s18
    %s147 = smul.u32 %s29, 2
    %s148 = sadd.s32 %s147, %s25
    %s149 = ssub.s32 %s146, %s148
    %p150 = scmp.eq.s32.totalorder %s149, 0
    %s152 = sadd.s32 %s151, 1
    %s153 = scalar_select %p150, %s151, %s152
    %p156 = pneg %p150
    %p157 = scmp.eq.s32.totalorder %s10, 3
    %p158 = por %p156, %p157
    %p159 = scmp.ne.s32.totalorder %s151, %s154
    %p160 = scmp.eq.s32.totalorder %s10, 0
    %p161 = por %p159, %p160
    %p162 = scmp.ne.s32.totalorder %s151, %s154
    %p163 = scmp.eq.s32.totalorder %s15, 3
    %p164 = por %p162, %p163
    %p165 = scmp.ne.s32.totalorder %s154, %s155
    %p166 = scmp.eq.s32.totalorder %s15, 0
    %p167 = por %p165, %p166
    %p168 = scmp.ne.s32.totalorder %s154, %s155
    %p169 = scmp.eq.s32.totalorder %s16, 3
    %p170 = por %p168, %p169
    %p172 = scmp.ne.s32.totalorder %s155, %s171
    %p173 = scmp.eq.s32.totalorder %s16, 0
    %p174 = por %p172, %p173
    %p175 = scmp.le.s32.totalorder 1, %s10
    %p176 = scmp.lt.s32.totalorder %s10, 5
    %p177 = pnand %p175, %p176
    %p178 = pneg %p177
    // Predicated region
    $region9: #{conv_up_sample.2} parent=5 // pred_check
      _
    $region10: #{conv_up_sample.2} parent=5 // pred_check_branch
      %180 = sbr.rel (%p177) target = $region12
    $region11: #{conv_up_sample.2} parent=5 // pred_region
      %s181 = ssub.s32 %s10, 1
      // Predicated region
      $region13: #{conv_up_sample.2} parent=11 // pred_check
        %p182 = pneg %p137
      $region14: #{conv_up_sample.2} parent=11 // pred_check_branch
        %184 = sbr.rel (%p182) target = $region16
      $region15: #{conv_up_sample.2} parent=11 // pred_region
        _
      $region16: #{conv_up_sample.2} parent=11 // pred_fallthru
        _
    $region12: #{conv_up_sample.2} parent=5 // pred_fallthru
      _
    %p185 = scmp.lt.s32.totalorder %s10, 4
    // Predicated region
    $region17: #{conv_up_sample.2} parent=5 // pred_check
      %p186 = pneg %p185
    $region18: #{conv_up_sample.2} parent=5 // pred_check_branch
      %188 = sbr.rel (%p186) target = $region20
    $region19: #{conv_up_sample.2} parent=5 // pred_region
      // Predicated region
      $region21: #{conv_up_sample.2} parent=19 // pred_check
        %p189 = pneg %p44
      $region22: #{conv_up_sample.2} parent=19 // pred_check_branch
        %191 = sbr.rel (%p189) target = $region24
      $region23: #{conv_up_sample.2} parent=19 // pred_region
        %s192 = smul.u32 8, %s18
        %s193 = ssub.s32 18, %s192
        %p194 = scmp.lt.s32.totalorder %s193, 8
        %s195 = scalar_select %p194, %s193, 8
        %s196 = smul.u32 128, %s195
        %s197 = smul.u32 %s196, 3
        %p198 = scmp.lt.s32.totalorder %s17, 1
        %s199 = scalar_select %p198, %s17, 1
        %p200 = scmp.lt.s32.totalorder %s192, 17
        %s201 = scalar_select %p200, %s192, 17
        %s202 = smul.addr %s201, 3
        %s203 = smul.addr %s199, 54
        %s204 = sadd.s32 %s202, %s203
        %s205 = smul.addr %s204, 8
        %s206 = scalar_lea.vmem %s0, %s205
        %s207 = smul.u32 8, %s18
        %s208 = ssub.s32 18, %s207
        %p209 = scmp.lt.s32.totalorder %s208, 8
        %s210 = scalar_select %p209, %s208, 8
        %s211 = smul.u32 128, %s210
        %s212 = smul.u32 %s211, 3
      $region24: #{conv_up_sample.2} parent=19 // pred_fallthru
        _
      // Predicated region
      $region25: #{conv_up_sample.2} parent=19 // pred_check
        %p213 = pneg %p76
      $region26: #{conv_up_sample.2} parent=19 // pred_check_branch
        %215 = sbr.rel (%p213) target = $region28
      $region27: #{conv_up_sample.2} parent=19 // pred_region
        %s216 = sadd.s32 %s18, 1
        %s217 = smul.u32 %s216, 8
        %p218 = scmp.lt.s32.totalorder %s17, 1
        %s219 = scalar_select %p218, %s17, 1
        %p220 = scmp.lt.s32.totalorder %s217, 17
        %s221 = scalar_select %p220, %s217, 17
        %s222 = smul.addr %s221, 3
        %s223 = smul.addr %s219, 54
        %s224 = sadd.s32 %s222, %s223
        %s225 = smul.addr %s224, 8
        %s226 = scalar_lea.vmem %s1, %s225
        %s227 = sadd.s32 %s18, 1
        %s228 = smul.u32 %s227, 8
      $region28: #{conv_up_sample.2} parent=19 // pred_fallthru
        _
      // Predicated region
      $region29: #{conv_up_sample.2} parent=19 // pred_check
        %p229 = pneg %p110
      $region30: #{conv_up_sample.2} parent=19 // pred_check_branch
        %231 = sbr.rel (%p229) target = $region32
      $region31: #{conv_up_sample.2} parent=19 // pred_region
        %s232 = sadd.s32 %s18, 1
        %s233 = smul.u32 %s232, 8
        %s234 = sadd.s32 %s233, 1
        %p235 = scmp.lt.s32.totalorder %s17, 1
        %s236 = scalar_select %p235, %s17, 1
        %p237 = scmp.lt.s32.totalorder %s234, 17
        %s238 = scalar_select %p237, %s234, 17
        %s239 = smul.addr %s238, 3
        %s240 = smul.addr %s236, 54
        %s241 = sadd.s32 %s239, %s240
        %s242 = smul.addr %s241, 8
        %s243 = scalar_lea.vmem %s2, %s242
        %s244 = sadd.s32 %s18, 1
        %s245 = smul.u32 %s244, 8
        %s246 = sadd.s32 %s245, 1
      $region32: #{conv_up_sample.2} parent=19 // pred_fallthru
        _
    $region20: #{conv_up_sample.2} parent=5 // pred_fallthru
      _
    %p247 = scmp.le.s32.totalorder 1, %s10
    %p248 = scmp.lt.s32.totalorder %s10, 5
    %p249 = pnand %p247, %p248
    %p250 = pneg %p249
    // Predicated region
    $region33: #{conv_up_sample.2} parent=5 // pred_check
      _
    $region34: #{conv_up_sample.2} parent=5 // pred_check_branch
      %252 = sbr.rel (%p249) target = $region36
    $region35: #{conv_up_sample.2} parent=5 // pred_region
      %s253 = ssub.s32 %s10, 1
      %s254 = smul.u32 8, %s20
      %s255 = ssub.s32 18, %s254
      %p256 = scmp.lt.s32.totalorder %s255, 8
      %s257 = scalar_select %p256, %s255, 8
      %s258 = smul.u32 128, %s257
      %s259 = smul.u32 %s258, 3
      %p260 = scmp.lt.s32.totalorder %s19, 1
      %s261 = scalar_select %p260, %s19, 1
      %p262 = scmp.lt.s32.totalorder %s254, 17
      %s263 = scalar_select %p262, %s254, 17
      %s264 = smul.addr %s263, 3
      %s265 = smul.addr %s261, 54
      %s266 = sadd.s32 %s264, %s265
      %s267 = smul.addr %s266, 8
      %s268 = scalar_lea.vmem %s0, %s267
      %p269 = pneg %p50
      %p270 = pneg %p47
      %s271 = sadd.s32 %s20, 1
      %s272 = smul.u32 %s271, 8
      %p273 = scmp.lt.s32.totalorder %s19, 1
      %s274 = scalar_select %p273, %s19, 1
      %p275 = scmp.lt.s32.totalorder %s272, 17
      %s276 = scalar_select %p275, %s272, 17
      %s277 = smul.addr %s276, 3
      %s278 = smul.addr %s274, 54
      %s279 = sadd.s32 %s277, %s278
      %s280 = smul.addr %s279, 8
      %s281 = scalar_lea.vmem %s1, %s280
      %p282 = pneg %p82
      %p283 = pneg %p79
      %s284 = sadd.s32 %s20, 1
      %s285 = smul.u32 %s284, 8
      %s286 = sadd.s32 %s285, 1
      %p287 = scmp.lt.s32.totalorder %s19, 1
      %s288 = scalar_select %p287, %s19, 1
      %p289 = scmp.lt.s32.totalorder %s286, 17
      %s290 = scalar_select %p289, %s286, 17
      %s291 = smul.addr %s290, 3
      %s292 = smul.addr %s288, 54
      %s293 = sadd.s32 %s291, %s292
      %s294 = smul.addr %s293, 8
      %s295 = scalar_lea.vmem %s2, %s294
      %p296 = pneg %p116
      %p297 = pneg %p113
      %p298 = pneg %p137
      %p299 = pneg %p134
      %p300 = pneg %p167
      %p301 = pneg %p164
      %s302 = smul.u32 %s19, 2
      %s303 = sadd.s32 %s302, %s20
      %p304 = scmp.lt.s32.totalorder %s303, 3
      %s305 = scalar_select %p304, %s303, 3
      %s306 = smul.addr %s305, 2
      %s307 = scalar_lea.vmem %s4, %s306
      %s308 = smul.u32 8, %s20
      %s309 = ssub.s32 18, %s308
      %p310 = scmp.lt.s32.totalorder %s309, 8
      %s311 = scalar_select %p310, %s309, 8
      %s312 = smul.u32 128, %s311
      %s313 = smul.u32 %s312, 3
      %p314 = scmp.lt.s32.totalorder %s19, 1
      %s315 = scalar_select %p314, %s19, 1
      %p316 = scmp.lt.s32.totalorder %s308, 17
      %s317 = scalar_select %p316, %s308, 17
      %s318 = smul.addr %s317, 3
      %s319 = smul.addr %s315, 54
      %s320 = sadd.s32 %s318, %s319
      %s321 = smul.addr %s320, 8
      %s322 = scalar_lea.vmem %s0, %s321
      %s323 = smul.u32 8, %s20
      %s324 = ssub.s32 18, %s323
      %p325 = scmp.lt.s32.totalorder %s324, 8
      %s326 = scalar_select %p325, %s324, 8
      %s327 = smul.u32 128, %s326
      %s328 = smul.u32 %s327, 3
      %s329 = sadd.s32 %s20, 1
      %s330 = smul.u32 %s329, 8
      %p331 = scmp.lt.s32.totalorder %s19, 1
      %s332 = scalar_select %p331, %s19, 1
      %p333 = scmp.lt.s32.totalorder %s330, 17
      %s334 = scalar_select %p333, %s330, 17
      %s335 = smul.addr %s334, 3
      %s336 = smul.addr %s332, 54
      %s337 = sadd.s32 %s335, %s336
      %s338 = smul.addr %s337, 8
      %s339 = scalar_lea.vmem %s1, %s338
      %s340 = sadd.s32 %s20, 1
      %s341 = smul.u32 %s340, 8
      %s342 = sadd.s32 %s20, 1
      %s343 = smul.u32 %s342, 8
      %s344 = sadd.s32 %s343, 1
      %p345 = scmp.lt.s32.totalorder %s19, 1
      %s346 = scalar_select %p345, %s19, 1
      %p347 = scmp.lt.s32.totalorder %s344, 17
      %s348 = scalar_select %p347, %s344, 17
      %s349 = smul.addr %s348, 3
      %s350 = smul.addr %s346, 54
      %s351 = sadd.s32 %s349, %s350
      %s352 = smul.addr %s351, 8
      %s353 = scalar_lea.vmem %s2, %s352
      %s354 = sadd.s32 %s20, 1
      %s355 = smul.u32 %s354, 8
      %s356 = sadd.s32 %s355, 1
      %s357 = smul.u32 %s19, 2
      %s358 = sadd.s32 %s357, %s20
      %p359 = scmp.lt.s32.totalorder %s358, 3
      %s360 = scalar_select %p359, %s358, 3
      %s361 = smul.addr %s360, 2
      %s362 = scalar_lea.vmem %s4, %s361
      %s363 = smul.u32 %s19, 2
      %s364 = sadd.s32 %s363, %s20
      %v365 = vld [vmem:[%s322] sm:$0xff]
      %v366 = vld [vmem:[%s322 + $0x8] sm:$0xff]
      %v367 = vld [vmem:[%s322 + $0x18] sm:$0xff]
      %v368 = vld [vmem:[%s322 + $0x20] sm:$0xff]
      %v369 = vld [vmem:[%s322 + $0x30] sm:$0xff]
      %v370 = vld [vmem:[%s322 + $0x38] sm:$0xff]
      %v371 = vld [vmem:[%s322 + $0x48] sm:$0xff]
      %v372 = vld [vmem:[%s322 + $0x50] sm:$0xff]
      %v373 = vld [vmem:[%s322 + $0x60] sm:$0xff]
      %v374 = vld [vmem:[%s322 + $0x68] sm:$0xff]
      %v375 = vld [vmem:[%s322 + $0x78] sm:$0xff]
      %v376 = vld [vmem:[%s322 + $0x80] sm:$0xff]
      %v377 = vld [vmem:[%s322 + $0x90] sm:$0xff]
      %v378 = vld [vmem:[%s322 + $0x98] sm:$0xff]
      %v379 = vld [vmem:[%s322 + $0xa8] sm:$0xff]
      %v380 = vld [vmem:[%s322 + $0xb0] sm:$0xff]
      %vm381 = vcmask 31744
      %382 = vst.msk [vmem:[#allocation2] sm:$0xff] %vm381, %v365
      %383 = vst.msk [vmem:[#allocation2 + $0x8] sm:$0xff] %vm381, %v366
      %384 = vst.msk [vmem:[#allocation2 + $0x10] sm:$0xff] %vm381, %v367
      %385 = vst.msk [vmem:[#allocation2 + $0x18] sm:$0xff] %vm381, %v368
      %386 = vst.msk [vmem:[#allocation2 + $0x20] sm:$0xff] %vm381, %v369
      %387 = vst.msk [vmem:[#allocation2 + $0x28] sm:$0xff] %vm381, %v370
      %388 = vst.msk [vmem:[#allocation2 + $0x30] sm:$0xff] %vm381, %v371
      %389 = vst.msk [vmem:[#allocation2 + $0x38] sm:$0xff] %vm381, %v372
      %390 = vst.msk [vmem:[#allocation2 + $0x40] sm:$0xff] %vm381, %v373
      %391 = vst.msk [vmem:[#allocation2 + $0x48] sm:$0xff] %vm381, %v374
      %392 = vst.msk [vmem:[#allocation2 + $0x50] sm:$0xff] %vm381, %v375
      %393 = vst.msk [vmem:[#allocation2 + $0x58] sm:$0xff] %vm381, %v376
      %394 = vst.msk [vmem:[#allocation2 + $0x60] sm:$0xff] %vm381, %v377
      %395 = vst.msk [vmem:[#allocation2 + $0x68] sm:$0xff] %vm381, %v378
      %396 = vst.msk [vmem:[#allocation2 + $0x70] sm:$0xff] %vm381, %v379
      %397 = vst.msk [vmem:[#allocation2 + $0x78] sm:$0xff] %vm381, %v380
      %v398 = vld [vmem:[%s322 + $0x1] sm:$0xff]
      %v399 = vld [vmem:[%s322 + $0x9] sm:$0xff]
      %v400 = vld [vmem:[%s322 + $0x19] sm:$0xff]
      %v401 = vld [vmem:[%s322 + $0x21] sm:$0xff]
      %v402 = vld [vmem:[%s322 + $0x31] sm:$0xff]
      %v403 = vld [vmem:[%s322 + $0x39] sm:$0xff]
      %v404 = vld [vmem:[%s322 + $0x49] sm:$0xff]
      %v405 = vld [vmem:[%s322 + $0x51] sm:$0xff]
      %v406 = vld [vmem:[%s322 + $0x61] sm:$0xff]
      %v407 = vld [vmem:[%s322 + $0x69] sm:$0xff]
      %v408 = vld [vmem:[%s322 + $0x79] sm:$0xff]
      %v409 = vld [vmem:[%s322 + $0x81] sm:$0xff]
      %v410 = vld [vmem:[%s322 + $0x91] sm:$0xff]
      %v411 = vld [vmem:[%s322 + $0x99] sm:$0xff]
      %v412 = vld [vmem:[%s322 + $0xa9] sm:$0xff]
      %v413 = vld [vmem:[%s322 + $0xb1] sm:$0xff]
      %430 = vrot.lane.b32.xlu0 %v398, 4
      %v431 = vpop.permute.xlu0 %430
      %432 = vrot.lane.b32.xlu0 %v399, 4
      %v433 = vpop.permute.xlu0 %432
      %434 = vrot.lane.b32.xlu0 %v400, 4
      %v435 = vpop.permute.xlu0 %434
      %436 = vrot.lane.b32.xlu0 %v401, 4
      %v437 = vpop.permute.xlu0 %436
      %438 = vrot.lane.b32.xlu0 %v402, 4
      %v439 = vpop.permute.xlu0 %438
      %440 = vrot.lane.b32.xlu0 %v403, 4
      %v441 = vpop.permute.xlu0 %440
      %442 = vrot.lane.b32.xlu0 %v404, 4
      %v443 = vpop.permute.xlu0 %442
      %444 = vrot.lane.b32.xlu0 %v405, 4
      %v445 = vpop.permute.xlu0 %444
      %446 = vrot.lane.b32.xlu0 %v406, 4
      %v447 = vpop.permute.xlu0 %446
      %448 = vrot.lane.b32.xlu0 %v407, 4
      %v449 = vpop.permute.xlu0 %448
      %450 = vrot.lane.b32.xlu0 %v408, 4
      %v451 = vpop.permute.xlu0 %450
      %452 = vrot.lane.b32.xlu0 %v409, 4
      %v453 = vpop.permute.xlu0 %452
      %454 = vrot.lane.b32.xlu0 %v410, 4
      %v455 = vpop.permute.xlu0 %454
      %456 = vrot.lane.b32.xlu0 %v411, 4
      %v457 = vpop.permute.xlu0 %456
      %458 = vrot.lane.b32.xlu0 %v412, 4
      %v459 = vpop.permute.xlu0 %458
      %460 = vrot.lane.b32.xlu0 %v413, 4
      %v461 = vpop.permute.xlu0 %460
      %vm478 = vcmask 64544
      %479 = vst.msk [vmem:[#allocation2] sm:$0xff] %vm478, %v431
      %480 = vst.msk [vmem:[#allocation2 + $0x8] sm:$0xff] %vm478, %v433
      %481 = vst.msk [vmem:[#allocation2 + $0x10] sm:$0xff] %vm478, %v435
      %482 = vst.msk [vmem:[#allocation2 + $0x18] sm:$0xff] %vm478, %v437
      %483 = vst.msk [vmem:[#allocation2 + $0x20] sm:$0xff] %vm478, %v439
      %484 = vst.msk [vmem:[#allocation2 + $0x28] sm:$0xff] %vm478, %v441
      %485 = vst.msk [vmem:[#allocation2 + $0x30] sm:$0xff] %vm478, %v443
      %486 = vst.msk [vmem:[#allocation2 + $0x38] sm:$0xff] %vm478, %v445
      %487 = vst.msk [vmem:[#allocation2 + $0x40] sm:$0xff] %vm478, %v447
      %488 = vst.msk [vmem:[#allocation2 + $0x48] sm:$0xff] %vm478, %v449
      %489 = vst.msk [vmem:[#allocation2 + $0x50] sm:$0xff] %vm478, %v451
      %490 = vst.msk [vmem:[#allocation2 + $0x58] sm:$0xff] %vm478, %v453
      %491 = vst.msk [vmem:[#allocation2 + $0x60] sm:$0xff] %vm478, %v455
      %492 = vst.msk [vmem:[#allocation2 + $0x68] sm:$0xff] %vm478, %v457
      %493 = vst.msk [vmem:[#allocation2 + $0x70] sm:$0xff] %vm478, %v459
      %494 = vst.msk [vmem:[#allocation2 + $0x78] sm:$0xff] %vm478, %v461
      %v495 = vld [vmem:[%s322 + $0x2] sm:$0xff]
      %v496 = vld [vmem:[%s322 + $0xa] sm:$0xff]
      %v497 = vld [vmem:[%s322 + $0x1a] sm:$0xff]
      %v498 = vld [vmem:[%s322 + $0x22] sm:$0xff]
      %v499 = vld [vmem:[%s322 + $0x32] sm:$0xff]
      %v500 = vld [vmem:[%s322 + $0x3a] sm:$0xff]
      %v501 = vld [vmem:[%s322 + $0x4a] sm:$0xff]
      %v502 = vld [vmem:[%s322 + $0x52] sm:$0xff]
      %v503 = vld [vmem:[%s322 + $0x62] sm:$0xff]
      %v504 = vld [vmem:[%s322 + $0x6a] sm:$0xff]
      %v505 = vld [vmem:[%s322 + $0x7a] sm:$0xff]
      %v506 = vld [vmem:[%s322 + $0x82] sm:$0xff]
      %v507 = vld [vmem:[%s322 + $0x92] sm:$0xff]
      %v508 = vld [vmem:[%s322 + $0x9a] sm:$0xff]
      %v509 = vld [vmem:[%s322 + $0xaa] sm:$0xff]
      %v510 = vld [vmem:[%s322 + $0xb2] sm:$0xff]
      %527 = vrot.lane.b32.xlu0 %v495, 8
      %v528 = vpop.permute.xlu0 %527
      %529 = vrot.lane.b32.xlu0 %v496, 8
      %v530 = vpop.permute.xlu0 %529
      %531 = vrot.lane.b32.xlu0 %v497, 8
      %v532 = vpop.permute.xlu0 %531
      %533 = vrot.lane.b32.xlu0 %v498, 8
      %v534 = vpop.permute.xlu0 %533
      %535 = vrot.lane.b32.xlu0 %v499, 8
      %v536 = vpop.permute.xlu0 %535
      %537 = vrot.lane.b32.xlu0 %v500, 8
      %v538 = vpop.permute.xlu0 %537
      %539 = vrot.lane.b32.xlu0 %v501, 8
      %v540 = vpop.permute.xlu0 %539
      %541 = vrot.lane.b32.xlu0 %v502, 8
      %v542 = vpop.permute.xlu0 %541
      %543 = vrot.lane.b32.xlu0 %v503, 8
      %v544 = vpop.permute.xlu0 %543
      %545 = vrot.lane.b32.xlu0 %v504, 8
      %v546 = vpop.permute.xlu0 %545
      %547 = vrot.lane.b32.xlu0 %v505, 8
      %v548 = vpop.permute.xlu0 %547
      %549 = vrot.lane.b32.xlu0 %v506, 8
      %v550 = vpop.permute.xlu0 %549
      %551 = vrot.lane.b32.xlu0 %v507, 8
      %v552 = vpop.permute.xlu0 %551
      %553 = vrot.lane.b32.xlu0 %v508, 8
      %v554 = vpop.permute.xlu0 %553
      %555 = vrot.lane.b32.xlu0 %v509, 8
      %v556 = vpop.permute.xlu0 %555
      %557 = vrot.lane.b32.xlu0 %v510, 8
      %v558 = vpop.permute.xlu0 %557
      %vm575 = vcmask 97344
      %576 = vst.msk [vmem:[#allocation2] sm:$0xff] %vm575, %v528
      %577 = vst.msk [vmem:[#allocation2 + $0x8] sm:$0xff] %vm575, %v530
      %578 = vst.msk [vmem:[#allocation2 + $0x10] sm:$0xff] %vm575, %v532
      %579 = vst.msk [vmem:[#allocation2 + $0x18] sm:$0xff] %vm575, %v534
      %580 = vst.msk [vmem:[#allocation2 + $0x20] sm:$0xff] %vm575, %v536
      %581 = vst.msk [vmem:[#allocation2 + $0x28] sm:$0xff] %vm575, %v538
      %582 = vst.msk [vmem:[#allocation2 + $0x30] sm:$0xff] %vm575, %v540
      %583 = vst.msk [vmem:[#allocation2 + $0x38] sm:$0xff] %vm575, %v542
      %584 = vst.msk [vmem:[#allocation2 + $0x40] sm:$0xff] %vm575, %v544
      %585 = vst.msk [vmem:[#allocation2 + $0x48] sm:$0xff] %vm575, %v546
      %586 = vst.msk [vmem:[#allocation2 + $0x50] sm:$0xff] %vm575, %v548
      %587 = vst.msk [vmem:[#allocation2 + $0x58] sm:$0xff] %vm575, %v550
      %588 = vst.msk [vmem:[#allocation2 + $0x60] sm:$0xff] %vm575, %v552
      %589 = vst.msk [vmem:[#allocation2 + $0x68] sm:$0xff] %vm575, %v554
      %590 = vst.msk [vmem:[#allocation2 + $0x70] sm:$0xff] %vm575, %v556
      %591 = vst.msk [vmem:[#allocation2 + $0x78] sm:$0xff] %vm575, %v558
      %s592 = scalar_lea.vmem %s322, 24
      %v593 = vld [vmem:[%s592] sm:$0xff]
      %v594 = vld [vmem:[%s592 + $0x8] sm:$0xff]
      %v595 = vld [vmem:[%s592 + $0x18] sm:$0xff]
      %v596 = vld [vmem:[%s592 + $0x20] sm:$0xff]
      %v597 = vld [vmem:[%s592 + $0x30] sm:$0xff]
      %v598 = vld [vmem:[%s592 + $0x38] sm:$0xff]
      %v599 = vld [vmem:[%s592 + $0x48] sm:$0xff]
      %v600 = vld [vmem:[%s592 + $0x50] sm:$0xff]
      %v601 = vld [vmem:[%s592 + $0x60] sm:$0xff]
      %v602 = vld [vmem:[%s592 + $0x68] sm:$0xff]
      %v603 = vld [vmem:[%s592 + $0x78] sm:$0xff]
      %v604 = vld [vmem:[%s592 + $0x80] sm:$0xff]
      %v605 = vld [vmem:[%s592 + $0x90] sm:$0xff]
      %v606 = vld [vmem:[%s592 + $0x98] sm:$0xff]
      %621 = vrot.lane.b32.xlu0 %v593, 12
      %v622 = vpop.permute.xlu0 %621
      %623 = vrot.lane.b32.xlu0 %v594, 12
      %v624 = vpop.permute.xlu0 %623
      %625 = vrot.lane.b32.xlu0 %v595, 12
      %v626 = vpop.permute.xlu0 %625
      %627 = vrot.lane.b32.xlu0 %v596, 12
      %v628 = vpop.permute.xlu0 %627
      %629 = vrot.lane.b32.xlu0 %v597, 12
      %v630 = vpop.permute.xlu0 %629
      %631 = vrot.lane.b32.xlu0 %v598, 12
      %v632 = vpop.permute.xlu0 %631
      %633 = vrot.lane.b32.xlu0 %v599, 12
      %v634 = vpop.permute.xlu0 %633
      %635 = vrot.lane.b32.xlu0 %v600, 12
      %v636 = vpop.permute.xlu0 %635
      %637 = vrot.lane.b32.xlu0 %v601, 12
      %v638 = vpop.permute.xlu0 %637
      %639 = vrot.lane.b32.xlu0 %v602, 12
      %v640 = vpop.permute.xlu0 %639
      %641 = vrot.lane.b32.xlu0 %v603, 12
      %v642 = vpop.permute.xlu0 %641
      %643 = vrot.lane.b32.xlu0 %v604, 12
      %v644 = vpop.permute.xlu0 %643
      %645 = vrot.lane.b32.xlu0 %v605, 12
      %v646 = vpop.permute.xlu0 %645
      %647 = vrot.lane.b32.xlu0 %v606, 12
      %v648 = vpop.permute.xlu0 %647
      %vm663 = vcmask 130144
      %664 = vst.msk [vmem:[#allocation2] sm:$0xff] %vm663, %v622
      %665 = vst.msk [vmem:[#allocation2 + $0x8] sm:$0xff] %vm663, %v624
      %666 = vst.msk [vmem:[#allocation2 + $0x10] sm:$0xff] %vm663, %v626
      %667 = vst.msk [vmem:[#allocation2 + $0x18] sm:$0xff] %vm663, %v628
      %668 = vst.msk [vmem:[#allocation2 + $0x20] sm:$0xff] %vm663, %v630
      %669 = vst.msk [vmem:[#allocation2 + $0x28] sm:$0xff] %vm663, %v632
      %670 = vst.msk [vmem:[#allocation2 + $0x30] sm:$0xff] %vm663, %v634
      %671 = vst.msk [vmem:[#allocation2 + $0x38] sm:$0xff] %vm663, %v636
      %672 = vst.msk [vmem:[#allocation2 + $0x40] sm:$0xff] %vm663, %v638
      %673 = vst.msk [vmem:[#allocation2 + $0x48] sm:$0xff] %vm663, %v640
      %674 = vst.msk [vmem:[#allocation2 + $0x50] sm:$0xff] %vm663, %v642
      %675 = vst.msk [vmem:[#allocation2 + $0x58] sm:$0xff] %vm663, %v644
      %676 = vst.msk [vmem:[#allocation2 + $0x60] sm:$0xff] %vm663, %v646
      %677 = vst.msk [vmem:[#allocation2 + $0x68] sm:$0xff] %vm663, %v648
      %v678 = vld [vmem:[%s339] sm:$0xff]
      %v679 = vld [vmem:[%s339 + $0x8] sm:$0xff]
      %682 = vrot.lane.b32.xlu0 %v678, 12
      %v683 = vpop.permute.xlu0 %682
      %684 = vrot.lane.b32.xlu0 %v679, 12
      %v685 = vpop.permute.xlu0 %684
      %688 = vst.msk [vmem:[#allocation2 + $0x70] sm:$0xff] %vm663, %v683
      %689 = vst.msk [vmem:[#allocation2 + $0x78] sm:$0xff] %vm663, %v685
      %v690 = vld [vmem:[%s592 + $0x1] sm:$0xff]
      %v691 = vld [vmem:[%s592 + $0x9] sm:$0xff]
      %v692 = vld [vmem:[%s592 + $0x19] sm:$0xff]
      %v693 = vld [vmem:[%s592 + $0x21] sm:$0xff]
      %v694 = vld [vmem:[%s592 + $0x31] sm:$0xff]
      %v695 = vld [vmem:[%s592 + $0x39] sm:$0xff]
      %v696 = vld [vmem:[%s592 + $0x49] sm:$0xff]
      %v697 = vld [vmem:[%s592 + $0x51] sm:$0xff]
      %v698 = vld [vmem:[%s592 + $0x61] sm:$0xff]
      %v699 = vld [vmem:[%s592 + $0x69] sm:$0xff]
      %v700 = vld [vmem:[%s592 + $0x79] sm:$0xff]
      %v701 = vld [vmem:[%s592 + $0x81] sm:$0xff]
      %v702 = vld [vmem:[%s592 + $0x91] sm:$0xff]
      %v703 = vld [vmem:[%s592 + $0x99] sm:$0xff]
      %718 = vrot.lane.b32.xlu0 %v690, 16
      %v719 = vpop.permute.xlu0 %718
      %720 = vrot.lane.b32.xlu0 %v691, 16
      %v721 = vpop.permute.xlu0 %720
      %722 = vrot.lane.b32.xlu0 %v692, 16
      %v723 = vpop.permute.xlu0 %722
      %724 = vrot.lane.b32.xlu0 %v693, 16
      %v725 = vpop.permute.xlu0 %724
      %726 = vrot.lane.b32.xlu0 %v694, 16
      %v727 = vpop.permute.xlu0 %726
      %728 = vrot.lane.b32.xlu0 %v695, 16
      %v729 = vpop.permute.xlu0 %728
      %730 = vrot.lane.b32.xlu0 %v696, 16
      %v731 = vpop.permute.xlu0 %730
      %732 = vrot.lane.b32.xlu0 %v697, 16
      %v733 = vpop.permute.xlu0 %732
      %734 = vrot.lane.b32.xlu0 %v698, 16
      %v735 = vpop.permute.xlu0 %734
      %736 = vrot.lane.b32.xlu0 %v699, 16
      %v737 = vpop.permute.xlu0 %736
      %738 = vrot.lane.b32.xlu0 %v700, 16
      %v739 = vpop.permute.xlu0 %738
      %740 = vrot.lane.b32.xlu0 %v701, 16
      %v741 = vpop.permute.xlu0 %740
      %742 = vrot.lane.b32.xlu0 %v702, 16
      %v743 = vpop.permute.xlu0 %742
      %744 = vrot.lane.b32.xlu0 %v703, 16
      %v745 = vpop.permute.xlu0 %744
      %vm760 = vcmask 162944
      %761 = vst.msk [vmem:[#allocation2] sm:$0xff] %vm760, %v719
      %762 = vst.msk [vmem:[#allocation2 + $0x8] sm:$0xff] %vm760, %v721
      %763 = vst.msk [vmem:[#allocation2 + $0x10] sm:$0xff] %vm760, %v723
      %764 = vst.msk [vmem:[#allocation2 + $0x18] sm:$0xff] %vm760, %v725
      %765 = vst.msk [vmem:[#allocation2 + $0x20] sm:$0xff] %vm760, %v727
      %766 = vst.msk [vmem:[#allocation2 + $0x28] sm:$0xff] %vm760, %v729
      %767 = vst.msk [vmem:[#allocation2 + $0x30] sm:$0xff] %vm760, %v731
      %768 = vst.msk [vmem:[#allocation2 + $0x38] sm:$0xff] %vm760, %v733
      %769 = vst.msk [vmem:[#allocation2 + $0x40] sm:$0xff] %vm760, %v735
      %770 = vst.msk [vmem:[#allocation2 + $0x48] sm:$0xff] %vm760, %v737
      %771 = vst.msk [vmem:[#allocation2 + $0x50] sm:$0xff] %vm760, %v739
      %772 = vst.msk [vmem:[#allocation2 + $0x58] sm:$0xff] %vm760, %v741
      %773 = vst.msk [vmem:[#allocation2 + $0x60] sm:$0xff] %vm760, %v743
      %774 = vst.msk [vmem:[#allocation2 + $0x68] sm:$0xff] %vm760, %v745
      %v775 = vld [vmem:[%s339 + $0x1] sm:$0xff]
      %v776 = vld [vmem:[%s339 + $0x9] sm:$0xff]
      %779 = vrot.lane.b32.xlu0 %v775, 16
      %v780 = vpop.permute.xlu0 %779
      %781 = vrot.lane.b32.xlu0 %v776, 16
      %v782 = vpop.permute.xlu0 %781
      %785 = vst.msk [vmem:[#allocation2 + $0x70] sm:$0xff] %vm760, %v780
      %786 = vst.msk [vmem:[#allocation2 + $0x78] sm:$0xff] %vm760, %v782
      %v787 = vld [vmem:[%s592 + $0x2] sm:$0xff]
      %v788 = vld [vmem:[%s592 + $0xa] sm:$0xff]
      %v789 = vld [vmem:[%s592 + $0x1a] sm:$0xff]
      %v790 = vld [vmem:[%s592 + $0x22] sm:$0xff]
      %v791 = vld [vmem:[%s592 + $0x32] sm:$0xff]
      %v792 = vld [vmem:[%s592 + $0x3a] sm:$0xff]
      %v793 = vld [vmem:[%s592 + $0x4a] sm:$0xff]
      %v794 = vld [vmem:[%s592 + $0x52] sm:$0xff]
      %v795 = vld [vmem:[%s592 + $0x62] sm:$0xff]
      %v796 = vld [vmem:[%s592 + $0x6a] sm:$0xff]
      %v797 = vld [vmem:[%s592 + $0x7a] sm:$0xff]
      %v798 = vld [vmem:[%s592 + $0x82] sm:$0xff]
      %v799 = vld [vmem:[%s592 + $0x92] sm:$0xff]
      %v800 = vld [vmem:[%s592 + $0x9a] sm:$0xff]
      %815 = vrot.lane.b32.xlu0 %v787, 20
      %v816 = vpop.permute.xlu0 %815
      %817 = vrot.lane.b32.xlu0 %v788, 20
      %v818 = vpop.permute.xlu0 %817
      %819 = vrot.lane.b32.xlu0 %v789, 20
      %v820 = vpop.permute.xlu0 %819
      %821 = vrot.lane.b32.xlu0 %v790, 20
      %v822 = vpop.permute.xlu0 %821
      %823 = vrot.lane.b32.xlu0 %v791, 20
      %v824 = vpop.permute.xlu0 %823
      %825 = vrot.lane.b32.xlu0 %v792, 20
      %v826 = vpop.permute.xlu0 %825
      %827 = vrot.lane.b32.xlu0 %v793, 20
      %v828 = vpop.permute.xlu0 %827
      %829 = vrot.lane.b32.xlu0 %v794, 20
      %v830 = vpop.permute.xlu0 %829
      %831 = vrot.lane.b32.xlu0 %v795, 20
      %v832 = vpop.permute.xlu0 %831
      %833 = vrot.lane.b32.xlu0 %v796, 20
      %v834 = vpop.permute.xlu0 %833
      %835 = vrot.lane.b32.xlu0 %v797, 20
      %v836 = vpop.permute.xlu0 %835
      %837 = vrot.lane.b32.xlu0 %v798, 20
      %v838 = vpop.permute.xlu0 %837
      %839 = vrot.lane.b32.xlu0 %v799, 20
      %v840 = vpop.permute.xlu0 %839
      %841 = vrot.lane.b32.xlu0 %v800, 20
      %v842 = vpop.permute.xlu0 %841
      %vm857 = vcmask 195744
      %858 = vst.msk [vmem:[#allocation2] sm:$0xff] %vm857, %v816
      %859 = vst.msk [vmem:[#allocation2 + $0x8] sm:$0xff] %vm857, %v818
      %860 = vst.msk [vmem:[#allocation2 + $0x10] sm:$0xff] %vm857, %v820
      %861 = vst.msk [vmem:[#allocation2 + $0x18] sm:$0xff] %vm857, %v822
      %862 = vst.msk [vmem:[#allocation2 + $0x20] sm:$0xff] %vm857, %v824
      %863 = vst.msk [vmem:[#allocation2 + $0x28] sm:$0xff] %vm857, %v826
      %864 = vst.msk [vmem:[#allocation2 + $0x30] sm:$0xff] %vm857, %v828
      %865 = vst.msk [vmem:[#allocation2 + $0x38] sm:$0xff] %vm857, %v830
      %866 = vst.msk [vmem:[#allocation2 + $0x40] sm:$0xff] %vm857, %v832
      %867 = vst.msk [vmem:[#allocation2 + $0x48] sm:$0xff] %vm857, %v834
      %868 = vst.msk [vmem:[#allocation2 + $0x50] sm:$0xff] %vm857, %v836
      %869 = vst.msk [vmem:[#allocation2 + $0x58] sm:$0xff] %vm857, %v838
      %870 = vst.msk [vmem:[#allocation2 + $0x60] sm:$0xff] %vm857, %v840
      %871 = vst.msk [vmem:[#allocation2 + $0x68] sm:$0xff] %vm857, %v842
      %v872 = vld [vmem:[%s339 + $0x2] sm:$0xff]
      %v873 = vld [vmem:[%s339 + $0xa] sm:$0xff]
      %876 = vrot.lane.b32.xlu0 %v872, 20
      %v877 = vpop.permute.xlu0 %876
      %878 = vrot.lane.b32.xlu0 %v873, 20
      %v879 = vpop.permute.xlu0 %878
      %882 = vst.msk [vmem:[#allocation2 + $0x70] sm:$0xff] %vm857, %v877
      %883 = vst.msk [vmem:[#allocation2 + $0x78] sm:$0xff] %vm857, %v879
      %s884 = scalar_lea.vmem %s322, 48
      %v885 = vld [vmem:[%s884] sm:$0xff]
      %v886 = vld [vmem:[%s884 + $0x8] sm:$0xff]
      %v887 = vld [vmem:[%s884 + $0x18] sm:$0xff]
      %v888 = vld [vmem:[%s884 + $0x20] sm:$0xff]
      %v889 = vld [vmem:[%s884 + $0x30] sm:$0xff]
      %v890 = vld [vmem:[%s884 + $0x38] sm:$0xff]
      %v891 = vld [vmem:[%s884 + $0x48] sm:$0xff]
      %v892 = vld [vmem:[%s884 + $0x50] sm:$0xff]
      %v893 = vld [vmem:[%s884 + $0x60] sm:$0xff]
      %v894 = vld [vmem:[%s884 + $0x68] sm:$0xff]
      %v895 = vld [vmem:[%s884 + $0x78] sm:$0xff]
      %v896 = vld [vmem:[%s884 + $0x80] sm:$0xff]
      %909 = vrot.lane.b32.xlu0 %v885, 24
      %v910 = vpop.permute.xlu0 %909
      %911 = vrot.lane.b32.xlu0 %v886, 24
      %v912 = vpop.permute.xlu0 %911
      %913 = vrot.lane.b32.xlu0 %v887, 24
      %v914 = vpop.permute.xlu0 %913
      %915 = vrot.lane.b32.xlu0 %v888, 24
      %v916 = vpop.permute.xlu0 %915
      %917 = vrot.lane.b32.xlu0 %v889, 24
      %v918 = vpop.permute.xlu0 %917
      %919 = vrot.lane.b32.xlu0 %v890, 24
      %v920 = vpop.permute.xlu0 %919
      %921 = vrot.lane.b32.xlu0 %v891, 24
      %v922 = vpop.permute.xlu0 %921
      %923 = vrot.lane.b32.xlu0 %v892, 24
      %v924 = vpop.permute.xlu0 %923
      %925 = vrot.lane.b32.xlu0 %v893, 24
      %v926 = vpop.permute.xlu0 %925
      %927 = vrot.lane.b32.xlu0 %v894, 24
      %v928 = vpop.permute.xlu0 %927
      %929 = vrot.lane.b32.xlu0 %v895, 24
      %v930 = vpop.permute.xlu0 %929
      %931 = vrot.lane.b32.xlu0 %v896, 24
      %v932 = vpop.permute.xlu0 %931
      %vm945 = vcmask 228544
      %946 = vst.msk [vmem:[#allocation2] sm:$0xff] %vm945, %v910
      %947 = vst.msk [vmem:[#allocation2 + $0x8] sm:$0xff] %vm945, %v912
      %948 = vst.msk [vmem:[#allocation2 + $0x10] sm:$0xff] %vm945, %v914
      %949 = vst.msk [vmem:[#allocation2 + $0x18] sm:$0xff] %vm945, %v916
      %950 = vst.msk [vmem:[#allocation2 + $0x20] sm:$0xff] %vm945, %v918
      %951 = vst.msk [vmem:[#allocation2 + $0x28] sm:$0xff] %vm945, %v920
      %952 = vst.msk [vmem:[#allocation2 + $0x30] sm:$0xff] %vm945, %v922
      %953 = vst.msk [vmem:[#allocation2 + $0x38] sm:$0xff] %vm945, %v924
      %954 = vst.msk [vmem:[#allocation2 + $0x40] sm:$0xff] %vm945, %v926
      %955 = vst.msk [vmem:[#allocation2 + $0x48] sm:$0xff] %vm945, %v928
      %956 = vst.msk [vmem:[#allocation2 + $0x50] sm:$0xff] %vm945, %v930
      %957 = vst.msk [vmem:[#allocation2 + $0x58] sm:$0xff] %vm945, %v932
      %v958 = vld [vmem:[%s339] sm:$0xff]
      %v959 = vld [vmem:[%s339 + $0x8] sm:$0xff]
      %962 = vrot.lane.b32.xlu0 %v958, 24
      %v963 = vpop.permute.xlu0 %962
      %964 = vrot.lane.b32.xlu0 %v959, 24
      %v965 = vpop.permute.xlu0 %964
      %968 = vst.msk [vmem:[#allocation2 + $0x60] sm:$0xff] %vm945, %v963
      %969 = vst.msk [vmem:[#allocation2 + $0x68] sm:$0xff] %vm945, %v965
      %v970 = vld [vmem:[%s353] sm:$0xff]
      %v971 = vld [vmem:[%s353 + $0x8] sm:$0xff]
      %974 = vrot.lane.b32.xlu0 %v970, 24
      %v975 = vpop.permute.xlu0 %974
      %976 = vrot.lane.b32.xlu0 %v971, 24
      %v977 = vpop.permute.xlu0 %976
      %980 = vst.msk [vmem:[#allocation2 + $0x70] sm:$0xff] %vm945, %v975
      %981 = vst.msk [vmem:[#allocation2 + $0x78] sm:$0xff] %vm945, %v977
      %v982 = vld [vmem:[%s884 + $0x1] sm:$0xff]
      %v983 = vld [vmem:[%s884 + $0x9] sm:$0xff]
      %v984 = vld [vmem:[%s884 + $0x19] sm:$0xff]
      %v985 = vld [vmem:[%s884 + $0x21] sm:$0xff]
      %v986 = vld [vmem:[%s884 + $0x31] sm:$0xff]
      %v987 = vld [vmem:[%s884 + $0x39] sm:$0xff]
      %v988 = vld [vmem:[%s884 + $0x49] sm:$0xff]
      %v989 = vld [vmem:[%s884 + $0x51] sm:$0xff]
      %v990 = vld [vmem:[%s884 + $0x61] sm:$0xff]
      %v991 = vld [vmem:[%s884 + $0x69] sm:$0xff]
      %v992 = vld [vmem:[%s884 + $0x79] sm:$0xff]
      %v993 = vld [vmem:[%s884 + $0x81] sm:$0xff]
      %1006 = vrot.lane.b32.xlu0 %v982, 28
      %v1007 = vpop.permute.xlu0 %1006
      %1008 = vrot.lane.b32.xlu0 %v983, 28
      %v1009 = vpop.permute.xlu0 %1008
      %1010 = vrot.lane.b32.xlu0 %v984, 28
      %v1011 = vpop.permute.xlu0 %1010
      %1012 = vrot.lane.b32.xlu0 %v985, 28
      %v1013 = vpop.permute.xlu0 %1012
      %1014 = vrot.lane.b32.xlu0 %v986, 28
      %v1015 = vpop.permute.xlu0 %1014
      %1016 = vrot.lane.b32.xlu0 %v987, 28
      %v1017 = vpop.permute.xlu0 %1016
      %1018 = vrot.lane.b32.xlu0 %v988, 28
      %v1019 = vpop.permute.xlu0 %1018
      %1020 = vrot.lane.b32.xlu0 %v989, 28
      %v1021 = vpop.permute.xlu0 %1020
      %1022 = vrot.lane.b32.xlu0 %v990, 28
      %v1023 = vpop.permute.xlu0 %1022
      %1024 = vrot.lane.b32.xlu0 %v991, 28
      %v1025 = vpop.permute.xlu0 %1024
      %1026 = vrot.lane.b32.xlu0 %v992, 28
      %v1027 = vpop.permute.xlu0 %1026
      %1028 = vrot.lane.b32.xlu0 %v993, 28
      %v1029 = vpop.permute.xlu0 %1028
      %vm1042 = vcmask 261344
      %1043 = vst.msk [vmem:[#allocation2] sm:$0xff] %vm1042, %v1007
      %1044 = vst.msk [vmem:[#allocation2 + $0x8] sm:$0xff] %vm1042, %v1009
      %1045 = vst.msk [vmem:[#allocation2 + $0x10] sm:$0xff] %vm1042, %v1011
      %1046 = vst.msk [vmem:[#allocation2 + $0x18] sm:$0xff] %vm1042, %v1013
      %1047 = vst.msk [vmem:[#allocation2 + $0x20] sm:$0xff] %vm1042, %v1015
      %1048 = vst.msk [vmem:[#allocation2 + $0x28] sm:$0xff] %vm1042, %v1017
      %1049 = vst.msk [vmem:[#allocation2 + $0x30] sm:$0xff] %vm1042, %v1019
      %1050 = vst.msk [vmem:[#allocation2 + $0x38] sm:$0xff] %vm1042, %v1021
      %1051 = vst.msk [vmem:[#allocation2 + $0x40] sm:$0xff] %vm1042, %v1023
      %1052 = vst.msk [vmem:[#allocation2 + $0x48] sm:$0xff] %vm1042, %v1025
      %1053 = vst.msk [vmem:[#allocation2 + $0x50] sm:$0xff] %vm1042, %v1027
      %1054 = vst.msk [vmem:[#allocation2 + $0x58] sm:$0xff] %vm1042, %v1029
      %v1055 = vld [vmem:[%s339 + $0x1] sm:$0xff]
      %v1056 = vld [vmem:[%s339 + $0x9] sm:$0xff]
      %1059 = vrot.lane.b32.xlu0 %v1055, 28
      %v1060 = vpop.permute.xlu0 %1059
      %1061 = vrot.lane.b32.xlu0 %v1056, 28
      %v1062 = vpop.permute.xlu0 %1061
      %1065 = vst.msk [vmem:[#allocation2 + $0x60] sm:$0xff] %vm1042, %v1060
      %1066 = vst.msk [vmem:[#allocation2 + $0x68] sm:$0xff] %vm1042, %v1062
      %v1067 = vld [vmem:[%s353 + $0x1] sm:$0xff]
      %v1068 = vld [vmem:[%s353 + $0x9] sm:$0xff]
      %1071 = vrot.lane.b32.xlu0 %v1067, 28
      %v1072 = vpop.permute.xlu0 %1071
      %1073 = vrot.lane.b32.xlu0 %v1068, 28
      %v1074 = vpop.permute.xlu0 %1073
      %1077 = vst.msk [vmem:[#allocation2 + $0x70] sm:$0xff] %vm1042, %v1072
      %1078 = vst.msk [vmem:[#allocation2 + $0x78] sm:$0xff] %vm1042, %v1074
      %v1079 = vld [vmem:[%s884 + $0x2] sm:$0xff]
      %v1080 = vld [vmem:[%s884 + $0xa] sm:$0xff]
      %v1081 = vld [vmem:[%s884 + $0x1a] sm:$0xff]
      %v1082 = vld [vmem:[%s884 + $0x22] sm:$0xff]
      %v1083 = vld [vmem:[%s884 + $0x32] sm:$0xff]
      %v1084 = vld [vmem:[%s884 + $0x3a] sm:$0xff]
      %v1085 = vld [vmem:[%s884 + $0x4a] sm:$0xff]
      %v1086 = vld [vmem:[%s884 + $0x52] sm:$0xff]
      %v1087 = vld [vmem:[%s884 + $0x62] sm:$0xff]
      %v1088 = vld [vmem:[%s884 + $0x6a] sm:$0xff]
      %v1089 = vld [vmem:[%s884 + $0x7a] sm:$0xff]
      %v1090 = vld [vmem:[%s884 + $0x82] sm:$0xff]
      %1103 = vrot.lane.b32.xlu0 %v1079, 32
      %v1104 = vpop.permute.xlu0 %1103
      %1105 = vrot.lane.b32.xlu0 %v1080, 32
      %v1106 = vpop.permute.xlu0 %1105
      %1107 = vrot.lane.b32.xlu0 %v1081, 32
      %v1108 = vpop.permute.xlu0 %1107
      %1109 = vrot.lane.b32.xlu0 %v1082, 32
      %v1110 = vpop.permute.xlu0 %1109
      %1111 = vrot.lane.b32.xlu0 %v1083, 32
      %v1112 = vpop.permute.xlu0 %1111
      %1113 = vrot.lane.b32.xlu0 %v1084, 32
      %v1114 = vpop.permute.xlu0 %1113
      %1115 = vrot.lane.b32.xlu0 %v1085, 32
      %v1116 = vpop.permute.xlu0 %1115
      %1117 = vrot.lane.b32.xlu0 %v1086, 32
      %v1118 = vpop.permute.xlu0 %1117
      %1119 = vrot.lane.b32.xlu0 %v1087, 32
      %v1120 = vpop.permute.xlu0 %1119
      %1121 = vrot.lane.b32.xlu0 %v1088, 32
      %v1122 = vpop.permute.xlu0 %1121
      %1123 = vrot.lane.b32.xlu0 %v1089, 32
      %v1124 = vpop.permute.xlu0 %1123
      %1125 = vrot.lane.b32.xlu0 %v1090, 32
      %v1126 = vpop.permute.xlu0 %1125
      %vm1139 = vcmask 294144
      %1140 = vst.msk [vmem:[#allocation2] sm:$0xff] %vm1139, %v1104
      %1141 = vst.msk [vmem:[#allocation2 + $0x8] sm:$0xff] %vm1139, %v1106
      %1142 = vst.msk [vmem:[#allocation2 + $0x10] sm:$0xff] %vm1139, %v1108
      %1143 = vst.msk [vmem:[#allocation2 + $0x18] sm:$0xff] %vm1139, %v1110
      %1144 = vst.msk [vmem:[#allocation2 + $0x20] sm:$0xff] %vm1139, %v1112
      %1145 = vst.msk [vmem:[#allocation2 + $0x28] sm:$0xff] %vm1139, %v1114
      %1146 = vst.msk [vmem:[#allocation2 + $0x30] sm:$0xff] %vm1139, %v1116
      %1147 = vst.msk [vmem:[#allocation2 + $0x38] sm:$0xff] %vm1139, %v1118
      %1148 = vst.msk [vmem:[#allocation2 + $0x40] sm:$0xff] %vm1139, %v1120
      %1149 = vst.msk [vmem:[#allocation2 + $0x48] sm:$0xff] %vm1139, %v1122
      %1150 = vst.msk [vmem:[#allocation2 + $0x50] sm:$0xff] %vm1139, %v1124
      %1151 = vst.msk [vmem:[#allocation2 + $0x58] sm:$0xff] %vm1139, %v1126
      %v1152 = vld [vmem:[%s339 + $0x2] sm:$0xff]
      %v1153 = vld [vmem:[%s339 + $0xa] sm:$0xff]
      %1156 = vrot.lane.b32.xlu0 %v1152, 32
      %v1157 = vpop.permute.xlu0 %1156
      %1158 = vrot.lane.b32.xlu0 %v1153, 32
      %v1159 = vpop.permute.xlu0 %1158
      %1162 = vst.msk [vmem:[#allocation2 + $0x60] sm:$0xff] %vm1139, %v1157
      %1163 = vst.msk [vmem:[#allocation2 + $0x68] sm:$0xff] %vm1139, %v1159
      %v1164 = vld [vmem:[%s353 + $0x2] sm:$0xff]
      %v1165 = vld [vmem:[%s353 + $0xa] sm:$0xff]
      %1168 = vrot.lane.b32.xlu0 %v1164, 32
      %v1169 = vpop.permute.xlu0 %1168
      %1170 = vrot.lane.b32.xlu0 %v1165, 32
      %v1171 = vpop.permute.xlu0 %1170
      %1174 = vst.msk [vmem:[#allocation2 + $0x70] sm:$0xff] %vm1139, %v1169
      %1175 = vst.msk [vmem:[#allocation2 + $0x78] sm:$0xff] %vm1139, %v1171
      %v1176 = vld [vmem:[#allocation2] sm:$0xff]
      %v1177 = vld [vmem:[#allocation2 + $0x8] sm:$0xff]
      %v1178 = vld [vmem:[#allocation2 + $0x10] sm:$0xff]
      %v1179 = vld [vmem:[#allocation2 + $0x18] sm:$0xff]
      %v1180 = vld [vmem:[#allocation2 + $0x20] sm:$0xff]
      %v1181 = vld [vmem:[#allocation2 + $0x28] sm:$0xff]
      %v1182 = vld [vmem:[#allocation2 + $0x30] sm:$0xff]
      %v1183 = vld [vmem:[#allocation2 + $0x38] sm:$0xff]
      %v1184 = vld [vmem:[#allocation2 + $0x40] sm:$0xff]
      %v1185 = vld [vmem:[#allocation2 + $0x48] sm:$0xff]
      %v1186 = vld [vmem:[#allocation2 + $0x50] sm:$0xff]
      %v1187 = vld [vmem:[#allocation2 + $0x58] sm:$0xff]
      %v1188 = vld [vmem:[#allocation2 + $0x60] sm:$0xff]
      %v1189 = vld [vmem:[#allocation2 + $0x68] sm:$0xff]
      %v1190 = vld [vmem:[#allocation2 + $0x70] sm:$0xff]
      %v1191 = vld [vmem:[#allocation2 + $0x78] sm:$0xff]
      %v1192 = vld [vmem:[%s3] sm:$0xff]
      %v1193 = vld [vmem:[%s3 + $0x8] sm:$0xff]
      %v1194 = vld [vmem:[%s3 + $0x10] sm:$0xff]
      %v1195 = vld [vmem:[%s3 + $0x18] sm:$0xff]
      %v1196 = vld [vmem:[%s3 + $0x20] sm:$0xf]
      %vm1197 = vcmask 293888
      %v1199 = vsel %vm1197, %v1176, 0
      %v1202 = vsel %vm1197, %v1177, 0
      %v1205 = vsel %vm1197, %v1178, 0
      %v1208 = vsel %vm1197, %v1179, 0
      %v1211 = vsel %vm1197, %v1180, 0
      %v1214 = vsel %vm1197, %v1181, 0
      %v1217 = vsel %vm1197, %v1182, 0
      %v1220 = vsel %vm1197, %v1183, 0
      %v1223 = vsel %vm1197, %v1184, 0
      %v1226 = vsel %vm1197, %v1185, 0
      %v1229 = vsel %vm1197, %v1186, 0
      %v1232 = vsel %vm1197, %v1187, 0
      %v1235 = vsel %vm1197, %v1188, 0
      %v1238 = vsel %vm1197, %v1189, 0
      %v1241 = vsel %vm1197, %v1190, 0
      %v1244 = vsel %vm1197, %v1191, 0
      %vm1246 = vcmask 1043456
      %v1248 = vsel %vm1246, %v1196, 0
      %1250 = vmatprep.subr.mxu0 0.0
      %1251 = vmatpush1.msra.mxu0 0.0
      %1252 = vmatprep.subr.mxu0 0.0
      %1253 = vmatpush1.msra.mxu0 0.0
      %1254 = vmatprep.subr.mxu0 0.0
      %1255 = vmatpush1.msra.mxu0 0.0
      %1256 = vmatprep.subr.mxu0 0.0
      %1257 = vmatpush1.msra.mxu0 0.0
      %1258 = vmatprep.subr.mxu0 0.0
      %1259 = vmatpush1.msra.mxu0 0.0
      %1260 = vmatprep.subr.mxu0 0.0
      %1261 = vmatpush1.msra.mxu0 0.0
      %1262 = vmatprep.subr.mxu0 0.0
      %1263 = vmatpush1.msra.mxu0 0.0
      %1264 = vmatprep.subr.mxu0 0.0
      %1265 = vmatpush1.msra.mxu0 0.0
      %1266 = vmatprep.subr.mxu0 0.0
      %1267 = vmatpush1.msra.mxu0 0.0
      %1268 = vmatprep.subr.mxu0 0.0
      %1269 = vmatpush1.msra.mxu0 0.0
      %1270 = vmatprep.subr.mxu0 0.0
      %1271 = vmatpush1.msra.mxu0 0.0
      %1272 = vmatprep.subr.mxu0 0.0
      %1273 = vmatpush1.msra.mxu0 %v1248
      %1274 = vmatprep.subr.mxu0 0.0
      %1275 = vmatpush1.msra.mxu0 %v1195
      %1276 = vmatprep.subr.mxu0 0.0
      %1277 = vmatpush1.msra.mxu0 %v1194
      %1278 = vmatprep.subr.mxu0 0.0
      %1279 = vmatpush1.msra.mxu0 %v1193
      %1280 = vmatprep.subr.mxu0 0.0
      %1281 = vmatpush1.msra.mxu0 %v1192
      %1282 = vmatprep.subr.mxu0 0.0
      %1283 = vmatpush2.msra.mxu0 0.0
      %1284 = vmatprep.subr.mxu0 0.0
      %1285 = vmatpush2.msra.mxu0 0.0
      %1286 = vmatprep.subr.mxu0 0.0
      %1287 = vmatpush2.msra.mxu0 0.0
      %1288 = vmatprep.subr.mxu0 0.0
      %1289 = vmatpush2.msra.mxu0 0.0
      %1290 = vmatprep.subr.mxu0 0.0
      %1291 = vmatpush2.msra.mxu0 0.0
      %1292 = vmatprep.subr.mxu0 0.0
      %1293 = vmatpush2.msra.mxu0 0.0
      %1294 = vmatprep.subr.mxu0 0.0
      %1295 = vmatpush2.msra.mxu0 0.0
      %1296 = vmatprep.subr.mxu0 0.0
      %1297 = vmatpush2.msra.mxu0 0.0
      %1298 = vmatprep.subr.mxu0 0.0
      %1299 = vmatpush2.msra.mxu0 0.0
      %1300 = vmatprep.subr.mxu0 0.0
      %1301 = vmatpush2.msra.mxu0 0.0
      %1302 = vmatprep.subr.mxu0 0.0
      %1303 = vmatpush2.msra.mxu0 0.0
      %1304 = vmatprep.subr.mxu0 0.0
      %1305 = vmatpush2.msra.mxu0 0.0
      %1306 = vmatprep.subr.mxu0 0.0
      %1307 = vmatpush2.msra.mxu0 0.0
      %1308 = vmatprep.subr.mxu0 0.0
      %1309 = vmatpush2.msra.mxu0 0.0
      %1310 = vmatprep.subr.mxu0 0.0
      %1311 = vmatpush2.msra.mxu0 0.0
      %1312 = vmatprep.subr.mxu0 0.0
      %1313 = vmatpush2.msra.mxu0 0.0
      %1314 = vmatprep.mubr.f32.mxu0 0.0
      %1315 = vmatmul.mubr.f32.gmra.mxu0 %v1199
      %v1316 = vpop.f32.mrf.mxu0
      %v1317 = vadd.f32 0.0, %v1316
      %v1318 = vpop.f32.mrf.mxu0
      %1319 = vmatprep.mubr.f32.mxu0 0.0
      %1320 = vmatmul.mubr.f32.gmra.mxu0 %v1202
      %v1321 = vpop.f32.mrf.mxu0
      %v1322 = vadd.f32 0.0, %v1321
      %v1323 = vpop.f32.mrf.mxu0
      %1324 = vmatprep.mubr.f32.mxu0 0.0
      %1325 = vmatmul.mubr.f32.gmra.mxu0 %v1205
      %v1326 = vpop.f32.mrf.mxu0
      %v1327 = vadd.f32 0.0, %v1326
      %v1328 = vpop.f32.mrf.mxu0
      %1329 = vmatprep.mubr.f32.mxu0 0.0
      %1330 = vmatmul.mubr.f32.gmra.mxu0 %v1208
      %v1331 = vpop.f32.mrf.mxu0
      %v1332 = vadd.f32 0.0, %v1331
      %v1333 = vpop.f32.mrf.mxu0
      %1334 = vmatprep.mubr.f32.mxu0 0.0
      %1335 = vmatmul.mubr.f32.gmra.mxu0 %v1211
      %v1336 = vpop.f32.mrf.mxu0
      %v1337 = vadd.f32 0.0, %v1336
      %v1338 = vpop.f32.mrf.mxu0
      %1339 = vmatprep.mubr.f32.mxu0 0.0
      %1340 = vmatmul.mubr.f32.gmra.mxu0 %v1214
      %v1341 = vpop.f32.mrf.mxu0
      %v1342 = vadd.f32 0.0, %v1341
      %v1343 = vpop.f32.mrf.mxu0
      %1344 = vmatprep.mubr.f32.mxu0 0.0
      %1345 = vmatmul.mubr.f32.gmra.mxu0 %v1217
      %v1346 = vpop.f32.mrf.mxu0
      %v1347 = vadd.f32 0.0, %v1346
      %v1348 = vpop.f32.mrf.mxu0
      %1349 = vmatprep.mubr.f32.mxu0 0.0
      %1350 = vmatmul.mubr.f32.gmra.mxu0 %v1220
      %v1351 = vpop.f32.mrf.mxu0
      %v1352 = vadd.f32 0.0, %v1351
      %v1353 = vpop.f32.mrf.mxu0
      %1354 = vmatprep.mubr.f32.mxu0 0.0
      %1355 = vmatmul.mubr.f32.gmra.mxu0 %v1223
      %v1356 = vpop.f32.mrf.mxu0
      %v1357 = vadd.f32 0.0, %v1356
      %v1358 = vpop.f32.mrf.mxu0
      %1359 = vmatprep.mubr.f32.mxu0 0.0
      %1360 = vmatmul.mubr.f32.gmra.mxu0 %v1226
      %v1361 = vpop.f32.mrf.mxu0
      %v1362 = vadd.f32 0.0, %v1361
      %v1363 = vpop.f32.mrf.mxu0
      %1364 = vmatprep.mubr.f32.mxu0 0.0
      %1365 = vmatmul.mubr.f32.gmra.mxu0 %v1229
      %v1366 = vpop.f32.mrf.mxu0
      %v1367 = vadd.f32 0.0, %v1366
      %v1368 = vpop.f32.mrf.mxu0
      %1369 = vmatprep.mubr.f32.mxu0 0.0
      %1370 = vmatmul.mubr.f32.gmra.mxu0 %v1232
      %v1371 = vpop.f32.mrf.mxu0
      %v1372 = vadd.f32 0.0, %v1371
      %v1373 = vpop.f32.mrf.mxu0
      %1374 = vmatprep.mubr.f32.mxu0 0.0
      %1375 = vmatmul.mubr.f32.gmra.mxu0 %v1235
      %v1376 = vpop.f32.mrf.mxu0
      %v1377 = vadd.f32 0.0, %v1376
      %v1378 = vpop.f32.mrf.mxu0
      %1379 = vmatprep.mubr.f32.mxu0 0.0
      %1380 = vmatmul.mubr.f32.gmra.mxu0 %v1238
      %v1381 = vpop.f32.mrf.mxu0
      %v1382 = vadd.f32 0.0, %v1381
      %v1383 = vpop.f32.mrf.mxu0
      %1384 = vmatprep.mubr.f32.mxu0 0.0
      %1385 = vmatmul.mubr.f32.gmra.mxu0 %v1241
      %v1386 = vpop.f32.mrf.mxu0
      %v1387 = vadd.f32 0.0, %v1386
      %v1388 = vpop.f32.mrf.mxu0
      %1389 = vmatprep.mubr.f32.mxu0 0.0
      %1390 = vmatmul.mubr.f32.gmra.mxu0 %v1244
      %v1391 = vpop.f32.mrf.mxu0
      %v1392 = vadd.f32 0.0, %v1391
      %v1393 = vpop.f32.mrf.mxu0
      %1394 = vdwg.mxu0
      %vm1395 = vcmask 261120
      %v1396 = vsel %vm1395, %v1317, 0.0
      %v1397 = vsel %vm1395, %v1322, 0.0
      %v1398 = vadd.f32 %v1396, %v1397
      %v1399 = vsel %vm1395, %v1327, 0.0
      %v1400 = vadd.f32 %v1398, %v1399
      %v1401 = vsel %vm1395, %v1332, 0.0
      %v1402 = vadd.f32 %v1400, %v1401
      %v1403 = vsel %vm1395, %v1337, 0.0
      %v1404 = vadd.f32 %v1402, %v1403
      %v1405 = vsel %vm1395, %v1342, 0.0
      %v1406 = vadd.f32 %v1404, %v1405
      %v1407 = vsel %vm1395, %v1347, 0.0
      %v1408 = vadd.f32 %v1406, %v1407
      %v1409 = vsel %vm1395, %v1352, 0.0
      %v1410 = vadd.f32 %v1408, %v1409
      %v1411 = vsel %vm1395, %v1357, 0.0
      %v1412 = vadd.f32 %v1410, %v1411
      %v1413 = vsel %vm1395, %v1362, 0.0
      %v1414 = vadd.f32 %v1412, %v1413
      %v1415 = vsel %vm1395, %v1367, 0.0
      %v1416 = vadd.f32 %v1414, %v1415
      %v1417 = vsel %vm1395, %v1372, 0.0
      %v1418 = vadd.f32 %v1416, %v1417
      %v1419 = vsel %vm1395, %v1377, 0.0
      %v1420 = vadd.f32 %v1418, %v1419
      %v1421 = vsel %vm1395, %v1382, 0.0
      %v1422 = vadd.f32 %v1420, %v1421
      %v1423 = vsel %vm1395, %v1387, 0.0
      %v1424 = vadd.f32 %v1422, %v1423
      %v1425 = vsel %vm1395, %v1392, 0.0
      %v1426 = vadd.f32 %v1424, %v1425
      %v1427 = vrot.slane %v1426, 4
      %v1428 = vadd.f32 %v1426, %v1427
      %v1429 = vrot.slane %v1428, 2
      %v1430 = vadd.f32 %v1428, %v1429
      %v1431 = vrot.slane %v1430, 1
      %v1432 = vadd.f32 %v1430, %v1431
      %v1433 = vmul.f32 %v1432, 0.0078125
      %v1434 = vsub.f32 %v1317, %v1433
      %v1435 = vsub.f32 %v1322, %v1433
      %v1436 = vsub.f32 %v1327, %v1433
      %v1437 = vsub.f32 %v1332, %v1433
      %v1438 = vsub.f32 %v1337, %v1433
      %v1439 = vsub.f32 %v1342, %v1433
      %v1440 = vsub.f32 %v1347, %v1433
      %v1441 = vsub.f32 %v1352, %v1433
      %v1442 = vsub.f32 %v1357, %v1433
      %v1443 = vsub.f32 %v1362, %v1433
      %v1444 = vsub.f32 %v1367, %v1433
      %v1445 = vsub.f32 %v1372, %v1433
      %v1446 = vsub.f32 %v1377, %v1433
      %v1447 = vsub.f32 %v1382, %v1433
      %v1448 = vsub.f32 %v1387, %v1433
      %v1449 = vsub.f32 %v1392, %v1433
      %vm1450 = vcmask 253952
      %1451 = vst.msk [vmem:[%s362] sm:$0x1] %vm1450, %v1432
      %v1452 = vmul.f32 %v1434, %v1434
      %v1453 = vmul.f32 %v1435, %v1435
      %v1454 = vmul.f32 %v1436, %v1436
      %v1455 = vmul.f32 %v1437, %v1437
      %v1456 = vmul.f32 %v1438, %v1438
      %v1457 = vmul.f32 %v1439, %v1439
      %v1458 = vmul.f32 %v1440, %v1440
      %v1459 = vmul.f32 %v1441, %v1441
      %v1460 = vmul.f32 %v1442, %v1442
      %v1461 = vmul.f32 %v1443, %v1443
      %v1462 = vmul.f32 %v1444, %v1444
      %v1463 = vmul.f32 %v1445, %v1445
      %v1464 = vmul.f32 %v1446, %v1446
      %v1465 = vmul.f32 %v1447, %v1447
      %v1466 = vmul.f32 %v1448, %v1448
      %v1467 = vmul.f32 %v1449, %v1449
      %v1468 = vsel %vm1395, %v1452, 0.0
      %v1469 = vsel %vm1395, %v1453, 0.0
      %v1470 = vadd.f32 %v1468, %v1469
      %v1471 = vsel %vm1395, %v1454, 0.0
      %v1472 = vadd.f32 %v1470, %v1471
      %v1473 = vsel %vm1395, %v1455, 0.0
      %v1474 = vadd.f32 %v1472, %v1473
      %v1475 = vsel %vm1395, %v1456, 0.0
      %v1476 = vadd.f32 %v1474, %v1475
      %v1477 = vsel %vm1395, %v1457, 0.0
      %v1478 = vadd.f32 %v1476, %v1477
      %v1479 = vsel %vm1395, %v1458, 0.0
      %v1480 = vadd.f32 %v1478, %v1479
      %v1481 = vsel %vm1395, %v1459, 0.0
      %v1482 = vadd.f32 %v1480, %v1481
      %v1483 = vsel %vm1395, %v1460, 0.0
      %v1484 = vadd.f32 %v1482, %v1483
      %v1485 = vsel %vm1395, %v1461, 0.0
      %v1486 = vadd.f32 %v1484, %v1485
      %v1487 = vsel %vm1395, %v1462, 0.0
      %v1488 = vadd.f32 %v1486, %v1487
      %v1489 = vsel %vm1395, %v1463, 0.0
      %v1490 = vadd.f32 %v1488, %v1489
      %v1491 = vsel %vm1395, %v1464, 0.0
      %v1492 = vadd.f32 %v1490, %v1491
      %v1493 = vsel %vm1395, %v1465, 0.0
      %v1494 = vadd.f32 %v1492, %v1493
      %v1495 = vsel %vm1395, %v1466, 0.0
      %v1496 = vadd.f32 %v1494, %v1495
      %v1497 = vsel %vm1395, %v1467, 0.0
      %v1498 = vadd.f32 %v1496, %v1497
      %v1499 = vrot.slane %v1498, 4
      %v1500 = vadd.f32 %v1498, %v1499
      %v1501 = vrot.slane %v1500, 2
      %v1502 = vadd.f32 %v1500, %v1501
      %v1503 = vrot.slane %v1502, 1
      %v1504 = vadd.f32 %v1502, %v1503
      %1505 = vst.msk [vmem:[%s362 + $0x1] sm:$0x1] %vm1450, %v1504
      %s1506 = smul.u32 %s19, 2
      %s1507 = sadd.s32 %s1506, %s20
      %p1508 = scmp.lt.s32.totalorder %s1507, 3
      %s1509 = scalar_select %p1508, %s1507, 3
      %s1510 = smul.addr %s1509, 2
      %s1511 = scalar_lea.vmem %s4, %s1510
      // Predicated region
      $region37: #{conv_up_sample.2} parent=35 // pred_check
        %p1512 = pneg %p164
      $region38: #{conv_up_sample.2} parent=35 // pred_check_branch
        %1514 = sbr.rel (%p1512) target = $region40
      $region39: #{conv_up_sample.2} parent=35 // pred_region
        %s1515 = smul.u32 %s19, 2
        %s1516 = sadd.s32 %s1515, %s20
      $region40: #{conv_up_sample.2} parent=35 // pred_fallthru
        _
    $region36: #{conv_up_sample.2} parent=5 // pred_fallthru
      _
    %p1517 = scmp.le.s32.totalorder 2, %s10
    // Predicated region
    $region41: #{conv_up_sample.2} parent=5 // pred_check
      %p1518 = pneg %p1517
    $region42: #{conv_up_sample.2} parent=5 // pred_check_branch
      %1520 = sbr.rel (%p1518) target = $region44
    $region43: #{conv_up_sample.2} parent=5 // pred_region
      %s1521 = ssub.s32 %s10, 2
      // Predicated region
      $region45: #{conv_up_sample.2} parent=43 // pred_check
        %p1522 = pneg %p170
      $region46: #{conv_up_sample.2} parent=43 // pred_check_branch
        %1524 = sbr.rel (%p1522) target = $region48
      $region47: #{conv_up_sample.2} parent=43 // pred_region
        %s1525 = smul.u32 %s21, 2
        %s1526 = sadd.s32 %s1525, %s22
        %p1527 = scmp.lt.s32.totalorder %s1526, 3
        %s1528 = scalar_select %p1527, %s1526, 3
        %s1529 = smul.addr %s1528, 2
        %s1530 = scalar_lea.vmem %s4, %s1529
      $region48: #{conv_up_sample.2} parent=43 // pred_fallthru
        _
    $region44: #{conv_up_sample.2} parent=5 // pred_fallthru
      _
  $region6: #{conv_up_sample.2} parent=0 // loop_footer
    %s14 = sadd.s32 1, %s10
  $region7: #{conv_up_sample.2} parent=0 // loop_footer_branch
    %9 = sbr.rel target = $region3
  $region8: #{conv_up_sample.2} parent=0 // loop_exit
    _

// kernel: conv_up_sample.3
$region0: #{conv_up_sample.3}
  #allocation0 [shape = 'u32[]', space=smem, size = 0x4, offset = 0x4, fixed_abs, tag = 'smem constant byte address 0x4 - core index']
  #allocation1 [shape = 'u32[144,128]{1,0:T(1,128)}', space=vmem, size = 0x12000, scoped, tag = 'internal scratch']
  #allocation2 [shape = 'f32[128,36]{1,0:T(8,128)}', space=vmem, size = 0x10000, scoped, tag = 'scratch operand']
  %s0 = inlined_call_operand.vmem [shape: f32[2,18,18,4], index: 0, kind: input, shape index: {}, may-alias: {0,1,2}]
  %s1 = inlined_call_operand.vmem [shape: f32[2,18,18,4], index: 1, kind: input, shape index: {}, may-alias: {0,1,2}]
  %s2 = inlined_call_operand.vmem [shape: f32[2,18,18,4], index: 2, kind: input, shape index: {}, may-alias: {0,1,2}]
  %s3 = inlined_call_operand.vmem [shape: f32[36,32], index: 3, kind: input, shape index: {}]
  %s4 = inlined_call_operand.vmem [shape: f32[1,32], index: 4, kind: input, shape index: {}]
  %s5 = inlined_call_operand.vmem [shape: f32[1,32], index: 5, kind: input, shape index: {}]
  %s6 = inlined_call_operand.vmem [shape: f32[512,32], index: 6, kind: output, shape index: {}]
  %s7 = sld [smem:[#allocation0]]
  $region57: #{conv_up_sample.3} parent=0
    _
  %s9 = ssub.s32 1, %s7
  %s10 = scalar_select 0, %s9, %s7
  loop: start=0, step=1, limit=6
  $region2: #{conv_up_sample.3} parent=0 // loop_pre_header
    _
  $region3: #{conv_up_sample.3} parent=0 // loop_header
    %s12 = sphi 0, %s16
    %p13 = scmp.ge.s32.totalorder %s12, 6
    %s19 = sphi 0, %s31
    %s20 = sphi 0, %s27
    %s21 = sphi 0, %s19
    %s22 = sphi 0, %s20
    %s23 = sphi 0, %s21
    %s24 = sphi 0, %s22
    %s36 = sphi 0, %s38
    %s39 = sphi 0, %s36
    %s40 = sphi 0, %s39
    %s56 = sphi 0, %s40
    %s68 = sphi 0, %s70
    %s71 = sphi 0, %s68
    %s72 = sphi 0, %s71
    %s88 = sphi 0, %s72
    %s102 = sphi 0, %s104
    %s105 = sphi 0, %s102
    %s106 = sphi 0, %s105
    %s122 = sphi 0, %s106
    %s126 = sphi 0, %s126
    %s128 = sphi 0, %s126
    %s129 = sphi 0, %s128
    %s143 = sphi 0, %s129
    %s147 = sphi 0, %s147
    %s149 = sphi 0, %s147
    %s150 = sphi 0, %s149
    %s164 = sphi 0, %s150
    %s168 = sphi 0, %s168
    %s170 = sphi 0, %s168
    %s171 = sphi 0, %s170
    %s185 = sphi 0, %s171
    %s195 = sphi 0, %s197
    %s198 = sphi 0, %s195
    %s199 = sphi 0, %s198
    %s215 = sphi 0, %s199
  $region4: #{conv_up_sample.3} parent=0 // loop_header_branch
    %15 = sbr.rel (%p13) target = $region8
  $region5: #{conv_up_sample.3} parent=0 // loop_body
    %s17 = ssub.s32 %s12, 1
    %s18 = ssub.s32 %s12, 2
    %s25 = sadd.s32 1, %s20
    %p26 = scmp.ge.s32.totalorder %s25, 2
    %s27 = scalar_select %p26, 0, %s25
    %s28 = sadd.s32 1, %s19
    %s29 = scalar_select %p26, %s28, %s19
    %p30 = scmp.ge.s32.totalorder %s29, 2
    %s31 = scalar_select %p30, 0, %s29
    %s32 = ssub.s32 %s19, %s31
    %s33 = ssub.s32 %s20, %s27
    %s34 = sor.u32 %s32, %s33
    %p35 = scmp.eq.s32.totalorder %s34, 0
    %s37 = sadd.s32 %s36, 1
    %s38 = scalar_select %p35, %s36, %s37
    %p41 = pneg %p35
    %p42 = scmp.eq.s32.totalorder %s12, 3
    %p43 = por %p41, %p42
    %p44 = scmp.ne.s32.totalorder %s36, %s39
    %p45 = scmp.eq.s32.totalorder %s12, 0
    %p46 = por %p44, %p45
    %p47 = scmp.ne.s32.totalorder %s36, %s39
    %p48 = scmp.eq.s32.totalorder %s17, 3
    %p49 = por %p47, %p48
    %p50 = scmp.ne.s32.totalorder %s39, %s40
    %p51 = scmp.eq.s32.totalorder %s17, 0
    %p52 = por %p50, %p51
    %p53 = scmp.ne.s32.totalorder %s39, %s40
    %p54 = scmp.eq.s32.totalorder %s18, 3
    %p55 = por %p53, %p54
    %p57 = scmp.ne.s32.totalorder %s40, %s56
    %p58 = scmp.eq.s32.totalorder %s18, 0
    %p59 = por %p57, %p58
    %s60 = sadd.s32 %s20, 1
    %s61 = smul.u32 %s60, 8
    %s62 = sadd.s32 %s27, 1
    %s63 = smul.u32 %s62, 8
    %s64 = ssub.s32 %s19, %s31
    %s65 = ssub.s32 %s61, %s63
    %s66 = sor.u32 %s64, %s65
    %p67 = scmp.eq.s32.totalorder %s66, 0
    %s69 = sadd.s32 %s68, 1
    %s70 = scalar_select %p67, %s68, %s69
    %p73 = pneg %p67
    %p74 = scmp.eq.s32.totalorder %s12, 3
    %p75 = por %p73, %p74
    %p76 = scmp.ne.s32.totalorder %s68, %s71
    %p77 = scmp.eq.s32.totalorder %s12, 0
    %p78 = por %p76, %p77
    %p79 = scmp.ne.s32.totalorder %s68, %s71
    %p80 = scmp.eq.s32.totalorder %s17, 3
    %p81 = por %p79, %p80
    %p82 = scmp.ne.s32.totalorder %s71, %s72
    %p83 = scmp.eq.s32.totalorder %s17, 0
    %p84 = por %p82, %p83
    %p85 = scmp.ne.s32.totalorder %s71, %s72
    %p86 = scmp.eq.s32.totalorder %s18, 3
    %p87 = por %p85, %p86
    %p89 = scmp.ne.s32.totalorder %s72, %s88
    %p90 = scmp.eq.s32.totalorder %s18, 0
    %p91 = por %p89, %p90
    %s92 = sadd.s32 %s20, 1
    %s93 = smul.u32 %s92, 8
    %s94 = sadd.s32 %s93, 1
    %s95 = sadd.s32 %s27, 1
    %s96 = smul.u32 %s95, 8
    %s97 = sadd.s32 %s96, 1
    %s98 = ssub.s32 %s19, %s31
    %s99 = ssub.s32 %s94, %s97
    %s100 = sor.u32 %s98, %s99
    %p101 = scmp.eq.s32.totalorder %s100, 0
    %s103 = sadd.s32 %s102, 1
    %s104 = scalar_select %p101, %s102, %s103
    %p107 = pneg %p101
    %p108 = scmp.eq.s32.totalorder %s12, 3
    %p109 = por %p107, %p108
    %p110 = scmp.ne.s32.totalorder %s102, %s105
    %p111 = scmp.eq.s32.totalorder %s12, 0
    %p112 = por %p110, %p111
    %p113 = scmp.ne.s32.totalorder %s102, %s105
    %p114 = scmp.eq.s32.totalorder %s17, 3
    %p115 = por %p113, %p114
    %p116 = scmp.ne.s32.totalorder %s105, %s106
    %p117 = scmp.eq.s32.totalorder %s17, 0
    %p118 = por %p116, %p117
    %p119 = scmp.ne.s32.totalorder %s105, %s106
    %p120 = scmp.eq.s32.totalorder %s18, 3
    %p121 = por %p119, %p120
    %p123 = scmp.ne.s32.totalorder %s106, %s122
    %p124 = scmp.eq.s32.totalorder %s18, 0
    %p125 = por %p123, %p124
    %s127 = sadd.s32 %s126, 1
    %p130 = scmp.eq.s32.totalorder %s12, 3
    %p131 = scmp.ne.s32.totalorder %s126, %s128
    %p132 = scmp.eq.s32.totalorder %s12, 0
    %p133 = por %p131, %p132
    %p134 = scmp.ne.s32.totalorder %s126, %s128
    %p135 = scmp.eq.s32.totalorder %s17, 3
    %p136 = por %p134, %p135
    %p137 = scmp.ne.s32.totalorder %s128, %s129
    %p138 = scmp.eq.s32.totalorder %s17, 0
    %p139 = por %p137, %p138
    %p140 = scmp.ne.s32.totalorder %s128, %s129
    %p141 = scmp.eq.s32.totalorder %s18, 3
    %p142 = por %p140, %p141
    %p144 = scmp.ne.s32.totalorder %s129, %s143
    %p145 = scmp.eq.s32.totalorder %s18, 0
    %p146 = por %p144, %p145
    %s148 = sadd.s32 %s147, 1
    %p151 = scmp.eq.s32.totalorder %s12, 3
    %p152 = scmp.ne.s32.totalorder %s147, %s149
    %p153 = scmp.eq.s32.totalorder %s12, 0
    %p154 = por %p152, %p153
    %p155 = scmp.ne.s32.totalorder %s147, %s149
    %p156 = scmp.eq.s32.totalorder %s17, 3
    %p157 = por %p155, %p156
    %p158 = scmp.ne.s32.totalorder %s149, %s150
    %p159 = scmp.eq.s32.totalorder %s17, 0
    %p160 = por %p158, %p159
    %p161 = scmp.ne.s32.totalorder %s149, %s150
    %p162 = scmp.eq.s32.totalorder %s18, 3
    %p163 = por %p161, %p162
    %p165 = scmp.ne.s32.totalorder %s150, %s164
    %p166 = scmp.eq.s32.totalorder %s18, 0
    %p167 = por %p165, %p166
    %s169 = sadd.s32 %s168, 1
    %p172 = scmp.eq.s32.totalorder %s12, 3
    %p173 = scmp.ne.s32.totalorder %s168, %s170
    %p174 = scmp.eq.s32.totalorder %s12, 0
    %p175 = por %p173, %p174
    %p176 = scmp.ne.s32.totalorder %s168, %s170
    %p177 = scmp.eq.s32.totalorder %s17, 3
    %p178 = por %p176, %p177
    %p179 = scmp.ne.s32.totalorder %s170, %s171
    %p180 = scmp.eq.s32.totalorder %s17, 0
    %p181 = por %p179, %p180
    %p182 = scmp.ne.s32.totalorder %s170, %s171
    %p183 = scmp.eq.s32.totalorder %s18, 3
    %p184 = por %p182, %p183
    %p186 = scmp.ne.s32.totalorder %s171, %s185
    %p187 = scmp.eq.s32.totalorder %s18, 0
    %p188 = por %p186, %p187
    %s189 = smul.u32 %s19, 2
    %s190 = sadd.s32 %s189, %s20
    %s191 = smul.u32 %s31, 2
    %s192 = sadd.s32 %s191, %s27
    %s193 = ssub.s32 %s190, %s192
    %p194 = scmp.eq.s32.totalorder %s193, 0
    %s196 = sadd.s32 %s195, 1
    %s197 = scalar_select %p194, %s195, %s196
    %p200 = pneg %p194
    %p201 = scmp.eq.s32.totalorder %s12, 3
    %p202 = por %p200, %p201
    %p203 = scmp.ne.s32.totalorder %s195, %s198
    %p204 = scmp.eq.s32.totalorder %s12, 0
    %p205 = por %p203, %p204
    %p206 = scmp.ne.s32.totalorder %s195, %s198
    %p207 = scmp.eq.s32.totalorder %s17, 3
    %p208 = por %p206, %p207
    %p209 = scmp.ne.s32.totalorder %s198, %s199
    %p210 = scmp.eq.s32.totalorder %s17, 0
    %p211 = por %p209, %p210
    %p212 = scmp.ne.s32.totalorder %s198, %s199
    %p213 = scmp.eq.s32.totalorder %s18, 3
    %p214 = por %p212, %p213
    %p216 = scmp.ne.s32.totalorder %s199, %s215
    %p217 = scmp.eq.s32.totalorder %s18, 0
    %p218 = por %p216, %p217
    %p219 = scmp.le.s32.totalorder 1, %s12
    %p220 = scmp.lt.s32.totalorder %s12, 5
    %p221 = pnand %p219, %p220
    %p222 = pneg %p221
    // Predicated region
    $region9: #{conv_up_sample.3} parent=5 // pred_check
      _
    $region10: #{conv_up_sample.3} parent=5 // pred_check_branch
      %224 = sbr.rel (%p221) target = $region12
    $region11: #{conv_up_sample.3} parent=5 // pred_region
      %s225 = ssub.s32 %s12, 1
      // Predicated region
      $region13: #{conv_up_sample.3} parent=11 // pred_check
        %p226 = pneg %p139
      $region14: #{conv_up_sample.3} parent=11 // pred_check_branch
        %228 = sbr.rel (%p226) target = $region16
      $region15: #{conv_up_sample.3} parent=11 // pred_region
        _
      $region16: #{conv_up_sample.3} parent=11 // pred_fallthru
        _
      // Predicated region
      $region17: #{conv_up_sample.3} parent=11 // pred_check
        %p229 = pneg %p160
      $region18: #{conv_up_sample.3} parent=11 // pred_check_branch
        %231 = sbr.rel (%p229) target = $region20
      $region19: #{conv_up_sample.3} parent=11 // pred_region
        _
      $region20: #{conv_up_sample.3} parent=11 // pred_fallthru
        _
      // Predicated region
      $region21: #{conv_up_sample.3} parent=11 // pred_check
        %p232 = pneg %p181
      $region22: #{conv_up_sample.3} parent=11 // pred_check_branch
        %234 = sbr.rel (%p232) target = $region24
      $region23: #{conv_up_sample.3} parent=11 // pred_region
        _
      $region24: #{conv_up_sample.3} parent=11 // pred_fallthru
        _
    $region12: #{conv_up_sample.3} parent=5 // pred_fallthru
      _
    %p235 = scmp.lt.s32.totalorder %s12, 4
    // Predicated region
    $region25: #{conv_up_sample.3} parent=5 // pred_check
      %p236 = pneg %p235
    $region26: #{conv_up_sample.3} parent=5 // pred_check_branch
      %238 = sbr.rel (%p236) target = $region28
    $region27: #{conv_up_sample.3} parent=5 // pred_region
      // Predicated region
      $region29: #{conv_up_sample.3} parent=27 // pred_check
        %p239 = pneg %p46
      $region30: #{conv_up_sample.3} parent=27 // pred_check_branch
        %241 = sbr.rel (%p239) target = $region32
      $region31: #{conv_up_sample.3} parent=27 // pred_region
        %s242 = smul.u32 8, %s20
        %s243 = ssub.s32 18, %s242
        %p244 = scmp.lt.s32.totalorder %s243, 8
        %s245 = scalar_select %p244, %s243, 8
        %s246 = smul.u32 128, %s245
        %s247 = smul.u32 %s246, 3
        %p248 = scmp.lt.s32.totalorder %s19, 1
        %s249 = scalar_select %p248, %s19, 1
        %p250 = scmp.lt.s32.totalorder %s242, 17
        %s251 = scalar_select %p250, %s242, 17
        %s252 = smul.addr %s251, 3
        %s253 = smul.addr %s249, 54
        %s254 = sadd.s32 %s252, %s253
        %s255 = smul.addr %s254, 8
        %s256 = scalar_lea.vmem %s0, %s255
        %s257 = smul.u32 8, %s20
        %s258 = ssub.s32 18, %s257
        %p259 = scmp.lt.s32.totalorder %s258, 8
        %s260 = scalar_select %p259, %s258, 8
        %s261 = smul.u32 128, %s260
        %s262 = smul.u32 %s261, 3
      $region32: #{conv_up_sample.3} parent=27 // pred_fallthru
        _
      // Predicated region
      $region33: #{conv_up_sample.3} parent=27 // pred_check
        %p263 = pneg %p78
      $region34: #{conv_up_sample.3} parent=27 // pred_check_branch
        %265 = sbr.rel (%p263) target = $region36
      $region35: #{conv_up_sample.3} parent=27 // pred_region
        %s266 = sadd.s32 %s20, 1
        %s267 = smul.u32 %s266, 8
        %p268 = scmp.lt.s32.totalorder %s19, 1
        %s269 = scalar_select %p268, %s19, 1
        %p270 = scmp.lt.s32.totalorder %s267, 17
        %s271 = scalar_select %p270, %s267, 17
        %s272 = smul.addr %s271, 3
        %s273 = smul.addr %s269, 54
        %s274 = sadd.s32 %s272, %s273
        %s275 = smul.addr %s274, 8
        %s276 = scalar_lea.vmem %s1, %s275
        %s277 = sadd.s32 %s20, 1
        %s278 = smul.u32 %s277, 8
      $region36: #{conv_up_sample.3} parent=27 // pred_fallthru
        _
      // Predicated region
      $region37: #{conv_up_sample.3} parent=27 // pred_check
        %p279 = pneg %p112
      $region38: #{conv_up_sample.3} parent=27 // pred_check_branch
        %281 = sbr.rel (%p279) target = $region40
      $region39: #{conv_up_sample.3} parent=27 // pred_region
        %s282 = sadd.s32 %s20, 1
        %s283 = smul.u32 %s282, 8
        %s284 = sadd.s32 %s283, 1
        %p285 = scmp.lt.s32.totalorder %s19, 1
        %s286 = scalar_select %p285, %s19, 1
        %p287 = scmp.lt.s32.totalorder %s284, 17
        %s288 = scalar_select %p287, %s284, 17
        %s289 = smul.addr %s288, 3
        %s290 = smul.addr %s286, 54
        %s291 = sadd.s32 %s289, %s290
        %s292 = smul.addr %s291, 8
        %s293 = scalar_lea.vmem %s2, %s292
        %s294 = sadd.s32 %s20, 1
        %s295 = smul.u32 %s294, 8
        %s296 = sadd.s32 %s295, 1
      $region40: #{conv_up_sample.3} parent=27 // pred_fallthru
        _
    $region28: #{conv_up_sample.3} parent=5 // pred_fallthru
      _
    %p297 = scmp.le.s32.totalorder 1, %s12
    %p298 = scmp.lt.s32.totalorder %s12, 5
    %p299 = pnand %p297, %p298
    %p300 = pneg %p299
    // Predicated region
    $region41: #{conv_up_sample.3} parent=5 // pred_check
      _
    $region42: #{conv_up_sample.3} parent=5 // pred_check_branch
      %302 = sbr.rel (%p299) target = $region44
    $region43: #{conv_up_sample.3} parent=5 // pred_region
      %s303 = ssub.s32 %s12, 1
      %s304 = smul.u32 8, %s22
      %s305 = ssub.s32 18, %s304
      %p306 = scmp.lt.s32.totalorder %s305, 8
      %s307 = scalar_select %p306, %s305, 8
      %s308 = smul.u32 128, %s307
      %s309 = smul.u32 %s308, 3
      %p310 = scmp.lt.s32.totalorder %s21, 1
      %s311 = scalar_select %p310, %s21, 1
      %p312 = scmp.lt.s32.totalorder %s304, 17
      %s313 = scalar_select %p312, %s304, 17
      %s314 = smul.addr %s313, 3
      %s315 = smul.addr %s311, 54
      %s316 = sadd.s32 %s314, %s315
      %s317 = smul.addr %s316, 8
      %s318 = scalar_lea.vmem %s0, %s317
      %p319 = pneg %p52
      %p320 = pneg %p49
      %s321 = sadd.s32 %s22, 1
      %s322 = smul.u32 %s321, 8
      %p323 = scmp.lt.s32.totalorder %s21, 1
      %s324 = scalar_select %p323, %s21, 1
      %p325 = scmp.lt.s32.totalorder %s322, 17
      %s326 = scalar_select %p325, %s322, 17
      %s327 = smul.addr %s326, 3
      %s328 = smul.addr %s324, 54
      %s329 = sadd.s32 %s327, %s328
      %s330 = smul.addr %s329, 8
      %s331 = scalar_lea.vmem %s1, %s330
      %p332 = pneg %p84
      %p333 = pneg %p81
      %s334 = sadd.s32 %s22, 1
      %s335 = smul.u32 %s334, 8
      %s336 = sadd.s32 %s335, 1
      %p337 = scmp.lt.s32.totalorder %s21, 1
      %s338 = scalar_select %p337, %s21, 1
      %p339 = scmp.lt.s32.totalorder %s336, 17
      %s340 = scalar_select %p339, %s336, 17
      %s341 = smul.addr %s340, 3
      %s342 = smul.addr %s338, 54
      %s343 = sadd.s32 %s341, %s342
      %s344 = smul.addr %s343, 8
      %s345 = scalar_lea.vmem %s2, %s344
      %p346 = pneg %p118
      %p347 = pneg %p115
      %p348 = pneg %p139
      %p349 = pneg %p136
      %p350 = pneg %p160
      %p351 = pneg %p157
      %p352 = pneg %p181
      %p353 = pneg %p178
      %p354 = pneg %p211
      %p355 = pneg %p208
      %s356 = smul.u32 %s21, 2
      %s357 = sadd.s32 %s356, %s22
      %s358 = smul.u32 16, %s357
      %p359 = scmp.lt.s32.totalorder %s358, 63
      %s360 = scalar_select %p359, %s358, 63
      %s361 = smul.addr %s360, 8
      %s362 = scalar_lea.vmem %s6, %s361
      %s363 = smul.u32 8, %s22
      %s364 = ssub.s32 18, %s363
      %p365 = scmp.lt.s32.totalorder %s364, 8
      %s366 = scalar_select %p365, %s364, 8
      %s367 = smul.u32 128, %s366
      %s368 = smul.u32 %s367, 3
      %p369 = scmp.lt.s32.totalorder %s21, 1
      %s370 = scalar_select %p369, %s21, 1
      %p371 = scmp.lt.s32.totalorder %s363, 17
      %s372 = scalar_select %p371, %s363, 17
      %s373 = smul.addr %s372, 3
      %s374 = smul.addr %s370, 54
      %s375 = sadd.s32 %s373, %s374
      %s376 = smul.addr %s375, 8
      %s377 = scalar_lea.vmem %s0, %s376
      %s378 = smul.u32 8, %s22
      %s379 = ssub.s32 18, %s378
      %p380 = scmp.lt.s32.totalorder %s379, 8
      %s381 = scalar_select %p380, %s379, 8
      %s382 = smul.u32 128, %s381
      %s383 = smul.u32 %s382, 3
      %s384 = sadd.s32 %s22, 1
      %s385 = smul.u32 %s384, 8
      %p386 = scmp.lt.s32.totalorder %s21, 1
      %s387 = scalar_select %p386, %s21, 1
      %p388 = scmp.lt.s32.totalorder %s385, 17
      %s389 = scalar_select %p388, %s385, 17
      %s390 = smul.addr %s389, 3
      %s391 = smul.addr %s387, 54
      %s392 = sadd.s32 %s390, %s391
      %s393 = smul.addr %s392, 8
      %s394 = scalar_lea.vmem %s1, %s393
      %s395 = sadd.s32 %s22, 1
      %s396 = smul.u32 %s395, 8
      %s397 = sadd.s32 %s22, 1
      %s398 = smul.u32 %s397, 8
      %s399 = sadd.s32 %s398, 1
      %p400 = scmp.lt.s32.totalorder %s21, 1
      %s401 = scalar_select %p400, %s21, 1
      %p402 = scmp.lt.s32.totalorder %s399, 17
      %s403 = scalar_select %p402, %s399, 17
      %s404 = smul.addr %s403, 3
      %s405 = smul.addr %s401, 54
      %s406 = sadd.s32 %s404, %s405
      %s407 = smul.addr %s406, 8
      %s408 = scalar_lea.vmem %s2, %s407
      %s409 = sadd.s32 %s22, 1
      %s410 = smul.u32 %s409, 8
      %s411 = sadd.s32 %s410, 1
      %s412 = smul.u32 %s21, 2
      %s413 = sadd.s32 %s412, %s22
      %s414 = smul.u32 16, %s413
      %p415 = scmp.lt.s32.totalorder %s414, 63
      %s416 = scalar_select %p415, %s414, 63
      %s417 = smul.addr %s416, 8
      %s418 = scalar_lea.vmem %s6, %s417
      %s419 = smul.u32 %s21, 2
      %s420 = sadd.s32 %s419, %s22
      %s421 = smul.u32 16, %s420
      %v422 = vld [vmem:[%s377] sm:$0xff]
      %v423 = vld [vmem:[%s377 + $0x8] sm:$0xff]
      %v424 = vld [vmem:[%s377 + $0x18] sm:$0xff]
      %v425 = vld [vmem:[%s377 + $0x20] sm:$0xff]
      %v426 = vld [vmem:[%s377 + $0x30] sm:$0xff]
      %v427 = vld [vmem:[%s377 + $0x38] sm:$0xff]
      %v428 = vld [vmem:[%s377 + $0x48] sm:$0xff]
      %v429 = vld [vmem:[%s377 + $0x50] sm:$0xff]
      %v430 = vld [vmem:[%s377 + $0x60] sm:$0xff]
      %v431 = vld [vmem:[%s377 + $0x68] sm:$0xff]
      %v432 = vld [vmem:[%s377 + $0x78] sm:$0xff]
      %v433 = vld [vmem:[%s377 + $0x80] sm:$0xff]
      %v434 = vld [vmem:[%s377 + $0x90] sm:$0xff]
      %v435 = vld [vmem:[%s377 + $0x98] sm:$0xff]
      %v436 = vld [vmem:[%s377 + $0xa8] sm:$0xff]
      %v437 = vld [vmem:[%s377 + $0xb0] sm:$0xff]
      %vm438 = vcmask 31744
      %439 = vst.msk [vmem:[#allocation2] sm:$0xff] %vm438, %v422
      %440 = vst.msk [vmem:[#allocation2 + $0x8] sm:$0xff] %vm438, %v423
      %441 = vst.msk [vmem:[#allocation2 + $0x10] sm:$0xff] %vm438, %v424
      %442 = vst.msk [vmem:[#allocation2 + $0x18] sm:$0xff] %vm438, %v425
      %443 = vst.msk [vmem:[#allocation2 + $0x20] sm:$0xff] %vm438, %v426
      %444 = vst.msk [vmem:[#allocation2 + $0x28] sm:$0xff] %vm438, %v427
      %445 = vst.msk [vmem:[#allocation2 + $0x30] sm:$0xff] %vm438, %v428
      %446 = vst.msk [vmem:[#allocation2 + $0x38] sm:$0xff] %vm438, %v429
      %447 = vst.msk [vmem:[#allocation2 + $0x40] sm:$0xff] %vm438, %v430
      %448 = vst.msk [vmem:[#allocation2 + $0x48] sm:$0xff] %vm438, %v431
      %449 = vst.msk [vmem:[#allocation2 + $0x50] sm:$0xff] %vm438, %v432
      %450 = vst.msk [vmem:[#allocation2 + $0x58] sm:$0xff] %vm438, %v433
      %451 = vst.msk [vmem:[#allocation2 + $0x60] sm:$0xff] %vm438, %v434
      %452 = vst.msk [vmem:[#allocation2 + $0x68] sm:$0xff] %vm438, %v435
      %453 = vst.msk [vmem:[#allocation2 + $0x70] sm:$0xff] %vm438, %v436
      %454 = vst.msk [vmem:[#allocation2 + $0x78] sm:$0xff] %vm438, %v437
      %v455 = vld [vmem:[%s377 + $0x1] sm:$0xff]
      %v456 = vld [vmem:[%s377 + $0x9] sm:$0xff]
      %v457 = vld [vmem:[%s377 + $0x19] sm:$0xff]
      %v458 = vld [vmem:[%s377 + $0x21] sm:$0xff]
      %v459 = vld [vmem:[%s377 + $0x31] sm:$0xff]
      %v460 = vld [vmem:[%s377 + $0x39] sm:$0xff]
      %v461 = vld [vmem:[%s377 + $0x49] sm:$0xff]
      %v462 = vld [vmem:[%s377 + $0x51] sm:$0xff]
      %v463 = vld [vmem:[%s377 + $0x61] sm:$0xff]
      %v464 = vld [vmem:[%s377 + $0x69] sm:$0xff]
      %v465 = vld [vmem:[%s377 + $0x79] sm:$0xff]
      %v466 = vld [vmem:[%s377 + $0x81] sm:$0xff]
      %v467 = vld [vmem:[%s377 + $0x91] sm:$0xff]
      %v468 = vld [vmem:[%s377 + $0x99] sm:$0xff]
      %v469 = vld [vmem:[%s377 + $0xa9] sm:$0xff]
      %v470 = vld [vmem:[%s377 + $0xb1] sm:$0xff]
      %487 = vrot.lane.b32.xlu0 %v455, 4
      %v488 = vpop.permute.xlu0 %487
      %489 = vrot.lane.b32.xlu0 %v456, 4
      %v490 = vpop.permute.xlu0 %489
      %491 = vrot.lane.b32.xlu0 %v457, 4
      %v492 = vpop.permute.xlu0 %491
      %493 = vrot.lane.b32.xlu0 %v458, 4
      %v494 = vpop.permute.xlu0 %493
      %495 = vrot.lane.b32.xlu0 %v459, 4
      %v496 = vpop.permute.xlu0 %495
      %497 = vrot.lane.b32.xlu0 %v460, 4
      %v498 = vpop.permute.xlu0 %497
      %499 = vrot.lane.b32.xlu0 %v461, 4
      %v500 = vpop.permute.xlu0 %499
      %501 = vrot.lane.b32.xlu0 %v462, 4
      %v502 = vpop.permute.xlu0 %501
      %503 = vrot.lane.b32.xlu0 %v463, 4
      %v504 = vpop.permute.xlu0 %503
      %505 = vrot.lane.b32.xlu0 %v464, 4
      %v506 = vpop.permute.xlu0 %505
      %507 = vrot.lane.b32.xlu0 %v465, 4
      %v508 = vpop.permute.xlu0 %507
      %509 = vrot.lane.b32.xlu0 %v466, 4
      %v510 = vpop.permute.xlu0 %509
      %511 = vrot.lane.b32.xlu0 %v467, 4
      %v512 = vpop.permute.xlu0 %511
      %513 = vrot.lane.b32.xlu0 %v468, 4
      %v514 = vpop.permute.xlu0 %513
      %515 = vrot.lane.b32.xlu0 %v469, 4
      %v516 = vpop.permute.xlu0 %515
      %517 = vrot.lane.b32.xlu0 %v470, 4
      %v518 = vpop.permute.xlu0 %517
      %vm535 = vcmask 64544
      %536 = vst.msk [vmem:[#allocation2] sm:$0xff] %vm535, %v488
      %537 = vst.msk [vmem:[#allocation2 + $0x8] sm:$0xff] %vm535, %v490
      %538 = vst.msk [vmem:[#allocation2 + $0x10] sm:$0xff] %vm535, %v492
      %539 = vst.msk [vmem:[#allocation2 + $0x18] sm:$0xff] %vm535, %v494
      %540 = vst.msk [vmem:[#allocation2 + $0x20] sm:$0xff] %vm535, %v496
      %541 = vst.msk [vmem:[#allocation2 + $0x28] sm:$0xff] %vm535, %v498
      %542 = vst.msk [vmem:[#allocation2 + $0x30] sm:$0xff] %vm535, %v500
      %543 = vst.msk [vmem:[#allocation2 + $0x38] sm:$0xff] %vm535, %v502
      %544 = vst.msk [vmem:[#allocation2 + $0x40] sm:$0xff] %vm535, %v504
      %545 = vst.msk [vmem:[#allocation2 + $0x48] sm:$0xff] %vm535, %v506
      %546 = vst.msk [vmem:[#allocation2 + $0x50] sm:$0xff] %vm535, %v508
      %547 = vst.msk [vmem:[#allocation2 + $0x58] sm:$0xff] %vm535, %v510
      %548 = vst.msk [vmem:[#allocation2 + $0x60] sm:$0xff] %vm535, %v512
      %549 = vst.msk [vmem:[#allocation2 + $0x68] sm:$0xff] %vm535, %v514
      %550 = vst.msk [vmem:[#allocation2 + $0x70] sm:$0xff] %vm535, %v516
      %551 = vst.msk [vmem:[#allocation2 + $0x78] sm:$0xff] %vm535, %v518
      %v552 = vld [vmem:[%s377 + $0x2] sm:$0xff]
      %v553 = vld [vmem:[%s377 + $0xa] sm:$0xff]
      %v554 = vld [vmem:[%s377 + $0x1a] sm:$0xff]
      %v555 = vld [vmem:[%s377 + $0x22] sm:$0xff]
      %v556 = vld [vmem:[%s377 + $0x32] sm:$0xff]
      %v557 = vld [vmem:[%s377 + $0x3a] sm:$0xff]
      %v558 = vld [vmem:[%s377 + $0x4a] sm:$0xff]
      %v559 = vld [vmem:[%s377 + $0x52] sm:$0xff]
      %v560 = vld [vmem:[%s377 + $0x62] sm:$0xff]
      %v561 = vld [vmem:[%s377 + $0x6a] sm:$0xff]
      %v562 = vld [vmem:[%s377 + $0x7a] sm:$0xff]
      %v563 = vld [vmem:[%s377 + $0x82] sm:$0xff]
      %v564 = vld [vmem:[%s377 + $0x92] sm:$0xff]
      %v565 = vld [vmem:[%s377 + $0x9a] sm:$0xff]
      %v566 = vld [vmem:[%s377 + $0xaa] sm:$0xff]
      %v567 = vld [vmem:[%s377 + $0xb2] sm:$0xff]
      %584 = vrot.lane.b32.xlu0 %v552, 8
      %v585 = vpop.permute.xlu0 %584
      %586 = vrot.lane.b32.xlu0 %v553, 8
      %v587 = vpop.permute.xlu0 %586
      %588 = vrot.lane.b32.xlu0 %v554, 8
      %v589 = vpop.permute.xlu0 %588
      %590 = vrot.lane.b32.xlu0 %v555, 8
      %v591 = vpop.permute.xlu0 %590
      %592 = vrot.lane.b32.xlu0 %v556, 8
      %v593 = vpop.permute.xlu0 %592
      %594 = vrot.lane.b32.xlu0 %v557, 8
      %v595 = vpop.permute.xlu0 %594
      %596 = vrot.lane.b32.xlu0 %v558, 8
      %v597 = vpop.permute.xlu0 %596
      %598 = vrot.lane.b32.xlu0 %v559, 8
      %v599 = vpop.permute.xlu0 %598
      %600 = vrot.lane.b32.xlu0 %v560, 8
      %v601 = vpop.permute.xlu0 %600
      %602 = vrot.lane.b32.xlu0 %v561, 8
      %v603 = vpop.permute.xlu0 %602
      %604 = vrot.lane.b32.xlu0 %v562, 8
      %v605 = vpop.permute.xlu0 %604
      %606 = vrot.lane.b32.xlu0 %v563, 8
      %v607 = vpop.permute.xlu0 %606
      %608 = vrot.lane.b32.xlu0 %v564, 8
      %v609 = vpop.permute.xlu0 %608
      %610 = vrot.lane.b32.xlu0 %v565, 8
      %v611 = vpop.permute.xlu0 %610
      %612 = vrot.lane.b32.xlu0 %v566, 8
      %v613 = vpop.permute.xlu0 %612
      %614 = vrot.lane.b32.xlu0 %v567, 8
      %v615 = vpop.permute.xlu0 %614
      %vm632 = vcmask 97344
      %633 = vst.msk [vmem:[#allocation2] sm:$0xff] %vm632, %v585
      %634 = vst.msk [vmem:[#allocation2 + $0x8] sm:$0xff] %vm632, %v587
      %635 = vst.msk [vmem:[#allocation2 + $0x10] sm:$0xff] %vm632, %v589
      %636 = vst.msk [vmem:[#allocation2 + $0x18] sm:$0xff] %vm632, %v591
      %637 = vst.msk [vmem:[#allocation2 + $0x20] sm:$0xff] %vm632, %v593
      %638 = vst.msk [vmem:[#allocation2 + $0x28] sm:$0xff] %vm632, %v595
      %639 = vst.msk [vmem:[#allocation2 + $0x30] sm:$0xff] %vm632, %v597
      %640 = vst.msk [vmem:[#allocation2 + $0x38] sm:$0xff] %vm632, %v599
      %641 = vst.msk [vmem:[#allocation2 + $0x40] sm:$0xff] %vm632, %v601
      %642 = vst.msk [vmem:[#allocation2 + $0x48] sm:$0xff] %vm632, %v603
      %643 = vst.msk [vmem:[#allocation2 + $0x50] sm:$0xff] %vm632, %v605
      %644 = vst.msk [vmem:[#allocation2 + $0x58] sm:$0xff] %vm632, %v607
      %645 = vst.msk [vmem:[#allocation2 + $0x60] sm:$0xff] %vm632, %v609
      %646 = vst.msk [vmem:[#allocation2 + $0x68] sm:$0xff] %vm632, %v611
      %647 = vst.msk [vmem:[#allocation2 + $0x70] sm:$0xff] %vm632, %v613
      %648 = vst.msk [vmem:[#allocation2 + $0x78] sm:$0xff] %vm632, %v615
      %s649 = scalar_lea.vmem %s377, 24
      %v650 = vld [vmem:[%s649] sm:$0xff]
      %v651 = vld [vmem:[%s649 + $0x8] sm:$0xff]
      %v652 = vld [vmem:[%s649 + $0x18] sm:$0xff]
      %v653 = vld [vmem:[%s649 + $0x20] sm:$0xff]
      %v654 = vld [vmem:[%s649 + $0x30] sm:$0xff]
      %v655 = vld [vmem:[%s649 + $0x38] sm:$0xff]
      %v656 = vld [vmem:[%s649 + $0x48] sm:$0xff]
      %v657 = vld [vmem:[%s649 + $0x50] sm:$0xff]
      %v658 = vld [vmem:[%s649 + $0x60] sm:$0xff]
      %v659 = vld [vmem:[%s649 + $0x68] sm:$0xff]
      %v660 = vld [vmem:[%s649 + $0x78] sm:$0xff]
      %v661 = vld [vmem:[%s649 + $0x80] sm:$0xff]
      %v662 = vld [vmem:[%s649 + $0x90] sm:$0xff]
      %v663 = vld [vmem:[%s649 + $0x98] sm:$0xff]
      %678 = vrot.lane.b32.xlu0 %v650, 12
      %v679 = vpop.permute.xlu0 %678
      %680 = vrot.lane.b32.xlu0 %v651, 12
      %v681 = vpop.permute.xlu0 %680
      %682 = vrot.lane.b32.xlu0 %v652, 12
      %v683 = vpop.permute.xlu0 %682
      %684 = vrot.lane.b32.xlu0 %v653, 12
      %v685 = vpop.permute.xlu0 %684
      %686 = vrot.lane.b32.xlu0 %v654, 12
      %v687 = vpop.permute.xlu0 %686
      %688 = vrot.lane.b32.xlu0 %v655, 12
      %v689 = vpop.permute.xlu0 %688
      %690 = vrot.lane.b32.xlu0 %v656, 12
      %v691 = vpop.permute.xlu0 %690
      %692 = vrot.lane.b32.xlu0 %v657, 12
      %v693 = vpop.permute.xlu0 %692
      %694 = vrot.lane.b32.xlu0 %v658, 12
      %v695 = vpop.permute.xlu0 %694
      %696 = vrot.lane.b32.xlu0 %v659, 12
      %v697 = vpop.permute.xlu0 %696
      %698 = vrot.lane.b32.xlu0 %v660, 12
      %v699 = vpop.permute.xlu0 %698
      %700 = vrot.lane.b32.xlu0 %v661, 12
      %v701 = vpop.permute.xlu0 %700
      %702 = vrot.lane.b32.xlu0 %v662, 12
      %v703 = vpop.permute.xlu0 %702
      %704 = vrot.lane.b32.xlu0 %v663, 12
      %v705 = vpop.permute.xlu0 %704
      %vm720 = vcmask 130144
      %721 = vst.msk [vmem:[#allocation2] sm:$0xff] %vm720, %v679
      %722 = vst.msk [vmem:[#allocation2 + $0x8] sm:$0xff] %vm720, %v681
      %723 = vst.msk [vmem:[#allocation2 + $0x10] sm:$0xff] %vm720, %v683
      %724 = vst.msk [vmem:[#allocation2 + $0x18] sm:$0xff] %vm720, %v685
      %725 = vst.msk [vmem:[#allocation2 + $0x20] sm:$0xff] %vm720, %v687
      %726 = vst.msk [vmem:[#allocation2 + $0x28] sm:$0xff] %vm720, %v689
      %727 = vst.msk [vmem:[#allocation2 + $0x30] sm:$0xff] %vm720, %v691
      %728 = vst.msk [vmem:[#allocation2 + $0x38] sm:$0xff] %vm720, %v693
      %729 = vst.msk [vmem:[#allocation2 + $0x40] sm:$0xff] %vm720, %v695
      %730 = vst.msk [vmem:[#allocation2 + $0x48] sm:$0xff] %vm720, %v697
      %731 = vst.msk [vmem:[#allocation2 + $0x50] sm:$0xff] %vm720, %v699
      %732 = vst.msk [vmem:[#allocation2 + $0x58] sm:$0xff] %vm720, %v701
      %733 = vst.msk [vmem:[#allocation2 + $0x60] sm:$0xff] %vm720, %v703
      %734 = vst.msk [vmem:[#allocation2 + $0x68] sm:$0xff] %vm720, %v705
      %v735 = vld [vmem:[%s394] sm:$0xff]
      %v736 = vld [vmem:[%s394 + $0x8] sm:$0xff]
      %739 = vrot.lane.b32.xlu0 %v735, 12
      %v740 = vpop.permute.xlu0 %739
      %741 = vrot.lane.b32.xlu0 %v736, 12
      %v742 = vpop.permute.xlu0 %741
      %745 = vst.msk [vmem:[#allocation2 + $0x70] sm:$0xff] %vm720, %v740
      %746 = vst.msk [vmem:[#allocation2 + $0x78] sm:$0xff] %vm720, %v742
      %v747 = vld [vmem:[%s649 + $0x1] sm:$0xff]
      %v748 = vld [vmem:[%s649 + $0x9] sm:$0xff]
      %v749 = vld [vmem:[%s649 + $0x19] sm:$0xff]
      %v750 = vld [vmem:[%s649 + $0x21] sm:$0xff]
      %v751 = vld [vmem:[%s649 + $0x31] sm:$0xff]
      %v752 = vld [vmem:[%s649 + $0x39] sm:$0xff]
      %v753 = vld [vmem:[%s649 + $0x49] sm:$0xff]
      %v754 = vld [vmem:[%s649 + $0x51] sm:$0xff]
      %v755 = vld [vmem:[%s649 + $0x61] sm:$0xff]
      %v756 = vld [vmem:[%s649 + $0x69] sm:$0xff]
      %v757 = vld [vmem:[%s649 + $0x79] sm:$0xff]
      %v758 = vld [vmem:[%s649 + $0x81] sm:$0xff]
      %v759 = vld [vmem:[%s649 + $0x91] sm:$0xff]
      %v760 = vld [vmem:[%s649 + $0x99] sm:$0xff]
      %775 = vrot.lane.b32.xlu0 %v747, 16
      %v776 = vpop.permute.xlu0 %775
      %777 = vrot.lane.b32.xlu0 %v748, 16
      %v778 = vpop.permute.xlu0 %777
      %779 = vrot.lane.b32.xlu0 %v749, 16
      %v780 = vpop.permute.xlu0 %779
      %781 = vrot.lane.b32.xlu0 %v750, 16
      %v782 = vpop.permute.xlu0 %781
      %783 = vrot.lane.b32.xlu0 %v751, 16
      %v784 = vpop.permute.xlu0 %783
      %785 = vrot.lane.b32.xlu0 %v752, 16
      %v786 = vpop.permute.xlu0 %785
      %787 = vrot.lane.b32.xlu0 %v753, 16
      %v788 = vpop.permute.xlu0 %787
      %789 = vrot.lane.b32.xlu0 %v754, 16
      %v790 = vpop.permute.xlu0 %789
      %791 = vrot.lane.b32.xlu0 %v755, 16
      %v792 = vpop.permute.xlu0 %791
      %793 = vrot.lane.b32.xlu0 %v756, 16
      %v794 = vpop.permute.xlu0 %793
      %795 = vrot.lane.b32.xlu0 %v757, 16
      %v796 = vpop.permute.xlu0 %795
      %797 = vrot.lane.b32.xlu0 %v758, 16
      %v798 = vpop.permute.xlu0 %797
      %799 = vrot.lane.b32.xlu0 %v759, 16
      %v800 = vpop.permute.xlu0 %799
      %801 = vrot.lane.b32.xlu0 %v760, 16
      %v802 = vpop.permute.xlu0 %801
      %vm817 = vcmask 162944
      %818 = vst.msk [vmem:[#allocation2] sm:$0xff] %vm817, %v776
      %819 = vst.msk [vmem:[#allocation2 + $0x8] sm:$0xff] %vm817, %v778
      %820 = vst.msk [vmem:[#allocation2 + $0x10] sm:$0xff] %vm817, %v780
      %821 = vst.msk [vmem:[#allocation2 + $0x18] sm:$0xff] %vm817, %v782
      %822 = vst.msk [vmem:[#allocation2 + $0x20] sm:$0xff] %vm817, %v784
      %823 = vst.msk [vmem:[#allocation2 + $0x28] sm:$0xff] %vm817, %v786
      %824 = vst.msk [vmem:[#allocation2 + $0x30] sm:$0xff] %vm817, %v788
      %825 = vst.msk [vmem:[#allocation2 + $0x38] sm:$0xff] %vm817, %v790
      %826 = vst.msk [vmem:[#allocation2 + $0x40] sm:$0xff] %vm817, %v792
      %827 = vst.msk [vmem:[#allocation2 + $0x48] sm:$0xff] %vm817, %v794
      %828 = vst.msk [vmem:[#allocation2 + $0x50] sm:$0xff] %vm817, %v796
      %829 = vst.msk [vmem:[#allocation2 + $0x58] sm:$0xff] %vm817, %v798
      %830 = vst.msk [vmem:[#allocation2 + $0x60] sm:$0xff] %vm817, %v800
      %831 = vst.msk [vmem:[#allocation2 + $0x68] sm:$0xff] %vm817, %v802
      %v832 = vld [vmem:[%s394 + $0x1] sm:$0xff]
      %v833 = vld [vmem:[%s394 + $0x9] sm:$0xff]
      %836 = vrot.lane.b32.xlu0 %v832, 16
      %v837 = vpop.permute.xlu0 %836
      %838 = vrot.lane.b32.xlu0 %v833, 16
      %v839 = vpop.permute.xlu0 %838
      %842 = vst.msk [vmem:[#allocation2 + $0x70] sm:$0xff] %vm817, %v837
      %843 = vst.msk [vmem:[#allocation2 + $0x78] sm:$0xff] %vm817, %v839
      %v844 = vld [vmem:[%s649 + $0x2] sm:$0xff]
      %v845 = vld [vmem:[%s649 + $0xa] sm:$0xff]
      %v846 = vld [vmem:[%s649 + $0x1a] sm:$0xff]
      %v847 = vld [vmem:[%s649 + $0x22] sm:$0xff]
      %v848 = vld [vmem:[%s649 + $0x32] sm:$0xff]
      %v849 = vld [vmem:[%s649 + $0x3a] sm:$0xff]
      %v850 = vld [vmem:[%s649 + $0x4a] sm:$0xff]
      %v851 = vld [vmem:[%s649 + $0x52] sm:$0xff]
      %v852 = vld [vmem:[%s649 + $0x62] sm:$0xff]
      %v853 = vld [vmem:[%s649 + $0x6a] sm:$0xff]
      %v854 = vld [vmem:[%s649 + $0x7a] sm:$0xff]
      %v855 = vld [vmem:[%s649 + $0x82] sm:$0xff]
      %v856 = vld [vmem:[%s649 + $0x92] sm:$0xff]
      %v857 = vld [vmem:[%s649 + $0x9a] sm:$0xff]
      %872 = vrot.lane.b32.xlu0 %v844, 20
      %v873 = vpop.permute.xlu0 %872
      %874 = vrot.lane.b32.xlu0 %v845, 20
      %v875 = vpop.permute.xlu0 %874
      %876 = vrot.lane.b32.xlu0 %v846, 20
      %v877 = vpop.permute.xlu0 %876
      %878 = vrot.lane.b32.xlu0 %v847, 20
      %v879 = vpop.permute.xlu0 %878
      %880 = vrot.lane.b32.xlu0 %v848, 20
      %v881 = vpop.permute.xlu0 %880
      %882 = vrot.lane.b32.xlu0 %v849, 20
      %v883 = vpop.permute.xlu0 %882
      %884 = vrot.lane.b32.xlu0 %v850, 20
      %v885 = vpop.permute.xlu0 %884
      %886 = vrot.lane.b32.xlu0 %v851, 20
      %v887 = vpop.permute.xlu0 %886
      %888 = vrot.lane.b32.xlu0 %v852, 20
      %v889 = vpop.permute.xlu0 %888
      %890 = vrot.lane.b32.xlu0 %v853, 20
      %v891 = vpop.permute.xlu0 %890
      %892 = vrot.lane.b32.xlu0 %v854, 20
      %v893 = vpop.permute.xlu0 %892
      %894 = vrot.lane.b32.xlu0 %v855, 20
      %v895 = vpop.permute.xlu0 %894
      %896 = vrot.lane.b32.xlu0 %v856, 20
      %v897 = vpop.permute.xlu0 %896
      %898 = vrot.lane.b32.xlu0 %v857, 20
      %v899 = vpop.permute.xlu0 %898
      %vm914 = vcmask 195744
      %915 = vst.msk [vmem:[#allocation2] sm:$0xff] %vm914, %v873
      %916 = vst.msk [vmem:[#allocation2 + $0x8] sm:$0xff] %vm914, %v875
      %917 = vst.msk [vmem:[#allocation2 + $0x10] sm:$0xff] %vm914, %v877
      %918 = vst.msk [vmem:[#allocation2 + $0x18] sm:$0xff] %vm914, %v879
      %919 = vst.msk [vmem:[#allocation2 + $0x20] sm:$0xff] %vm914, %v881
      %920 = vst.msk [vmem:[#allocation2 + $0x28] sm:$0xff] %vm914, %v883
      %921 = vst.msk [vmem:[#allocation2 + $0x30] sm:$0xff] %vm914, %v885
      %922 = vst.msk [vmem:[#allocation2 + $0x38] sm:$0xff] %vm914, %v887
      %923 = vst.msk [vmem:[#allocation2 + $0x40] sm:$0xff] %vm914, %v889
      %924 = vst.msk [vmem:[#allocation2 + $0x48] sm:$0xff] %vm914, %v891
      %925 = vst.msk [vmem:[#allocation2 + $0x50] sm:$0xff] %vm914, %v893
      %926 = vst.msk [vmem:[#allocation2 + $0x58] sm:$0xff] %vm914, %v895
      %927 = vst.msk [vmem:[#allocation2 + $0x60] sm:$0xff] %vm914, %v897
      %928 = vst.msk [vmem:[#allocation2 + $0x68] sm:$0xff] %vm914, %v899
      %v929 = vld [vmem:[%s394 + $0x2] sm:$0xff]
      %v930 = vld [vmem:[%s394 + $0xa] sm:$0xff]
      %933 = vrot.lane.b32.xlu0 %v929, 20
      %v934 = vpop.permute.xlu0 %933
      %935 = vrot.lane.b32.xlu0 %v930, 20
      %v936 = vpop.permute.xlu0 %935
      %939 = vst.msk [vmem:[#allocation2 + $0x70] sm:$0xff] %vm914, %v934
      %940 = vst.msk [vmem:[#allocation2 + $0x78] sm:$0xff] %vm914, %v936
      %s941 = scalar_lea.vmem %s377, 48
      %v942 = vld [vmem:[%s941] sm:$0xff]
      %v943 = vld [vmem:[%s941 + $0x8] sm:$0xff]
      %v944 = vld [vmem:[%s941 + $0x18] sm:$0xff]
      %v945 = vld [vmem:[%s941 + $0x20] sm:$0xff]
      %v946 = vld [vmem:[%s941 + $0x30] sm:$0xff]
      %v947 = vld [vmem:[%s941 + $0x38] sm:$0xff]
      %v948 = vld [vmem:[%s941 + $0x48] sm:$0xff]
      %v949 = vld [vmem:[%s941 + $0x50] sm:$0xff]
      %v950 = vld [vmem:[%s941 + $0x60] sm:$0xff]
      %v951 = vld [vmem:[%s941 + $0x68] sm:$0xff]
      %v952 = vld [vmem:[%s941 + $0x78] sm:$0xff]
      %v953 = vld [vmem:[%s941 + $0x80] sm:$0xff]
      %966 = vrot.lane.b32.xlu0 %v942, 24
      %v967 = vpop.permute.xlu0 %966
      %968 = vrot.lane.b32.xlu0 %v943, 24
      %v969 = vpop.permute.xlu0 %968
      %970 = vrot.lane.b32.xlu0 %v944, 24
      %v971 = vpop.permute.xlu0 %970
      %972 = vrot.lane.b32.xlu0 %v945, 24
      %v973 = vpop.permute.xlu0 %972
      %974 = vrot.lane.b32.xlu0 %v946, 24
      %v975 = vpop.permute.xlu0 %974
      %976 = vrot.lane.b32.xlu0 %v947, 24
      %v977 = vpop.permute.xlu0 %976
      %978 = vrot.lane.b32.xlu0 %v948, 24
      %v979 = vpop.permute.xlu0 %978
      %980 = vrot.lane.b32.xlu0 %v949, 24
      %v981 = vpop.permute.xlu0 %980
      %982 = vrot.lane.b32.xlu0 %v950, 24
      %v983 = vpop.permute.xlu0 %982
      %984 = vrot.lane.b32.xlu0 %v951, 24
      %v985 = vpop.permute.xlu0 %984
      %986 = vrot.lane.b32.xlu0 %v952, 24
      %v987 = vpop.permute.xlu0 %986
      %988 = vrot.lane.b32.xlu0 %v953, 24
      %v989 = vpop.permute.xlu0 %988
      %vm1002 = vcmask 228544
      %1003 = vst.msk [vmem:[#allocation2] sm:$0xff] %vm1002, %v967
      %1004 = vst.msk [vmem:[#allocation2 + $0x8] sm:$0xff] %vm1002, %v969
      %1005 = vst.msk [vmem:[#allocation2 + $0x10] sm:$0xff] %vm1002, %v971
      %1006 = vst.msk [vmem:[#allocation2 + $0x18] sm:$0xff] %vm1002, %v973
      %1007 = vst.msk [vmem:[#allocation2 + $0x20] sm:$0xff] %vm1002, %v975
      %1008 = vst.msk [vmem:[#allocation2 + $0x28] sm:$0xff] %vm1002, %v977
      %1009 = vst.msk [vmem:[#allocation2 + $0x30] sm:$0xff] %vm1002, %v979
      %1010 = vst.msk [vmem:[#allocation2 + $0x38] sm:$0xff] %vm1002, %v981
      %1011 = vst.msk [vmem:[#allocation2 + $0x40] sm:$0xff] %vm1002, %v983
      %1012 = vst.msk [vmem:[#allocation2 + $0x48] sm:$0xff] %vm1002, %v985
      %1013 = vst.msk [vmem:[#allocation2 + $0x50] sm:$0xff] %vm1002, %v987
      %1014 = vst.msk [vmem:[#allocation2 + $0x58] sm:$0xff] %vm1002, %v989
      %v1015 = vld [vmem:[%s394] sm:$0xff]
      %v1016 = vld [vmem:[%s394 + $0x8] sm:$0xff]
      %1019 = vrot.lane.b32.xlu0 %v1015, 24
      %v1020 = vpop.permute.xlu0 %1019
      %1021 = vrot.lane.b32.xlu0 %v1016, 24
      %v1022 = vpop.permute.xlu0 %1021
      %1025 = vst.msk [vmem:[#allocation2 + $0x60] sm:$0xff] %vm1002, %v1020
      %1026 = vst.msk [vmem:[#allocation2 + $0x68] sm:$0xff] %vm1002, %v1022
      %v1027 = vld [vmem:[%s408] sm:$0xff]
      %v1028 = vld [vmem:[%s408 + $0x8] sm:$0xff]
      %1031 = vrot.lane.b32.xlu0 %v1027, 24
      %v1032 = vpop.permute.xlu0 %1031
      %1033 = vrot.lane.b32.xlu0 %v1028, 24
      %v1034 = vpop.permute.xlu0 %1033
      %1037 = vst.msk [vmem:[#allocation2 + $0x70] sm:$0xff] %vm1002, %v1032
      %1038 = vst.msk [vmem:[#allocation2 + $0x78] sm:$0xff] %vm1002, %v1034
      %v1039 = vld [vmem:[%s941 + $0x1] sm:$0xff]
      %v1040 = vld [vmem:[%s941 + $0x9] sm:$0xff]
      %v1041 = vld [vmem:[%s941 + $0x19] sm:$0xff]
      %v1042 = vld [vmem:[%s941 + $0x21] sm:$0xff]
      %v1043 = vld [vmem:[%s941 + $0x31] sm:$0xff]
      %v1044 = vld [vmem:[%s941 + $0x39] sm:$0xff]
      %v1045 = vld [vmem:[%s941 + $0x49] sm:$0xff]
      %v1046 = vld [vmem:[%s941 + $0x51] sm:$0xff]
      %v1047 = vld [vmem:[%s941 + $0x61] sm:$0xff]
      %v1048 = vld [vmem:[%s941 + $0x69] sm:$0xff]
      %v1049 = vld [vmem:[%s941 + $0x79] sm:$0xff]
      %v1050 = vld [vmem:[%s941 + $0x81] sm:$0xff]
      %1063 = vrot.lane.b32.xlu0 %v1039, 28
      %v1064 = vpop.permute.xlu0 %1063
      %1065 = vrot.lane.b32.xlu0 %v1040, 28
      %v1066 = vpop.permute.xlu0 %1065
      %1067 = vrot.lane.b32.xlu0 %v1041, 28
      %v1068 = vpop.permute.xlu0 %1067
      %1069 = vrot.lane.b32.xlu0 %v1042, 28
      %v1070 = vpop.permute.xlu0 %1069
      %1071 = vrot.lane.b32.xlu0 %v1043, 28
      %v1072 = vpop.permute.xlu0 %1071
      %1073 = vrot.lane.b32.xlu0 %v1044, 28
      %v1074 = vpop.permute.xlu0 %1073
      %1075 = vrot.lane.b32.xlu0 %v1045, 28
      %v1076 = vpop.permute.xlu0 %1075
      %1077 = vrot.lane.b32.xlu0 %v1046, 28
      %v1078 = vpop.permute.xlu0 %1077
      %1079 = vrot.lane.b32.xlu0 %v1047, 28
      %v1080 = vpop.permute.xlu0 %1079
      %1081 = vrot.lane.b32.xlu0 %v1048, 28
      %v1082 = vpop.permute.xlu0 %1081
      %1083 = vrot.lane.b32.xlu0 %v1049, 28
      %v1084 = vpop.permute.xlu0 %1083
      %1085 = vrot.lane.b32.xlu0 %v1050, 28
      %v1086 = vpop.permute.xlu0 %1085
      %vm1099 = vcmask 261344
      %1100 = vst.msk [vmem:[#allocation2] sm:$0xff] %vm1099, %v1064
      %1101 = vst.msk [vmem:[#allocation2 + $0x8] sm:$0xff] %vm1099, %v1066
      %1102 = vst.msk [vmem:[#allocation2 + $0x10] sm:$0xff] %vm1099, %v1068
      %1103 = vst.msk [vmem:[#allocation2 + $0x18] sm:$0xff] %vm1099, %v1070
      %1104 = vst.msk [vmem:[#allocation2 + $0x20] sm:$0xff] %vm1099, %v1072
      %1105 = vst.msk [vmem:[#allocation2 + $0x28] sm:$0xff] %vm1099, %v1074
      %1106 = vst.msk [vmem:[#allocation2 + $0x30] sm:$0xff] %vm1099, %v1076
      %1107 = vst.msk [vmem:[#allocation2 + $0x38] sm:$0xff] %vm1099, %v1078
      %1108 = vst.msk [vmem:[#allocation2 + $0x40] sm:$0xff] %vm1099, %v1080
      %1109 = vst.msk [vmem:[#allocation2 + $0x48] sm:$0xff] %vm1099, %v1082
      %1110 = vst.msk [vmem:[#allocation2 + $0x50] sm:$0xff] %vm1099, %v1084
      %1111 = vst.msk [vmem:[#allocation2 + $0x58] sm:$0xff] %vm1099, %v1086
      %v1112 = vld [vmem:[%s394 + $0x1] sm:$0xff]
      %v1113 = vld [vmem:[%s394 + $0x9] sm:$0xff]
      %1116 = vrot.lane.b32.xlu0 %v1112, 28
      %v1117 = vpop.permute.xlu0 %1116
      %1118 = vrot.lane.b32.xlu0 %v1113, 28
      %v1119 = vpop.permute.xlu0 %1118
      %1122 = vst.msk [vmem:[#allocation2 + $0x60] sm:$0xff] %vm1099, %v1117
      %1123 = vst.msk [vmem:[#allocation2 + $0x68] sm:$0xff] %vm1099, %v1119
      %v1124 = vld [vmem:[%s408 + $0x1] sm:$0xff]
      %v1125 = vld [vmem:[%s408 + $0x9] sm:$0xff]
      %1128 = vrot.lane.b32.xlu0 %v1124, 28
      %v1129 = vpop.permute.xlu0 %1128
      %1130 = vrot.lane.b32.xlu0 %v1125, 28
      %v1131 = vpop.permute.xlu0 %1130
      %1134 = vst.msk [vmem:[#allocation2 + $0x70] sm:$0xff] %vm1099, %v1129
      %1135 = vst.msk [vmem:[#allocation2 + $0x78] sm:$0xff] %vm1099, %v1131
      %v1136 = vld [vmem:[%s941 + $0x2] sm:$0xff]
      %v1137 = vld [vmem:[%s941 + $0xa] sm:$0xff]
      %v1138 = vld [vmem:[%s941 + $0x1a] sm:$0xff]
      %v1139 = vld [vmem:[%s941 + $0x22] sm:$0xff]
      %v1140 = vld [vmem:[%s941 + $0x32] sm:$0xff]
      %v1141 = vld [vmem:[%s941 + $0x3a] sm:$0xff]
      %v1142 = vld [vmem:[%s941 + $0x4a] sm:$0xff]
      %v1143 = vld [vmem:[%s941 + $0x52] sm:$0xff]
      %v1144 = vld [vmem:[%s941 + $0x62] sm:$0xff]
      %v1145 = vld [vmem:[%s941 + $0x6a] sm:$0xff]
      %v1146 = vld [vmem:[%s941 + $0x7a] sm:$0xff]
      %v1147 = vld [vmem:[%s941 + $0x82] sm:$0xff]
      %1160 = vrot.lane.b32.xlu0 %v1136, 32
      %v1161 = vpop.permute.xlu0 %1160
      %1162 = vrot.lane.b32.xlu0 %v1137, 32
      %v1163 = vpop.permute.xlu0 %1162
      %1164 = vrot.lane.b32.xlu0 %v1138, 32
      %v1165 = vpop.permute.xlu0 %1164
      %1166 = vrot.lane.b32.xlu0 %v1139, 32
      %v1167 = vpop.permute.xlu0 %1166
      %1168 = vrot.lane.b32.xlu0 %v1140, 32
      %v1169 = vpop.permute.xlu0 %1168
      %1170 = vrot.lane.b32.xlu0 %v1141, 32
      %v1171 = vpop.permute.xlu0 %1170
      %1172 = vrot.lane.b32.xlu0 %v1142, 32
      %v1173 = vpop.permute.xlu0 %1172
      %1174 = vrot.lane.b32.xlu0 %v1143, 32
      %v1175 = vpop.permute.xlu0 %1174
      %1176 = vrot.lane.b32.xlu0 %v1144, 32
      %v1177 = vpop.permute.xlu0 %1176
      %1178 = vrot.lane.b32.xlu0 %v1145, 32
      %v1179 = vpop.permute.xlu0 %1178
      %1180 = vrot.lane.b32.xlu0 %v1146, 32
      %v1181 = vpop.permute.xlu0 %1180
      %1182 = vrot.lane.b32.xlu0 %v1147, 32
      %v1183 = vpop.permute.xlu0 %1182
      %vm1196 = vcmask 294144
      %1197 = vst.msk [vmem:[#allocation2] sm:$0xff] %vm1196, %v1161
      %1198 = vst.msk [vmem:[#allocation2 + $0x8] sm:$0xff] %vm1196, %v1163
      %1199 = vst.msk [vmem:[#allocation2 + $0x10] sm:$0xff] %vm1196, %v1165
      %1200 = vst.msk [vmem:[#allocation2 + $0x18] sm:$0xff] %vm1196, %v1167
      %1201 = vst.msk [vmem:[#allocation2 + $0x20] sm:$0xff] %vm1196, %v1169
      %1202 = vst.msk [vmem:[#allocation2 + $0x28] sm:$0xff] %vm1196, %v1171
      %1203 = vst.msk [vmem:[#allocation2 + $0x30] sm:$0xff] %vm1196, %v1173
      %1204 = vst.msk [vmem:[#allocation2 + $0x38] sm:$0xff] %vm1196, %v1175
      %1205 = vst.msk [vmem:[#allocation2 + $0x40] sm:$0xff] %vm1196, %v1177
      %1206 = vst.msk [vmem:[#allocation2 + $0x48] sm:$0xff] %vm1196, %v1179
      %1207 = vst.msk [vmem:[#allocation2 + $0x50] sm:$0xff] %vm1196, %v1181
      %1208 = vst.msk [vmem:[#allocation2 + $0x58] sm:$0xff] %vm1196, %v1183
      %v1209 = vld [vmem:[%s394 + $0x2] sm:$0xff]
      %v1210 = vld [vmem:[%s394 + $0xa] sm:$0xff]
      %1213 = vrot.lane.b32.xlu0 %v1209, 32
      %v1214 = vpop.permute.xlu0 %1213
      %1215 = vrot.lane.b32.xlu0 %v1210, 32
      %v1216 = vpop.permute.xlu0 %1215
      %1219 = vst.msk [vmem:[#allocation2 + $0x60] sm:$0xff] %vm1196, %v1214
      %1220 = vst.msk [vmem:[#allocation2 + $0x68] sm:$0xff] %vm1196, %v1216
      %v1221 = vld [vmem:[%s408 + $0x2] sm:$0xff]
      %v1222 = vld [vmem:[%s408 + $0xa] sm:$0xff]
      %1225 = vrot.lane.b32.xlu0 %v1221, 32
      %v1226 = vpop.permute.xlu0 %1225
      %1227 = vrot.lane.b32.xlu0 %v1222, 32
      %v1228 = vpop.permute.xlu0 %1227
      %1231 = vst.msk [vmem:[#allocation2 + $0x70] sm:$0xff] %vm1196, %v1226
      %1232 = vst.msk [vmem:[#allocation2 + $0x78] sm:$0xff] %vm1196, %v1228
      %v1233 = vld [vmem:[#allocation2] sm:$0xff]
      %v1234 = vld [vmem:[#allocation2 + $0x8] sm:$0xff]
      %v1235 = vld [vmem:[#allocation2 + $0x10] sm:$0xff]
      %v1236 = vld [vmem:[#allocation2 + $0x18] sm:$0xff]
      %v1237 = vld [vmem:[#allocation2 + $0x20] sm:$0xff]
      %v1238 = vld [vmem:[#allocation2 + $0x28] sm:$0xff]
      %v1239 = vld [vmem:[#allocation2 + $0x30] sm:$0xff]
      %v1240 = vld [vmem:[#allocation2 + $0x38] sm:$0xff]
      %v1241 = vld [vmem:[#allocation2 + $0x40] sm:$0xff]
      %v1242 = vld [vmem:[#allocation2 + $0x48] sm:$0xff]
      %v1243 = vld [vmem:[#allocation2 + $0x50] sm:$0xff]
      %v1244 = vld [vmem:[#allocation2 + $0x58] sm:$0xff]
      %v1245 = vld [vmem:[#allocation2 + $0x60] sm:$0xff]
      %v1246 = vld [vmem:[#allocation2 + $0x68] sm:$0xff]
      %v1247 = vld [vmem:[#allocation2 + $0x70] sm:$0xff]
      %v1248 = vld [vmem:[#allocation2 + $0x78] sm:$0xff]
      %v1249 = vld [vmem:[%s3] sm:$0xff]
      %v1250 = vld [vmem:[%s3 + $0x8] sm:$0xff]
      %v1251 = vld [vmem:[%s3 + $0x10] sm:$0xff]
      %v1252 = vld [vmem:[%s3 + $0x18] sm:$0xff]
      %v1253 = vld [vmem:[%s3 + $0x20] sm:$0xf]
      %vm1254 = vcmask 293888
      %v1256 = vsel %vm1254, %v1233, 0
      %v1259 = vsel %vm1254, %v1234, 0
      %v1262 = vsel %vm1254, %v1235, 0
      %v1265 = vsel %vm1254, %v1236, 0
      %v1268 = vsel %vm1254, %v1237, 0
      %v1271 = vsel %vm1254, %v1238, 0
      %v1274 = vsel %vm1254, %v1239, 0
      %v1277 = vsel %vm1254, %v1240, 0
      %v1280 = vsel %vm1254, %v1241, 0
      %v1283 = vsel %vm1254, %v1242, 0
      %v1286 = vsel %vm1254, %v1243, 0
      %v1289 = vsel %vm1254, %v1244, 0
      %v1292 = vsel %vm1254, %v1245, 0
      %v1295 = vsel %vm1254, %v1246, 0
      %v1298 = vsel %vm1254, %v1247, 0
      %v1301 = vsel %vm1254, %v1248, 0
      %vm1303 = vcmask 1043456
      %v1305 = vsel %vm1303, %v1253, 0
      %1307 = vmatprep.subr.mxu0 0.0
      %1308 = vmatpush1.msra.mxu0 0.0
      %1309 = vmatprep.subr.mxu0 0.0
      %1310 = vmatpush1.msra.mxu0 0.0
      %1311 = vmatprep.subr.mxu0 0.0
      %1312 = vmatpush1.msra.mxu0 0.0
      %1313 = vmatprep.subr.mxu0 0.0
      %1314 = vmatpush1.msra.mxu0 0.0
      %1315 = vmatprep.subr.mxu0 0.0
      %1316 = vmatpush1.msra.mxu0 0.0
      %1317 = vmatprep.subr.mxu0 0.0
      %1318 = vmatpush1.msra.mxu0 0.0
      %1319 = vmatprep.subr.mxu0 0.0
      %1320 = vmatpush1.msra.mxu0 0.0
      %1321 = vmatprep.subr.mxu0 0.0
      %1322 = vmatpush1.msra.mxu0 0.0
      %1323 = vmatprep.subr.mxu0 0.0
      %1324 = vmatpush1.msra.mxu0 0.0
      %1325 = vmatprep.subr.mxu0 0.0
      %1326 = vmatpush1.msra.mxu0 0.0
      %1327 = vmatprep.subr.mxu0 0.0
      %1328 = vmatpush1.msra.mxu0 0.0
      %1329 = vmatprep.subr.mxu0 0.0
      %1330 = vmatpush1.msra.mxu0 %v1305
      %1331 = vmatprep.subr.mxu0 0.0
      %1332 = vmatpush1.msra.mxu0 %v1252
      %1333 = vmatprep.subr.mxu0 0.0
      %1334 = vmatpush1.msra.mxu0 %v1251
      %1335 = vmatprep.subr.mxu0 0.0
      %1336 = vmatpush1.msra.mxu0 %v1250
      %1337 = vmatprep.subr.mxu0 0.0
      %1338 = vmatpush1.msra.mxu0 %v1249
      %1339 = vmatprep.subr.mxu0 0.0
      %1340 = vmatpush2.msra.mxu0 0.0
      %1341 = vmatprep.subr.mxu0 0.0
      %1342 = vmatpush2.msra.mxu0 0.0
      %1343 = vmatprep.subr.mxu0 0.0
      %1344 = vmatpush2.msra.mxu0 0.0
      %1345 = vmatprep.subr.mxu0 0.0
      %1346 = vmatpush2.msra.mxu0 0.0
      %1347 = vmatprep.subr.mxu0 0.0
      %1348 = vmatpush2.msra.mxu0 0.0
      %1349 = vmatprep.subr.mxu0 0.0
      %1350 = vmatpush2.msra.mxu0 0.0
      %1351 = vmatprep.subr.mxu0 0.0
      %1352 = vmatpush2.msra.mxu0 0.0
      %1353 = vmatprep.subr.mxu0 0.0
      %1354 = vmatpush2.msra.mxu0 0.0
      %1355 = vmatprep.subr.mxu0 0.0
      %1356 = vmatpush2.msra.mxu0 0.0
      %1357 = vmatprep.subr.mxu0 0.0
      %1358 = vmatpush2.msra.mxu0 0.0
      %1359 = vmatprep.subr.mxu0 0.0
      %1360 = vmatpush2.msra.mxu0 0.0
      %1361 = vmatprep.subr.mxu0 0.0
      %1362 = vmatpush2.msra.mxu0 0.0
      %1363 = vmatprep.subr.mxu0 0.0
      %1364 = vmatpush2.msra.mxu0 0.0
      %1365 = vmatprep.subr.mxu0 0.0
      %1366 = vmatpush2.msra.mxu0 0.0
      %1367 = vmatprep.subr.mxu0 0.0
      %1368 = vmatpush2.msra.mxu0 0.0
      %1369 = vmatprep.subr.mxu0 0.0
      %1370 = vmatpush2.msra.mxu0 0.0
      %1371 = vmatprep.mubr.f32.mxu0 0.0
      %1372 = vmatmul.mubr.f32.gmra.mxu0 %v1256
      %v1373 = vpop.f32.mrf.mxu0
      %v1374 = vadd.f32 0.0, %v1373
      %v1375 = vpop.f32.mrf.mxu0
      %1376 = vmatprep.mubr.f32.mxu0 0.0
      %1377 = vmatmul.mubr.f32.gmra.mxu0 %v1259
      %v1378 = vpop.f32.mrf.mxu0
      %v1379 = vadd.f32 0.0, %v1378
      %v1380 = vpop.f32.mrf.mxu0
      %1381 = vmatprep.mubr.f32.mxu0 0.0
      %1382 = vmatmul.mubr.f32.gmra.mxu0 %v1262
      %v1383 = vpop.f32.mrf.mxu0
      %v1384 = vadd.f32 0.0, %v1383
      %v1385 = vpop.f32.mrf.mxu0
      %1386 = vmatprep.mubr.f32.mxu0 0.0
      %1387 = vmatmul.mubr.f32.gmra.mxu0 %v1265
      %v1388 = vpop.f32.mrf.mxu0
      %v1389 = vadd.f32 0.0, %v1388
      %v1390 = vpop.f32.mrf.mxu0
      %1391 = vmatprep.mubr.f32.mxu0 0.0
      %1392 = vmatmul.mubr.f32.gmra.mxu0 %v1268
      %v1393 = vpop.f32.mrf.mxu0
      %v1394 = vadd.f32 0.0, %v1393
      %v1395 = vpop.f32.mrf.mxu0
      %1396 = vmatprep.mubr.f32.mxu0 0.0
      %1397 = vmatmul.mubr.f32.gmra.mxu0 %v1271
      %v1398 = vpop.f32.mrf.mxu0
      %v1399 = vadd.f32 0.0, %v1398
      %v1400 = vpop.f32.mrf.mxu0
      %1401 = vmatprep.mubr.f32.mxu0 0.0
      %1402 = vmatmul.mubr.f32.gmra.mxu0 %v1274
      %v1403 = vpop.f32.mrf.mxu0
      %v1404 = vadd.f32 0.0, %v1403
      %v1405 = vpop.f32.mrf.mxu0
      %1406 = vmatprep.mubr.f32.mxu0 0.0
      %1407 = vmatmul.mubr.f32.gmra.mxu0 %v1277
      %v1408 = vpop.f32.mrf.mxu0
      %v1409 = vadd.f32 0.0, %v1408
      %v1410 = vpop.f32.mrf.mxu0
      %1411 = vmatprep.mubr.f32.mxu0 0.0
      %1412 = vmatmul.mubr.f32.gmra.mxu0 %v1280
      %v1413 = vpop.f32.mrf.mxu0
      %v1414 = vadd.f32 0.0, %v1413
      %v1415 = vpop.f32.mrf.mxu0
      %1416 = vmatprep.mubr.f32.mxu0 0.0
      %1417 = vmatmul.mubr.f32.gmra.mxu0 %v1283
      %v1418 = vpop.f32.mrf.mxu0
      %v1419 = vadd.f32 0.0, %v1418
      %v1420 = vpop.f32.mrf.mxu0
      %1421 = vmatprep.mubr.f32.mxu0 0.0
      %1422 = vmatmul.mubr.f32.gmra.mxu0 %v1286
      %v1423 = vpop.f32.mrf.mxu0
      %v1424 = vadd.f32 0.0, %v1423
      %v1425 = vpop.f32.mrf.mxu0
      %1426 = vmatprep.mubr.f32.mxu0 0.0
      %1427 = vmatmul.mubr.f32.gmra.mxu0 %v1289
      %v1428 = vpop.f32.mrf.mxu0
      %v1429 = vadd.f32 0.0, %v1428
      %v1430 = vpop.f32.mrf.mxu0
      %1431 = vmatprep.mubr.f32.mxu0 0.0
      %1432 = vmatmul.mubr.f32.gmra.mxu0 %v1292
      %v1433 = vpop.f32.mrf.mxu0
      %v1434 = vadd.f32 0.0, %v1433
      %v1435 = vpop.f32.mrf.mxu0
      %1436 = vmatprep.mubr.f32.mxu0 0.0
      %1437 = vmatmul.mubr.f32.gmra.mxu0 %v1295
      %v1438 = vpop.f32.mrf.mxu0
      %v1439 = vadd.f32 0.0, %v1438
      %v1440 = vpop.f32.mrf.mxu0
      %1441 = vmatprep.mubr.f32.mxu0 0.0
      %1442 = vmatmul.mubr.f32.gmra.mxu0 %v1298
      %v1443 = vpop.f32.mrf.mxu0
      %v1444 = vadd.f32 0.0, %v1443
      %v1445 = vpop.f32.mrf.mxu0
      %1446 = vmatprep.mubr.f32.mxu0 0.0
      %1447 = vmatmul.mubr.f32.gmra.mxu0 %v1301
      %v1448 = vpop.f32.mrf.mxu0
      %v1449 = vadd.f32 0.0, %v1448
      %v1450 = vpop.f32.mrf.mxu0
      %1451 = vdwg.mxu0
      %v1452 = vld [vmem:[%s4] sm:$0x1]
      %v1454 = vlaneseq
      %v1455 = vshrl.u32 %v1454, 7
      %v1456 = vsub.s32 0, %v1455
      %v1457 = vrot.slane %v1452, %v1456
      %v1459 = vmul.f32 %v1374, %v1457
      %v1460 = vmul.f32 %v1379, %v1457
      %v1461 = vmul.f32 %v1384, %v1457
      %v1462 = vmul.f32 %v1389, %v1457
      %v1463 = vmul.f32 %v1394, %v1457
      %v1464 = vmul.f32 %v1399, %v1457
      %v1465 = vmul.f32 %v1404, %v1457
      %v1466 = vmul.f32 %v1409, %v1457
      %v1467 = vmul.f32 %v1414, %v1457
      %v1468 = vmul.f32 %v1419, %v1457
      %v1469 = vmul.f32 %v1424, %v1457
      %v1470 = vmul.f32 %v1429, %v1457
      %v1471 = vmul.f32 %v1434, %v1457
      %v1472 = vmul.f32 %v1439, %v1457
      %v1473 = vmul.f32 %v1444, %v1457
      %v1474 = vmul.f32 %v1449, %v1457
      %v1475 = vld [vmem:[%s5] sm:$0x1]
      %v1477 = vlaneseq
      %v1478 = vshrl.u32 %v1477, 7
      %v1479 = vsub.s32 0, %v1478
      %v1480 = vrot.slane %v1475, %v1479
      %v1482 = vadd.f32 %v1459, %v1480
      %v1483 = vadd.f32 %v1460, %v1480
      %v1484 = vadd.f32 %v1461, %v1480
      %v1485 = vadd.f32 %v1462, %v1480
      %v1486 = vadd.f32 %v1463, %v1480
      %v1487 = vadd.f32 %v1464, %v1480
      %v1488 = vadd.f32 %v1465, %v1480
      %v1489 = vadd.f32 %v1466, %v1480
      %v1490 = vadd.f32 %v1467, %v1480
      %v1491 = vadd.f32 %v1468, %v1480
      %v1492 = vadd.f32 %v1469, %v1480
      %v1493 = vadd.f32 %v1470, %v1480
      %v1494 = vadd.f32 %v1471, %v1480
      %v1495 = vadd.f32 %v1472, %v1480
      %v1496 = vadd.f32 %v1473, %v1480
      %v1497 = vadd.f32 %v1474, %v1480
      %v1498 = vmax.f32 %v1482, 0.0
      %v1499 = vmax.f32 %v1483, 0.0
      %v1500 = vmax.f32 %v1484, 0.0
      %v1501 = vmax.f32 %v1485, 0.0
      %v1502 = vmax.f32 %v1486, 0.0
      %v1503 = vmax.f32 %v1487, 0.0
      %v1504 = vmax.f32 %v1488, 0.0
      %v1505 = vmax.f32 %v1489, 0.0
      %v1506 = vmax.f32 %v1490, 0.0
      %v1507 = vmax.f32 %v1491, 0.0
      %v1508 = vmax.f32 %v1492, 0.0
      %v1509 = vmax.f32 %v1493, 0.0
      %v1510 = vmax.f32 %v1494, 0.0
      %v1511 = vmax.f32 %v1495, 0.0
      %v1512 = vmax.f32 %v1496, 0.0
      %v1513 = vmax.f32 %v1497, 0.0
      %vm1514 = vcmask 261120
      %1515 = vst.msk [vmem:[%s418] sm:$0xff] %vm1514, %v1498
      %1516 = vst.msk [vmem:[%s418 + $0x8] sm:$0xff] %vm1514, %v1499
      %1517 = vst.msk [vmem:[%s418 + $0x10] sm:$0xff] %vm1514, %v1500
      %1518 = vst.msk [vmem:[%s418 + $0x18] sm:$0xff] %vm1514, %v1501
      %1519 = vst.msk [vmem:[%s418 + $0x20] sm:$0xff] %vm1514, %v1502
      %1520 = vst.msk [vmem:[%s418 + $0x28] sm:$0xff] %vm1514, %v1503
      %1521 = vst.msk [vmem:[%s418 + $0x30] sm:$0xff] %vm1514, %v1504
      %1522 = vst.msk [vmem:[%s418 + $0x38] sm:$0xff] %vm1514, %v1505
      %1523 = vst.msk [vmem:[%s418 + $0x40] sm:$0xff] %vm1514, %v1506
      %1524 = vst.msk [vmem:[%s418 + $0x48] sm:$0xff] %vm1514, %v1507
      %1525 = vst.msk [vmem:[%s418 + $0x50] sm:$0xff] %vm1514, %v1508
      %1526 = vst.msk [vmem:[%s418 + $0x58] sm:$0xff] %vm1514, %v1509
      %1527 = vst.msk [vmem:[%s418 + $0x60] sm:$0xff] %vm1514, %v1510
      %1528 = vst.msk [vmem:[%s418 + $0x68] sm:$0xff] %vm1514, %v1511
      %1529 = vst.msk [vmem:[%s418 + $0x70] sm:$0xff] %vm1514, %v1512
      %1530 = vst.msk [vmem:[%s418 + $0x78] sm:$0xff] %vm1514, %v1513
      %s1531 = smul.u32 %s21, 2
      %s1532 = sadd.s32 %s1531, %s22
      %s1533 = smul.u32 16, %s1532
      %p1534 = scmp.lt.s32.totalorder %s1533, 63
      %s1535 = scalar_select %p1534, %s1533, 63
      %s1536 = smul.addr %s1535, 8
      %s1537 = scalar_lea.vmem %s6, %s1536
      // Predicated region
      $region45: #{conv_up_sample.3} parent=43 // pred_check
        %p1538 = pneg %p208
      $region46: #{conv_up_sample.3} parent=43 // pred_check_branch
        %1540 = sbr.rel (%p1538) target = $region48
      $region47: #{conv_up_sample.3} parent=43 // pred_region
        %s1541 = smul.u32 %s21, 2
        %s1542 = sadd.s32 %s1541, %s22
        %s1543 = smul.u32 16, %s1542
      $region48: #{conv_up_sample.3} parent=43 // pred_fallthru
        _
    $region44: #{conv_up_sample.3} parent=5 // pred_fallthru
      _
    %p1544 = scmp.le.s32.totalorder 2, %s12
    // Predicated region
    $region49: #{conv_up_sample.3} parent=5 // pred_check
      %p1545 = pneg %p1544
    $region50: #{conv_up_sample.3} parent=5 // pred_check_branch
      %1547 = sbr.rel (%p1545) target = $region52
    $region51: #{conv_up_sample.3} parent=5 // pred_region
      %s1548 = ssub.s32 %s12, 2
      // Predicated region
      $region53: #{conv_up_sample.3} parent=51 // pred_check
        %p1549 = pneg %p214
      $region54: #{conv_up_sample.3} parent=51 // pred_check_branch
        %1551 = sbr.rel (%p1549) target = $region56
      $region55: #{conv_up_sample.3} parent=51 // pred_region
        %s1552 = smul.u32 %s23, 2
        %s1553 = sadd.s32 %s1552, %s24
        %s1554 = smul.u32 16, %s1553
        %p1555 = scmp.lt.s32.totalorder %s1554, 63
        %s1556 = scalar_select %p1555, %s1554, 63
        %s1557 = smul.addr %s1556, 8
        %s1558 = scalar_lea.vmem %s6, %s1557
      $region56: #{conv_up_sample.3} parent=51 // pred_fallthru
        _
    $region52: #{conv_up_sample.3} parent=5 // pred_fallthru
      _
  $region6: #{conv_up_sample.3} parent=0 // loop_footer
    %s16 = sadd.s32 1, %s12
  $region7: #{conv_up_sample.3} parent=0 // loop_footer_branch
    %11 = sbr.rel target = $region3
  $region8: #{conv_up_sample.3} parent=0 // loop_exit
    _

</llo_original>
